<compile_context>
chip_gen: v6e
topology: v6e:2x2x1
jax: 0.10.0
libtpu: 0.0.40
codegen_flags: <defaults>
</compile_context>

<pallas_src>
import functools

import jax
import jax.numpy as jnp
from jax.experimental import pallas as pl
from jax.experimental.pallas import tpu as pltpu

LEAKY_SLOPE = 0.2
BN_EPS = 1e-5
NDF = 8          # small ndf for a quick synthetic run (PyTorch default is 64)


def _round_up(x, m):
    return (x + m - 1) // m * m


# ----------------------------------------------------------------------------
# Pallas kernels
# ----------------------------------------------------------------------------
def _convT_act_kernel(w_ref, p_ref, o_ref, *, act):
    """Output tile y^T = W[C,K] @ patches^T[K,tm], fused activation. Shape (C, tm)."""
    y = jnp.dot(w_ref[...], p_ref[...], preferred_element_type=jnp.float32)
    if act == "leaky":
        y = jnp.maximum(y, LEAKY_SLOPE * y)          # valid for 0 < slope < 1
    elif act == "sigmoid":
        y = 1.0 / (1.0 + jnp.exp(-y))
    o_ref[...] = y.astype(o_ref.dtype)


def _convT_bn_leaky_kernel(w_ref, p_ref, g_ref, b_ref, o_ref, *, inv_m):
    """Fused conv + BatchNorm (train-mode batch stats) + LeakyReLU(0.2).

    Single grid step: the whole layer's y (a few tens of KiB at these sizes) stays
    resident in VMEM, so stats + apply need no extra HBM round trips or launches.
    """
    y = jnp.dot(w_ref[...], p_ref[...], preferred_element_type=jnp.float32)  # (C, M)
    mean = jnp.sum(y, axis=1, keepdims=True) * inv_m                         # (C, 1)
    var = jnp.sum(y * y, axis=1, keepdims=True) * inv_m - mean * mean        # biased
    scale = g_ref[...] * jax.lax.rsqrt(var + BN_EPS)                         # EUP
    shift = b_ref[...] - mean * scale
    z = y * scale + shift
    o_ref[...] = jnp.maximum(z, LEAKY_SLOPE * z).astype(o_ref.dtype)


# ----------------------------------------------------------------------------
# Pallas wrappers
# ----------------------------------------------------------------------------
def _choose_tm(M, cap=1024):
    """Largest lane tile <= cap dividing M (keeps >= 2 grid steps when M is big)."""
    if M <= cap:
        return M
    for t in (1024, 512, 384, 256, 128, 64, 32, 16, 8):
        if t <= cap and M % t == 0:
            return t
    return M   # fallback: single full-width block (still correct)


def conv_act(w_mat, patchesT, *, act, out_dtype):
    """Conv (as transposed GEMM) + activation, tiled over the M (lane) axis."""
    Cp, K = w_mat.shape
    Kp, M = patchesT.shape
    assert K == Kp
    tm = _choose_tm(M)
    grid = (M // tm,)
    out_bytes = Cp * M * jnp.dtype(out_dtype).itemsize
    cost = pl.CostEstimate(
        flops=2 * Cp * K * M,
        transcendentals=Cp * M if act == "sigmoid" else 0,
        bytes_accessed=int(w_mat.size * 2 + patchesT.size * 2 + out_bytes),
    )
    return pl.pallas_call(
        functools.partial(_convT_act_kernel, act=act),
        out_shape=jax.ShapeDtypeStruct((Cp, M), out_dtype),
        grid_spec=pltpu.PrefetchScalarGridSpec(
            num_scalar_prefetch=0,
            grid=grid,
            in_specs=[
                pl.BlockSpec((Cp, K), lambda i: (0, 0)),   # weights stay resident
                pl.BlockSpec((K, tm), lambda i: (0, i)),   # patches^T lane tile
            ],
            out_specs=pl.BlockSpec((Cp, tm), lambda i: (0, i)),
        ),
        compiler_params=pltpu.CompilerParams(
            dimension_semantics=("parallel",)),
        cost_estimate=cost,
    )(w_mat, patchesT)


def conv_bn_leaky(w_mat, patchesT, gamma, beta, *, out_dtype):
    """Fused conv + BN(batch stats) + LeakyReLU in one pallas_call (grid=(1,))."""
    Cp, K = w_mat.shape
    _, M = patchesT.shape
    cost = pl.CostEstimate(
        flops=2 * Cp * K * M + 8 * Cp * M,
        transcendentals=Cp,
        bytes_accessed=int(w_mat.size * 2 + patchesT.size * 2 + 2 * Cp * 4
                           + Cp * M * jnp.dtype(out_dtype).itemsize),
    )
    return pl.pallas_call(
        functools.partial(_convT_bn_leaky_kernel, inv_m=1.0 / M),
        out_shape=jax.ShapeDtypeStruct((Cp, M), out_dtype),
        grid_spec=pltpu.PrefetchScalarGridSpec(
            num_scalar_prefetch=0,
            grid=(1,),
            in_specs=[
                pl.BlockSpec((Cp, K), lambda i: (0, 0)),
                pl.BlockSpec((K, M), lambda i: (0, 0)),
                pl.BlockSpec((Cp, 1), lambda i: (0, 0)),
                pl.BlockSpec((Cp, 1), lambda i: (0, 0)),
            ],
            out_specs=pl.BlockSpec((Cp, M), lambda i: (0, 0)),
        ),
        compiler_params=pltpu.CompilerParams(
            dimension_semantics=("arbitrary",)),
        cost_estimate=cost,
    )(w_mat, patchesT, gamma, beta)


# ----------------------------------------------------------------------------
# Plain-JAX glue: transposed im2col and network driver
# ----------------------------------------------------------------------------
# TODO(synk): im2col patch materialization still happens in XLA; for production
# NDF/batch sizes fold it into the kernel (sum of k*k shifted matmuls in VMEM).
def im2col_t(h, k, stride, pad):
    """(C, N, H, W) -> patches^T [K, M]; K ordered (Cin, kh, kw), M = (N, Ho, Wo)."""
    C, N, H, W = h.shape
    Ho = (H + 2 * pad - k) // stride + 1
    Wo = (W + 2 * pad - k) // stride + 1
    if pad:
        h = jnp.pad(h, ((0, 0), (0, 0), (pad, pad), (pad, pad)))
    cols = []
    for i in range(k):
        for j in range(k):
            cols.append(h[:, :,
                          i:i + stride * (Ho - 1) + 1:stride,
                          j:j + stride * (Wo - 1) + 1:stride])
    pt = jnp.stack(cols, axis=1)                        # (C, k*k, N, Ho, Wo)
    pt = pt.reshape(C * k * k, N * Ho * Wo)             # matches W.reshape(Cout, Cin*k*k)
    return pt, Ho, Wo


CONV_CFG = [(4, 2, 1), (4, 2, 1), (4, 2, 1), (4, 2, 1), (4, 1, 0)]


def dcgan_discriminator_forward(x, params):
    """Pallas-backed forward. x: [N, 3, 64, 64] float32 -> [N, 1] float32."""
    N = x.shape[0]
    n_layers = len(CONV_CFG)

    # NCHW -> (C, N, H, W); pad input channels up to a multiple of 8; cast bf16.
    h = jnp.transpose(x, (1, 0, 2, 3))
    c0 = h.shape[0]
    h = jnp.pad(h, ((0, _round_up(c0, 8) - c0), (0, 0), (0, 0), (0, 0)))
    h = h.astype(jnp.bfloat16)

    Cp = 8
    for li, (k, s, p) in enumerate(CONV_CFG):
        w = params["conv"][li]                        # [Cout, Cin, k, k] f32
        Cout, Cin = w.shape[0], w.shape[1]
        Cp = _round_up(Cout, 8)
        Cin_cur = h.shape[0]                          # possibly channel-padded
        # Zero-pad weight Cin to the padded activation channels and Cout to Cp.
        w = jnp.pad(w, ((0, Cp - Cout), (0, Cin_cur - Cin), (0, 0), (0, 0)))
        w_mat = w.reshape(Cp, Cin_cur * k * k).astype(jnp.bfloat16)     # (Cp, K)

        patchesT, Ho, Wo = im2col_t(h, k, s, p)       # (K, M) bf16
        last = li == n_layers - 1
        if li == 0:                                   # Conv + LeakyReLU (no BN)
            y = conv_act(w_mat, patchesT, act="leaky", out_dtype=jnp.bfloat16)
        elif last:                                    # Conv + Sigmoid
            y = conv_act(w_mat, patchesT, act="sigmoid", out_dtype=jnp.float32)
        else:                                         # fused Conv + BN(train) + LeakyReLU
            g = jnp.pad(params["bn_gamma"][li - 1].reshape(Cout, 1),
                        ((0, Cp - Cout), (0, 0)))
            b = jnp.pad(params["bn_beta"][li - 1].reshape(Cout, 1),
                        ((0, Cp - Cout), (0, 0)))
            y = conv_bn_leaky(w_mat, patchesT, g, b, out_dtype=jnp.bfloat16)
        h = y.reshape(Cp, N, Ho, Wo)                  # next layer's (C, N, H, W)

    # Final layer is (Cp, N, 1, 1); the real output channel is row 0 -> [N, 1].
    return h.reshape(Cp, N)[:1, :].T.astype(jnp.float32)


# ----------------------------------------------------------------------------
# Pure-JAX reference (lax.conv, f32 HIGHEST) for a sanity check
# ----------------------------------------------------------------------------
def reference_forward(x, params):
    h = x
    n_layers = len(CONV_CFG)
    for li, (k, s, p) in enumerate(CONV_CFG):
        w = params["conv"][li]
        h = jax.lax.conv_general_dilated(
            h, w, (s, s), ((p, p), (p, p)),
            dimension_numbers=("NCHW", "OIHW", "NCHW"),
            precision=jax.lax.Precision.HIGHEST)
        if li == 0:
            h = jnp.where(h >= 0, h, LEAKY_SLOPE * h)
        elif li == n_layers - 1:
            h = jax.nn.sigmoid(h)
        else:
            mean = jnp.mean(h, axis=(0, 2, 3), keepdims=True)
            var = jnp.mean((h - mean) ** 2, axis=(0, 2, 3), keepdims=True)
            gamma = params["bn_gamma"][li - 1].reshape(1, -1, 1, 1)
            beta = params["bn_beta"][li - 1].reshape(1, -1, 1, 1)
            h = gamma * (h - mean) / jnp.sqrt(var + BN_EPS) + beta
            h = jnp.where(h >= 0, h, LEAKY_SLOPE * h)
    return h.reshape(-1, 1)


# ----------------------------------------------------------------------------
# Parameter init + main
# ----------------------------------------------------------------------------
def init_params(key, ndf):
    chans = [(3, ndf), (ndf, 2 * ndf), (2 * ndf, 4 * ndf),
             (4 * ndf, 8 * ndf), (8 * ndf, 1)]
    conv_ws, bn_g, bn_b = [], [], []
    for li, (cin, cout) in enumerate(chans):
        key, kw = jax.random.split(key)
        conv_ws.append(0.02 * jax.random.normal(kw, (cout, cin, 4, 4),
                                                jnp.float32))
        if 0 < li < len(chans) - 1:
            key, kg, kb = jax.random.split(key, 3)
            bn_g.append(1.0 + 0.1 * jax.random.normal(kg, (cout,), jnp.float32))
            bn_b.append(0.1 * jax.random.normal(kb, (cout,), jnp.float32))
    return {"conv": conv_ws, "bn_gamma": bn_g, "bn_beta": bn_b}


if __name__ == "__main__":
    key = jax.random.PRNGKey(0)
    key, kx = jax.random.split(key)
    # DCGAN discriminator requires 64x64 RGB input (3 channels).
    x = jax.random.normal(kx, (2, 3, 64, 64), jnp.float32)
    params = init_params(key, NDF)

    fwd = jax.jit(dcgan_discriminator_forward)
    out = fwd(x, params)
    jax.block_until_ready(out)

    ref = jax.jit(reference_forward)(x, params)
    jax.block_until_ready(ref)

    assert out.shape == (2, 1), out.shape
    max_diff = float(jnp.max(jnp.abs(out - ref)))
    assert max_diff < 2e-2, f"mismatch vs reference: {max_diff}"
    print("KERNEL_OK")
</pallas_src>

<mosaic_0001>
module attributes {stable_mosaic.version = 11 : i64} {
  func.func @_convT_act_kernel(%arg0: i32, %arg1: memref<8x128xbf16, #tpu.memory_space<vmem>>, %arg2: memref<128x1024xbf16, #tpu.memory_space<vmem>>, %arg3: memref<8x1024xbf16, #tpu.memory_space<vmem>>) attributes {dimension_semantics = [#tpu.dimension_semantics<parallel>], iteration_bounds = array<i64: 2>, scalar_prefetch = 0 : i64, scratch_operands = 0 : i64, tpu.core_type = #tpu.core_type<tc>, window_params = [{pipeline_mode = #tpu.pipeline_mode<synchronous>, transform_indices = @transform_0, window_bounds = array<i64: 8, 128>}, {transform_indices = @transform_1, window_bounds = array<i64: 128, 1024>}, {transform_indices = @transform_2, window_bounds = array<i64: 8, 1024>}]} {
    %c0 = arith.constant 0 : index
    %c0_0 = arith.constant 0 : index
    %0 = vector.load %arg1[%c0, %c0_0] : memref<8x128xbf16, #tpu.memory_space<vmem>>, vector<8x128xbf16>
    %c0_1 = arith.constant 0 : index
    %c0_2 = arith.constant 0 : index
    %1 = vector.load %arg2[%c0_1, %c0_2] : memref<128x1024xbf16, #tpu.memory_space<vmem>>, vector<128x1024xbf16>
    %cst = arith.constant dense<0.000000e+00> : vector<8x1024xf32>
    %2 = tpu.matmul %0, %1, %cst {dimension_numbers = #tpu.dot_dimension_numbers<[1], [0], [0], [1], [0, 0, 1, 1], [], []>} : vector<8x128xbf16>, vector<128x1024xbf16>, vector<8x1024xf32> -> vector<8x1024xf32>
    %cst_3 = arith.constant 2.000000e-01 : f32
    %3 = vector.broadcast %cst_3 : f32 to vector<8x1024xf32>
    %4 = arith.mulf %3, %2 : vector<8x1024xf32>
    %5 = arith.maximumf %2, %4 : vector<8x1024xf32>
    %6 = arith.truncf %5 : vector<8x1024xf32> to vector<8x1024xbf16>
    %c0_4 = arith.constant 0 : index
    %c0_5 = arith.constant 0 : index
    %7 = vector.load %arg3[%c0_4, %c0_5] : memref<8x1024xbf16, #tpu.memory_space<vmem>>, vector<8x1024xbf16>
    tpu.vector_store %arg3[%c0_4, %c0_5], %6 {strides = array<i32>} : memref<8x1024xbf16, #tpu.memory_space<vmem>>, vector<8x1024xbf16>,
    return
  }
  func.func @transform_0(%arg0: i32) -> (i32, i32) {
    %c0_i32 = arith.constant 0 : i32
    %c0_i32_0 = arith.constant 0 : i32
    %c0_i32_1 = arith.constant 0 : i32
    return %c0_i32, %c0_i32_0 : i32, i32
  }
  func.func @transform_1(%arg0: i32) -> (i32, i32) {
    %c0_i32 = arith.constant 0 : i32
    %c0_i32_0 = arith.constant 0 : i32
    return %c0_i32, %arg0 : i32, i32
  }
  func.func @transform_2(%arg0: i32) -> (i32, i32) {
    %c0_i32 = arith.constant 0 : i32
    %c0_i32_0 = arith.constant 0 : i32
    return %c0_i32, %arg0 : i32, i32
  }
}

module attributes {stable_mosaic.version = 11 : i64} {
  func.func @_convT_bn_leaky_kernel(%arg0: i32, %arg1: memref<16x128xbf16, #tpu.memory_space<vmem>>, %arg2: memref<128x512xbf16, #tpu.memory_space<vmem>>, %arg3: memref<16x1xf32, #tpu.memory_space<vmem>>, %arg4: memref<16x1xf32, #tpu.memory_space<vmem>>, %arg5: memref<16x512xbf16, #tpu.memory_space<vmem>>) attributes {dimension_semantics = [#tpu.dimension_semantics<arbitrary>], iteration_bounds = array<i64: 1>, scalar_prefetch = 0 : i64, scratch_operands = 0 : i64, tpu.core_type = #tpu.core_type<tc>, window_params = [{pipeline_mode = #tpu.pipeline_mode<synchronous>, transform_indices = @transform_0, window_bounds = array<i64: 16, 128>}, {pipeline_mode = #tpu.pipeline_mode<synchronous>, transform_indices = @transform_1, window_bounds = array<i64: 128, 512>}, {pipeline_mode = #tpu.pipeline_mode<synchronous>, transform_indices = @transform_2, window_bounds = array<i64: 16, 1>}, {pipeline_mode = #tpu.pipeline_mode<synchronous>, transform_indices = @transform_3, window_bounds = array<i64: 16, 1>}, {pipeline_mode = #tpu.pipeline_mode<synchronous>, transform_indices = @transform_4, window_bounds = array<i64: 16, 512>}]} {
    %c0 = arith.constant 0 : index
    %c0_0 = arith.constant 0 : index
    %0 = vector.load %arg1[%c0, %c0_0] : memref<16x128xbf16, #tpu.memory_space<vmem>>, vector<16x128xbf16>
    %c0_1 = arith.constant 0 : index
    %c0_2 = arith.constant 0 : index
    %1 = vector.load %arg2[%c0_1, %c0_2] : memref<128x512xbf16, #tpu.memory_space<vmem>>, vector<128x512xbf16>
    %cst = arith.constant dense<0.000000e+00> : vector<16x512xf32>
    %2 = tpu.matmul %0, %1, %cst {dimension_numbers = #tpu.dot_dimension_numbers<[1], [0], [0], [1], [0, 0, 1, 1], [], []>} : vector<16x128xbf16>, vector<128x512xbf16>, vector<16x512xf32> -> vector<16x512xf32>
    %cst_3 = arith.constant dense<0.000000e+00> : vector<16xf32>
    %3 = vector.multi_reduction <add>, %2, %cst_3 [1] : vector<16x512xf32> to vector<16xf32>
    %4 = vector.shape_cast %3 : vector<16xf32> to vector<16x1xf32>
    %cst_4 = arith.constant 0.001953125 : f32
    %5 = vector.broadcast %cst_4 : f32 to vector<16x1xf32>
    %6 = arith.mulf %4, %5 : vector<16x1xf32>
    %7 = arith.mulf %2, %2 : vector<16x512xf32>
    %cst_5 = arith.constant dense<0.000000e+00> : vector<16xf32>
    %8 = vector.multi_reduction <add>, %7, %cst_5 [1] : vector<16x512xf32> to vector<16xf32>
    %9 = vector.shape_cast %8 : vector<16xf32> to vector<16x1xf32>
    %cst_6 = arith.constant 0.001953125 : f32
    %10 = vector.broadcast %cst_6 : f32 to vector<16x1xf32>
    %11 = arith.mulf %9, %10 : vector<16x1xf32>
    %12 = arith.mulf %6, %6 : vector<16x1xf32>
    %13 = arith.subf %11, %12 : vector<16x1xf32>
    %c0_7 = arith.constant 0 : index
    %c0_8 = arith.constant 0 : index
    %14 = vector.load %arg3[%c0_7, %c0_8] : memref<16x1xf32, #tpu.memory_space<vmem>>, vector<16x1xf32>
    %cst_9 = arith.constant 9.99999974E-6 : f32
    %15 = vector.broadcast %cst_9 : f32 to vector<16x1xf32>
    %16 = arith.addf %13, %15 : vector<16x1xf32>
    %17 = math.rsqrt %16 : vector<16x1xf32>
    %18 = arith.mulf %14, %17 : vector<16x1xf32>
    %c0_10 = arith.constant 0 : index
    %c0_11 = arith.constant 0 : index
    %19 = vector.load %arg4[%c0_10, %c0_11] : memref<16x1xf32, #tpu.memory_space<vmem>>, vector<16x1xf32>
    %20 = arith.mulf %6, %18 : vector<16x1xf32>
    %21 = arith.subf %19, %20 : vector<16x1xf32>
    %22 = vector.broadcast %18 : vector<16x1xf32> to vector<16x512xf32>
    %23 = arith.mulf %2, %22 : vector<16x512xf32>
    %24 = vector.broadcast %21 : vector<16x1xf32> to vector<16x512xf32>
    %25 = arith.addf %23, %24 : vector<16x512xf32>
    %cst_12 = arith.constant 2.000000e-01 : f32
    %26 = vector.broadcast %cst_12 : f32 to vector<16x512xf32>
    %27 = arith.mulf %26, %25 : vector<16x512xf32>
    %28 = arith.maximumf %25, %27 : vector<16x512xf32>
    %29 = arith.truncf %28 : vector<16x512xf32> to vector<16x512xbf16>
    %c0_13 = arith.constant 0 : index
    %c0_14 = arith.constant 0 : index
    %30 = vector.load %arg5[%c0_13, %c0_14] : memref<16x512xbf16, #tpu.memory_space<vmem>>, vector<16x512xbf16>
    tpu.vector_store %arg5[%c0_13, %c0_14], %29 {strides = array<i32>} : memref<16x512xbf16, #tpu.memory_space<vmem>>, vector<16x512xbf16>,
    return
  }
  func.func @transform_0(%arg0: i32) -> (i32, i32) {
    %c0_i32 = arith.constant 0 : i32
    %c0_i32_0 = arith.constant 0 : i32
    %c0_i32_1 = arith.constant 0 : i32
    return %c0_i32, %c0_i32_0 : i32, i32
  }
  func.func @transform_1(%arg0: i32) -> (i32, i32) {
    %c0_i32 = arith.constant 0 : i32
    %c0_i32_0 = arith.constant 0 : i32
    %c0_i32_1 = arith.constant 0 : i32
    return %c0_i32, %c0_i32_0 : i32, i32
  }
  func.func @transform_2(%arg0: i32) -> (i32, i32) {
    %c0_i32 = arith.constant 0 : i32
    %c0_i32_0 = arith.constant 0 : i32
    %c0_i32_1 = arith.constant 0 : i32
    return %c0_i32, %c0_i32_0 : i32, i32
  }
  func.func @transform_3(%arg0: i32) -> (i32, i32) {
    %c0_i32 = arith.constant 0 : i32
    %c0_i32_0 = arith.constant 0 : i32
    %c0_i32_1 = arith.constant 0 : i32
    return %c0_i32, %c0_i32_0 : i32, i32
  }
  func.func @transform_4(%arg0: i32) -> (i32, i32) {
    %c0_i32 = arith.constant 0 : i32
    %c0_i32_0 = arith.constant 0 : i32
    %c0_i32_1 = arith.constant 0 : i32
    return %c0_i32, %c0_i32_0 : i32, i32
  }
}

module attributes {stable_mosaic.version = 11 : i64} {
  func.func @_convT_bn_leaky_kernel(%arg0: i32, %arg1: memref<32x256xbf16, #tpu.memory_space<vmem>>, %arg2: memref<256x128xbf16, #tpu.memory_space<vmem>>, %arg3: memref<32x1xf32, #tpu.memory_space<vmem>>, %arg4: memref<32x1xf32, #tpu.memory_space<vmem>>, %arg5: memref<32x128xbf16, #tpu.memory_space<vmem>>) attributes {dimension_semantics = [#tpu.dimension_semantics<arbitrary>], iteration_bounds = array<i64: 1>, scalar_prefetch = 0 : i64, scratch_operands = 0 : i64, tpu.core_type = #tpu.core_type<tc>, window_params = [{pipeline_mode = #tpu.pipeline_mode<synchronous>, transform_indices = @transform_0, window_bounds = array<i64: 32, 256>}, {pipeline_mode = #tpu.pipeline_mode<synchronous>, transform_indices = @transform_1, window_bounds = array<i64: 256, 128>}, {pipeline_mode = #tpu.pipeline_mode<synchronous>, transform_indices = @transform_2, window_bounds = array<i64: 32, 1>}, {pipeline_mode = #tpu.pipeline_mode<synchronous>, transform_indices = @transform_3, window_bounds = array<i64: 32, 1>}, {pipeline_mode = #tpu.pipeline_mode<synchronous>, transform_indices = @transform_4, window_bounds = array<i64: 32, 128>}]} {
    %c0 = arith.constant 0 : index
    %c0_0 = arith.constant 0 : index
    %0 = vector.load %arg1[%c0, %c0_0] : memref<32x256xbf16, #tpu.memory_space<vmem>>, vector<32x256xbf16>
    %c0_1 = arith.constant 0 : index
    %c0_2 = arith.constant 0 : index
    %1 = vector.load %arg2[%c0_1, %c0_2] : memref<256x128xbf16, #tpu.memory_space<vmem>>, vector<256x128xbf16>
    %cst = arith.constant dense<0.000000e+00> : vector<32x128xf32>
    %2 = tpu.matmul %0, %1, %cst {dimension_numbers = #tpu.dot_dimension_numbers<[1], [0], [0], [1], [0, 0, 1, 1], [], []>} : vector<32x256xbf16>, vector<256x128xbf16>, vector<32x128xf32> -> vector<32x128xf32>
    %cst_3 = arith.constant dense<0.000000e+00> : vector<32xf32>
    %3 = vector.multi_reduction <add>, %2, %cst_3 [1] : vector<32x128xf32> to vector<32xf32>
    %4 = vector.shape_cast %3 : vector<32xf32> to vector<32x1xf32>
    %cst_4 = arith.constant 7.812500e-03 : f32
    %5 = vector.broadcast %cst_4 : f32 to vector<32x1xf32>
    %6 = arith.mulf %4, %5 : vector<32x1xf32>
    %7 = arith.mulf %2, %2 : vector<32x128xf32>
    %cst_5 = arith.constant dense<0.000000e+00> : vector<32xf32>
    %8 = vector.multi_reduction <add>, %7, %cst_5 [1] : vector<32x128xf32> to vector<32xf32>
    %9 = vector.shape_cast %8 : vector<32xf32> to vector<32x1xf32>
    %cst_6 = arith.constant 7.812500e-03 : f32
    %10 = vector.broadcast %cst_6 : f32 to vector<32x1xf32>
    %11 = arith.mulf %9, %10 : vector<32x1xf32>
    %12 = arith.mulf %6, %6 : vector<32x1xf32>
    %13 = arith.subf %11, %12 : vector<32x1xf32>
    %c0_7 = arith.constant 0 : index
    %c0_8 = arith.constant 0 : index
    %14 = vector.load %arg3[%c0_7, %c0_8] : memref<32x1xf32, #tpu.memory_space<vmem>>, vector<32x1xf32>
    %cst_9 = arith.constant 9.99999974E-6 : f32
    %15 = vector.broadcast %cst_9 : f32 to vector<32x1xf32>
    %16 = arith.addf %13, %15 : vector<32x1xf32>
    %17 = math.rsqrt %16 : vector<32x1xf32>
    %18 = arith.mulf %14, %17 : vector<32x1xf32>
    %c0_10 = arith.constant 0 : index
    %c0_11 = arith.constant 0 : index
    %19 = vector.load %arg4[%c0_10, %c0_11] : memref<32x1xf32, #tpu.memory_space<vmem>>, vector<32x1xf32>
    %20 = arith.mulf %6, %18 : vector<32x1xf32>
    %21 = arith.subf %19, %20 : vector<32x1xf32>
    %22 = vector.broadcast %18 : vector<32x1xf32> to vector<32x128xf32>
    %23 = arith.mulf %2, %22 : vector<32x128xf32>
    %24 = vector.broadcast %21 : vector<32x1xf32> to vector<32x128xf32>
    %25 = arith.addf %23, %24 : vector<32x128xf32>
    %cst_12 = arith.constant 2.000000e-01 : f32
    %26 = vector.broadcast %cst_12 : f32 to vector<32x128xf32>
    %27 = arith.mulf %26, %25 : vector<32x128xf32>
    %28 = arith.maximumf %25, %27 : vector<32x128xf32>
    %29 = arith.truncf %28 : vector<32x128xf32> to vector<32x128xbf16>
    %c0_13 = arith.constant 0 : index
    %c0_14 = arith.constant 0 : index
    %30 = vector.load %arg5[%c0_13, %c0_14] : memref<32x128xbf16, #tpu.memory_space<vmem>>, vector<32x128xbf16>
    tpu.vector_store %arg5[%c0_13, %c0_14], %29 {strides = array<i32>} : memref<32x128xbf16, #tpu.memory_space<vmem>>, vector<32x128xbf16>,
    return
  }
  func.func @transform_0(%arg0: i32) -> (i32, i32) {
    %c0_i32 = arith.constant 0 : i32
    %c0_i32_0 = arith.constant 0 : i32
    %c0_i32_1 = arith.constant 0 : i32
    return %c0_i32, %c0_i32_0 : i32, i32
  }
  func.func @transform_1(%arg0: i32) -> (i32, i32) {
    %c0_i32 = arith.constant 0 : i32
    %c0_i32_0 = arith.constant 0 : i32
    %c0_i32_1 = arith.constant 0 : i32
    return %c0_i32, %c0_i32_0 : i32, i32
  }
  func.func @transform_2(%arg0: i32) -> (i32, i32) {
    %c0_i32 = arith.constant 0 : i32
    %c0_i32_0 = arith.constant 0 : i32
    %c0_i32_1 = arith.constant 0 : i32
    return %c0_i32, %c0_i32_0 : i32, i32
  }
  func.func @transform_3(%arg0: i32) -> (i32, i32) {
    %c0_i32 = arith.constant 0 : i32
    %c0_i32_0 = arith.constant 0 : i32
    %c0_i32_1 = arith.constant 0 : i32
    return %c0_i32, %c0_i32_0 : i32, i32
  }
  func.func @transform_4(%arg0: i32) -> (i32, i32) {
    %c0_i32 = arith.constant 0 : i32
    %c0_i32_0 = arith.constant 0 : i32
    %c0_i32_1 = arith.constant 0 : i32
    return %c0_i32, %c0_i32_0 : i32, i32
  }
}

module attributes {stable_mosaic.version = 11 : i64} {
  func.func @_convT_bn_leaky_kernel(%arg0: i32, %arg1: memref<64x512xbf16, #tpu.memory_space<vmem>>, %arg2: memref<512x32xbf16, #tpu.memory_space<vmem>>, %arg3: memref<64x1xf32, #tpu.memory_space<vmem>>, %arg4: memref<64x1xf32, #tpu.memory_space<vmem>>, %arg5: memref<64x32xbf16, #tpu.memory_space<vmem>>) attributes {dimension_semantics = [#tpu.dimension_semantics<arbitrary>], iteration_bounds = array<i64: 1>, scalar_prefetch = 0 : i64, scratch_operands = 0 : i64, tpu.core_type = #tpu.core_type<tc>, window_params = [{pipeline_mode = #tpu.pipeline_mode<synchronous>, transform_indices = @transform_0, window_bounds = array<i64: 64, 512>}, {pipeline_mode = #tpu.pipeline_mode<synchronous>, transform_indices = @transform_1, window_bounds = array<i64: 512, 32>}, {pipeline_mode = #tpu.pipeline_mode<synchronous>, transform_indices = @transform_2, window_bounds = array<i64: 64, 1>}, {pipeline_mode = #tpu.pipeline_mode<synchronous>, transform_indices = @transform_3, window_bounds = array<i64: 64, 1>}, {pipeline_mode = #tpu.pipeline_mode<synchronous>, transform_indices = @transform_4, window_bounds = array<i64: 64, 32>}]} {
    %c0 = arith.constant 0 : index
    %c0_0 = arith.constant 0 : index
    %0 = vector.load %arg1[%c0, %c0_0] : memref<64x512xbf16, #tpu.memory_space<vmem>>, vector<64x512xbf16>
    %c0_1 = arith.constant 0 : index
    %c0_2 = arith.constant 0 : index
    %1 = vector.load %arg2[%c0_1, %c0_2] : memref<512x32xbf16, #tpu.memory_space<vmem>>, vector<512x32xbf16>
    %cst = arith.constant dense<0.000000e+00> : vector<64x32xf32>
    %2 = tpu.matmul %0, %1, %cst {dimension_numbers = #tpu.dot_dimension_numbers<[1], [0], [0], [1], [0, 0, 1, 1], [], []>} : vector<64x512xbf16>, vector<512x32xbf16>, vector<64x32xf32> -> vector<64x32xf32>
    %cst_3 = arith.constant dense<0.000000e+00> : vector<64xf32>
    %3 = vector.multi_reduction <add>, %2, %cst_3 [1] : vector<64x32xf32> to vector<64xf32>
    %4 = vector.shape_cast %3 : vector<64xf32> to vector<64x1xf32>
    %cst_4 = arith.constant 3.125000e-02 : f32
    %5 = vector.broadcast %cst_4 : f32 to vector<64x1xf32>
    %6 = arith.mulf %4, %5 : vector<64x1xf32>
    %7 = arith.mulf %2, %2 : vector<64x32xf32>
    %cst_5 = arith.constant dense<0.000000e+00> : vector<64xf32>
    %8 = vector.multi_reduction <add>, %7, %cst_5 [1] : vector<64x32xf32> to vector<64xf32>
    %9 = vector.shape_cast %8 : vector<64xf32> to vector<64x1xf32>
    %cst_6 = arith.constant 3.125000e-02 : f32
    %10 = vector.broadcast %cst_6 : f32 to vector<64x1xf32>
    %11 = arith.mulf %9, %10 : vector<64x1xf32>
    %12 = arith.mulf %6, %6 : vector<64x1xf32>
    %13 = arith.subf %11, %12 : vector<64x1xf32>
    %c0_7 = arith.constant 0 : index
    %c0_8 = arith.constant 0 : index
    %14 = vector.load %arg3[%c0_7, %c0_8] : memref<64x1xf32, #tpu.memory_space<vmem>>, vector<64x1xf32>
    %cst_9 = arith.constant 9.99999974E-6 : f32
    %15 = vector.broadcast %cst_9 : f32 to vector<64x1xf32>
    %16 = arith.addf %13, %15 : vector<64x1xf32>
    %17 = math.rsqrt %16 : vector<64x1xf32>
    %18 = arith.mulf %14, %17 : vector<64x1xf32>
    %c0_10 = arith.constant 0 : index
    %c0_11 = arith.constant 0 : index
    %19 = vector.load %arg4[%c0_10, %c0_11] : memref<64x1xf32, #tpu.memory_space<vmem>>, vector<64x1xf32>
    %20 = arith.mulf %6, %18 : vector<64x1xf32>
    %21 = arith.subf %19, %20 : vector<64x1xf32>
    %22 = vector.broadcast %18 : vector<64x1xf32> to vector<64x32xf32>
    %23 = arith.mulf %2, %22 : vector<64x32xf32>
    %24 = vector.broadcast %21 : vector<64x1xf32> to vector<64x32xf32>
    %25 = arith.addf %23, %24 : vector<64x32xf32>
    %cst_12 = arith.constant 2.000000e-01 : f32
    %26 = vector.broadcast %cst_12 : f32 to vector<64x32xf32>
    %27 = arith.mulf %26, %25 : vector<64x32xf32>
    %28 = arith.maximumf %25, %27 : vector<64x32xf32>
    %29 = arith.truncf %28 : vector<64x32xf32> to vector<64x32xbf16>
    %c0_13 = arith.constant 0 : index
    %c0_14 = arith.constant 0 : index
    %30 = vector.load %arg5[%c0_13, %c0_14] : memref<64x32xbf16, #tpu.memory_space<vmem>>, vector<64x32xbf16>
    tpu.vector_store %arg5[%c0_13, %c0_14], %29 {strides = array<i32>} : memref<64x32xbf16, #tpu.memory_space<vmem>>, vector<64x32xbf16>,
    return
  }
  func.func @transform_0(%arg0: i32) -> (i32, i32) {
    %c0_i32 = arith.constant 0 : i32
    %c0_i32_0 = arith.constant 0 : i32
    %c0_i32_1 = arith.constant 0 : i32
    return %c0_i32, %c0_i32_0 : i32, i32
  }
  func.func @transform_1(%arg0: i32) -> (i32, i32) {
    %c0_i32 = arith.constant 0 : i32
    %c0_i32_0 = arith.constant 0 : i32
    %c0_i32_1 = arith.constant 0 : i32
    return %c0_i32, %c0_i32_0 : i32, i32
  }
  func.func @transform_2(%arg0: i32) -> (i32, i32) {
    %c0_i32 = arith.constant 0 : i32
    %c0_i32_0 = arith.constant 0 : i32
    %c0_i32_1 = arith.constant 0 : i32
    return %c0_i32, %c0_i32_0 : i32, i32
  }
  func.func @transform_3(%arg0: i32) -> (i32, i32) {
    %c0_i32 = arith.constant 0 : i32
    %c0_i32_0 = arith.constant 0 : i32
    %c0_i32_1 = arith.constant 0 : i32
    return %c0_i32, %c0_i32_0 : i32, i32
  }
  func.func @transform_4(%arg0: i32) -> (i32, i32) {
    %c0_i32 = arith.constant 0 : i32
    %c0_i32_0 = arith.constant 0 : i32
    %c0_i32_1 = arith.constant 0 : i32
    return %c0_i32, %c0_i32_0 : i32, i32
  }
}

module attributes {stable_mosaic.version = 11 : i64} {
  func.func @_convT_act_kernel(%arg0: i32, %arg1: memref<8x1024xbf16, #tpu.memory_space<vmem>>, %arg2: memref<1024x2xbf16, #tpu.memory_space<vmem>>, %arg3: memref<8x2xf32, #tpu.memory_space<vmem>>) attributes {dimension_semantics = [#tpu.dimension_semantics<parallel>], iteration_bounds = array<i64: 1>, scalar_prefetch = 0 : i64, scratch_operands = 0 : i64, tpu.core_type = #tpu.core_type<tc>, window_params = [{pipeline_mode = #tpu.pipeline_mode<synchronous>, transform_indices = @transform_0, window_bounds = array<i64: 8, 1024>}, {transform_indices = @transform_1, window_bounds = array<i64: 1024, 2>}, {transform_indices = @transform_2, window_bounds = array<i64: 8, 2>}]} {
    %c0 = arith.constant 0 : index
    %c0_0 = arith.constant 0 : index
    %0 = vector.load %arg1[%c0, %c0_0] : memref<8x1024xbf16, #tpu.memory_space<vmem>>, vector<8x1024xbf16>
    %c0_1 = arith.constant 0 : index
    %c0_2 = arith.constant 0 : index
    %1 = vector.load %arg2[%c0_1, %c0_2] : memref<1024x2xbf16, #tpu.memory_space<vmem>>, vector<1024x2xbf16>
    %cst = arith.constant dense<0.000000e+00> : vector<8x2xf32>
    %2 = tpu.matmul %0, %1, %cst {dimension_numbers = #tpu.dot_dimension_numbers<[1], [0], [0], [1], [0, 0, 1, 1], [], []>} : vector<8x1024xbf16>, vector<1024x2xbf16>, vector<8x2xf32> -> vector<8x2xf32>
    %cst_3 = arith.constant 0.000000e+00 : f32
    %3 = vector.broadcast %cst_3 : f32 to vector<8x2xf32>
    %4 = arith.subf %3, %2 : vector<8x2xf32>
    %5 = math.exp %4 : vector<8x2xf32>
    %cst_4 = arith.constant 1.000000e+00 : f32
    %6 = vector.broadcast %cst_4 : f32 to vector<8x2xf32>
    %7 = arith.addf %6, %5 : vector<8x2xf32>
    %cst_5 = arith.constant 1.000000e+00 : f32
    %8 = vector.broadcast %cst_5 : f32 to vector<8x2xf32>
    %9 = arith.divf %8, %7 : vector<8x2xf32>
    %c0_6 = arith.constant 0 : index
    %c0_7 = arith.constant 0 : index
    %10 = vector.load %arg3[%c0_6, %c0_7] : memref<8x2xf32, #tpu.memory_space<vmem>>, vector<8x2xf32>
    tpu.vector_store %arg3[%c0_6, %c0_7], %9 {strides = array<i32>} : memref<8x2xf32, #tpu.memory_space<vmem>>, vector<8x2xf32>,
    return
  }
  func.func @transform_0(%arg0: i32) -> (i32, i32) {
    %c0_i32 = arith.constant 0 : i32
    %c0_i32_0 = arith.constant 0 : i32
    %c0_i32_1 = arith.constant 0 : i32
    return %c0_i32, %c0_i32_0 : i32, i32
  }
  func.func @transform_1(%arg0: i32) -> (i32, i32) {
    %c0_i32 = arith.constant 0 : i32
    %c0_i32_0 = arith.constant 0 : i32
    return %c0_i32, %arg0 : i32, i32
  }
  func.func @transform_2(%arg0: i32) -> (i32, i32) {
    %c0_i32 = arith.constant 0 : i32
    %c0_i32_0 = arith.constant 0 : i32
    return %c0_i32, %arg0 : i32, i32
  }
}

</mosaic_0001>

<llo_original>
// kernel: dcgan_discriminator_forward.5
$region0: #{dcgan_discriminator_forward.5}
  #allocation0 [shape = 'u32[]', space=smem, size = 0x4, offset = 0x4, fixed_abs, tag = 'smem constant byte address 0x4 - core index']
  #allocation1 [shape = 'u32[144,128]{1,0:T(1,128)}', space=vmem, size = 0x12000, scoped, tag = 'internal scratch']
  %s0 = inlined_call_operand.vmem [shape: bf16[8,128], index: 0, kind: input, shape index: {}]
  %s1 = inlined_call_operand.vmem [shape: bf16[128,2048], index: 1, kind: input, shape index: {}]
  %s2 = inlined_call_operand.vmem [shape: bf16[8,2048], index: 2, kind: output, shape index: {}]
  %s3 = sld [smem:[#allocation0]]
  $region64: #{dcgan_discriminator_forward.5} parent=0
    _
  %s5 = ssub.s32 1, %s3
  %s6 = scalar_select 0, %s5, %s3
  $region1: #{dcgan_discriminator_forward.5} parent=0
    #allocation2 [shape = 'u8[524288]{0}', space=vmem, size = 0x80000, scoped, tag = 'input window, operand 1']
    loop: start=0, step=1, limit=4
    $region2: #{dcgan_discriminator_forward.5} parent=1 // loop_pre_header
      _
    $region3: #{dcgan_discriminator_forward.5} parent=1 // loop_header
      %s8 = sphi 0, %s12
      %p9 = scmp.ge.s32.totalorder %s8, 4
      %s16 = sphi 0, %s16
      %s18 = sphi 0, %s16
      %s19 = sphi 0, %s18
      %s33 = sphi 0, %s19
      %s39 = sphi 0, %s41
      %s42 = sphi 0, %s39
      %s43 = sphi 0, %s42
      %s59 = sphi 0, %s43
      %s65 = sphi 0, %s67
      %s68 = sphi 0, %s65
      %s69 = sphi 0, %s68
      %s85 = sphi 0, %s69
    $region4: #{dcgan_discriminator_forward.5} parent=1 // loop_header_branch
      %11 = sbr.rel (%p9) target = $region8
    $region5: #{dcgan_discriminator_forward.5} parent=1 // loop_body
      %s13 = ssub.s32 %s8, 1
      %s14 = ssub.s32 %s8, 2
      %s15 = sadd.s32 %s8, 1
      %s17 = sadd.s32 %s16, 1
      %p20 = scmp.eq.s32.totalorder %s8, 1
      %p21 = scmp.ne.s32.totalorder %s16, %s18
      %p22 = scmp.eq.s32.totalorder %s8, 0
      %p23 = por %p21, %p22
      %p24 = scmp.ne.s32.totalorder %s16, %s18
      %p25 = scmp.eq.s32.totalorder %s13, 1
      %p26 = por %p24, %p25
      %p27 = scmp.ne.s32.totalorder %s18, %s19
      %p28 = scmp.eq.s32.totalorder %s13, 0
      %p29 = por %p27, %p28
      %p30 = scmp.ne.s32.totalorder %s18, %s19
      %p31 = scmp.eq.s32.totalorder %s14, 1
      %p32 = por %p30, %p31
      %p34 = scmp.ne.s32.totalorder %s19, %s33
      %p35 = scmp.eq.s32.totalorder %s14, 0
      %p36 = por %p34, %p35
      %s37 = ssub.s32 %s8, %s15
      %p38 = scmp.eq.s32.totalorder %s37, 0
      %s40 = sadd.s32 %s39, 1
      %s41 = scalar_select %p38, %s39, %s40
      %p44 = pneg %p38
      %p45 = scmp.eq.s32.totalorder %s8, 1
      %p46 = por %p44, %p45
      %p47 = scmp.ne.s32.totalorder %s39, %s42
      %p48 = scmp.eq.s32.totalorder %s8, 0
      %p49 = por %p47, %p48
      %p50 = scmp.ne.s32.totalorder %s39, %s42
      %p51 = scmp.eq.s32.totalorder %s13, 1
      %p52 = por %p50, %p51
      %p53 = scmp.ne.s32.totalorder %s42, %s43
      %p54 = scmp.eq.s32.totalorder %s13, 0
      %p55 = por %p53, %p54
      %p56 = scmp.ne.s32.totalorder %s42, %s43
      %p57 = scmp.eq.s32.totalorder %s14, 1
      %p58 = por %p56, %p57
      %p60 = scmp.ne.s32.totalorder %s43, %s59
      %p61 = scmp.eq.s32.totalorder %s14, 0
      %p62 = por %p60, %p61
      %s63 = ssub.s32 %s8, %s15
      %p64 = scmp.eq.s32.totalorder %s63, 0
      %s66 = sadd.s32 %s65, 1
      %s67 = scalar_select %p64, %s65, %s66
      %p70 = pneg %p64
      %p71 = scmp.eq.s32.totalorder %s8, 1
      %p72 = por %p70, %p71
      %p73 = scmp.ne.s32.totalorder %s65, %s68
      %p74 = scmp.eq.s32.totalorder %s8, 0
      %p75 = por %p73, %p74
      %p76 = scmp.ne.s32.totalorder %s65, %s68
      %p77 = scmp.eq.s32.totalorder %s13, 1
      %p78 = por %p76, %p77
      %p79 = scmp.ne.s32.totalorder %s68, %s69
      %p80 = scmp.eq.s32.totalorder %s13, 0
      %p81 = por %p79, %p80
      %p82 = scmp.ne.s32.totalorder %s68, %s69
      %p83 = scmp.eq.s32.totalorder %s14, 1
      %p84 = por %p82, %p83
      %p86 = scmp.ne.s32.totalorder %s69, %s85
      %p87 = scmp.eq.s32.totalorder %s14, 0
      %p88 = por %p86, %p87
      %p89 = scmp.le.s32.totalorder 1, %s8
      %p90 = scmp.lt.s32.totalorder %s8, 3
      %p91 = pnand %p89, %p90
      %p92 = pneg %p91
      // Predicated region
      $region9: #{dcgan_discriminator_forward.5} parent=5 // pred_check
        _
      $region10: #{dcgan_discriminator_forward.5} parent=5 // pred_check_branch
        %94 = sbr.rel (%p91) target = $region12
      $region11: #{dcgan_discriminator_forward.5} parent=5 // pred_region
        %s95 = ssub.s32 %s8, 1
        // Predicated region
        $region13: #{dcgan_discriminator_forward.5} parent=11 // pred_check
          %p96 = pneg %p29
        $region14: #{dcgan_discriminator_forward.5} parent=11 // pred_check_branch
          %98 = sbr.rel (%p96) target = $region16
        $region15: #{dcgan_discriminator_forward.5} parent=11 // pred_region
          _
        $region16: #{dcgan_discriminator_forward.5} parent=11 // pred_fallthru
          _
      $region12: #{dcgan_discriminator_forward.5} parent=5 // pred_fallthru
        _
      %p99 = scmp.lt.s32.totalorder %s8, 2
      // Predicated region
      $region17: #{dcgan_discriminator_forward.5} parent=5 // pred_check
        %p100 = pneg %p99
      $region18: #{dcgan_discriminator_forward.5} parent=5 // pred_check_branch
        %102 = sbr.rel (%p100) target = $region20
      $region19: #{dcgan_discriminator_forward.5} parent=5 // pred_region
        // Predicated region
        $region21: #{dcgan_discriminator_forward.5} parent=19 // pred_check
          %p103 = pneg %p49
        $region22: #{dcgan_discriminator_forward.5} parent=19 // pred_check_branch
          %105 = sbr.rel (%p103) target = $region24
        $region23: #{dcgan_discriminator_forward.5} parent=19 // pred_region
          %s106 = sand.u32 %s39, 1
          %s107 = sand.u32 %s39, 1
          %s108 = smul.addr %s107, 512
          %s109 = scalar_lea.vmem [#allocation2], %s108
          %s110 = smul.u32 8, %s8
          %s111 = smul.addr %s110, 4
          %s112 = scalar_lea.vmem %s1, %s111
          // Predicated region
          $region25: #{dcgan_discriminator_forward.5} parent=23 // pred_check
            _
          $region26: #{dcgan_discriminator_forward.5} parent=23 // pred_check_branch
            %114 = sbr.rel (0) target = $region28
          $region27: #{dcgan_discriminator_forward.5} parent=23 // pred_region
            // Predicated region
            $region29: #{dcgan_discriminator_forward.5} parent=27 // pred_check
              _
            $region30: #{dcgan_discriminator_forward.5} parent=27 // pred_check_branch
              %116 = sbr.rel (0) target = $region32
            $region31: #{dcgan_discriminator_forward.5} parent=27 // pred_region
              loop: start=0, step=1, limit=1
              $region33: #{dcgan_discriminator_forward.5} parent=31 // loop_pre_header
                _
              $region34: #{dcgan_discriminator_forward.5} parent=31 // loop_header
                %s118 = sphi 0, %s122
                %p119 = scmp.ge.s32.totalorder %s118, 1
                %s123 = sphi %s112, %s112
                %s124 = sphi %s109, %s109
              $region35: #{dcgan_discriminator_forward.5} parent=31 // loop_header_branch
                %121 = sbr.rel (%p119) target = $region39
              $region36: #{dcgan_discriminator_forward.5} parent=31 // loop_body
                %v125 = vld [vmem:[%s123] sm:$0xff]
                %126 = vst [vmem:[%s124] sm:$0xff] %v125
                %v127 = vld [vmem:[%s123 + $0x8] sm:$0xff]
                %128 = vst [vmem:[%s124 + $0x8] sm:$0xff] %v127
                %v129 = vld [vmem:[%s123 + $0x10] sm:$0xff]
                %130 = vst [vmem:[%s124 + $0x10] sm:$0xff] %v129
                %v131 = vld [vmem:[%s123 + $0x18] sm:$0xff]
                %132 = vst [vmem:[%s124 + $0x18] sm:$0xff] %v131
                %v133 = vld [vmem:[%s123 + $0x40] sm:$0xff]
                %134 = vst [vmem:[%s124 + $0x20] sm:$0xff] %v133
                %v135 = vld [vmem:[%s123 + $0x48] sm:$0xff]
                %136 = vst [vmem:[%s124 + $0x28] sm:$0xff] %v135
                %v137 = vld [vmem:[%s123 + $0x50] sm:$0xff]
                %138 = vst [vmem:[%s124 + $0x30] sm:$0xff] %v137
                %v139 = vld [vmem:[%s123 + $0x58] sm:$0xff]
                %140 = vst [vmem:[%s124 + $0x38] sm:$0xff] %v139
                %v141 = vld [vmem:[%s123 + $0x80] sm:$0xff]
                %142 = vst [vmem:[%s124 + $0x40] sm:$0xff] %v141
                %v143 = vld [vmem:[%s123 + $0x88] sm:$0xff]
                %144 = vst [vmem:[%s124 + $0x48] sm:$0xff] %v143
                %v145 = vld [vmem:[%s123 + $0x90] sm:$0xff]
                %146 = vst [vmem:[%s124 + $0x50] sm:$0xff] %v145
                %v147 = vld [vmem:[%s123 + $0x98] sm:$0xff]
                %148 = vst [vmem:[%s124 + $0x58] sm:$0xff] %v147
                %v149 = vld [vmem:[%s123 + $0xc0] sm:$0xff]
                %150 = vst [vmem:[%s124 + $0x60] sm:$0xff] %v149
                %v151 = vld [vmem:[%s123 + $0xc8] sm:$0xff]
                %152 = vst [vmem:[%s124 + $0x68] sm:$0xff] %v151
                %v153 = vld [vmem:[%s123 + $0xd0] sm:$0xff]
                %154 = vst [vmem:[%s124 + $0x70] sm:$0xff] %v153
                %v155 = vld [vmem:[%s123 + $0xd8] sm:$0xff]
                %156 = vst [vmem:[%s124 + $0x78] sm:$0xff] %v155
                %v157 = vld [vmem:[%s123 + $0x100] sm:$0xff]
                %158 = vst [vmem:[%s124 + $0x80] sm:$0xff] %v157
                %v159 = vld [vmem:[%s123 + $0x108] sm:$0xff]
                %160 = vst [vmem:[%s124 + $0x88] sm:$0xff] %v159
                %v161 = vld [vmem:[%s123 + $0x110] sm:$0xff]
                %162 = vst [vmem:[%s124 + $0x90] sm:$0xff] %v161
                %v163 = vld [vmem:[%s123 + $0x118] sm:$0xff]
                %164 = vst [vmem:[%s124 + $0x98] sm:$0xff] %v163
                %v165 = vld [vmem:[%s123 + $0x140] sm:$0xff]
                %166 = vst [vmem:[%s124 + $0xa0] sm:$0xff] %v165
                %v167 = vld [vmem:[%s123 + $0x148] sm:$0xff]
                %168 = vst [vmem:[%s124 + $0xa8] sm:$0xff] %v167
                %v169 = vld [vmem:[%s123 + $0x150] sm:$0xff]
                %170 = vst [vmem:[%s124 + $0xb0] sm:$0xff] %v169
                %v171 = vld [vmem:[%s123 + $0x158] sm:$0xff]
                %172 = vst [vmem:[%s124 + $0xb8] sm:$0xff] %v171
                %v173 = vld [vmem:[%s123 + $0x180] sm:$0xff]
                %174 = vst [vmem:[%s124 + $0xc0] sm:$0xff] %v173
                %v175 = vld [vmem:[%s123 + $0x188] sm:$0xff]
                %176 = vst [vmem:[%s124 + $0xc8] sm:$0xff] %v175
                %v177 = vld [vmem:[%s123 + $0x190] sm:$0xff]
                %178 = vst [vmem:[%s124 + $0xd0] sm:$0xff] %v177
                %v179 = vld [vmem:[%s123 + $0x198] sm:$0xff]
                %180 = vst [vmem:[%s124 + $0xd8] sm:$0xff] %v179
                %v181 = vld [vmem:[%s123 + $0x1c0] sm:$0xff]
                %182 = vst [vmem:[%s124 + $0xe0] sm:$0xff] %v181
                %v183 = vld [vmem:[%s123 + $0x1c8] sm:$0xff]
                %184 = vst [vmem:[%s124 + $0xe8] sm:$0xff] %v183
                %v185 = vld [vmem:[%s123 + $0x1d0] sm:$0xff]
                %186 = vst [vmem:[%s124 + $0xf0] sm:$0xff] %v185
                %v187 = vld [vmem:[%s123 + $0x1d8] sm:$0xff]
                %188 = vst [vmem:[%s124 + $0xf8] sm:$0xff] %v187
                %v189 = vld [vmem:[%s123 + $0x200] sm:$0xff]
                %190 = vst [vmem:[%s124 + $0x100] sm:$0xff] %v189
                %v191 = vld [vmem:[%s123 + $0x208] sm:$0xff]
                %192 = vst [vmem:[%s124 + $0x108] sm:$0xff] %v191
                %v193 = vld [vmem:[%s123 + $0x210] sm:$0xff]
                %194 = vst [vmem:[%s124 + $0x110] sm:$0xff] %v193
                %v195 = vld [vmem:[%s123 + $0x218] sm:$0xff]
                %196 = vst [vmem:[%s124 + $0x118] sm:$0xff] %v195
                %v197 = vld [vmem:[%s123 + $0x240] sm:$0xff]
                %198 = vst [vmem:[%s124 + $0x120] sm:$0xff] %v197
                %v199 = vld [vmem:[%s123 + $0x248] sm:$0xff]
                %200 = vst [vmem:[%s124 + $0x128] sm:$0xff] %v199
                %v201 = vld [vmem:[%s123 + $0x250] sm:$0xff]
                %202 = vst [vmem:[%s124 + $0x130] sm:$0xff] %v201
                %v203 = vld [vmem:[%s123 + $0x258] sm:$0xff]
                %204 = vst [vmem:[%s124 + $0x138] sm:$0xff] %v203
                %v205 = vld [vmem:[%s123 + $0x280] sm:$0xff]
                %206 = vst [vmem:[%s124 + $0x140] sm:$0xff] %v205
                %v207 = vld [vmem:[%s123 + $0x288] sm:$0xff]
                %208 = vst [vmem:[%s124 + $0x148] sm:$0xff] %v207
                %v209 = vld [vmem:[%s123 + $0x290] sm:$0xff]
                %210 = vst [vmem:[%s124 + $0x150] sm:$0xff] %v209
                %v211 = vld [vmem:[%s123 + $0x298] sm:$0xff]
                %212 = vst [vmem:[%s124 + $0x158] sm:$0xff] %v211
                %v213 = vld [vmem:[%s123 + $0x2c0] sm:$0xff]
                %214 = vst [vmem:[%s124 + $0x160] sm:$0xff] %v213
                %v215 = vld [vmem:[%s123 + $0x2c8] sm:$0xff]
                %216 = vst [vmem:[%s124 + $0x168] sm:$0xff] %v215
                %v217 = vld [vmem:[%s123 + $0x2d0] sm:$0xff]
                %218 = vst [vmem:[%s124 + $0x170] sm:$0xff] %v217
                %v219 = vld [vmem:[%s123 + $0x2d8] sm:$0xff]
                %220 = vst [vmem:[%s124 + $0x178] sm:$0xff] %v219
                %v221 = vld [vmem:[%s123 + $0x300] sm:$0xff]
                %222 = vst [vmem:[%s124 + $0x180] sm:$0xff] %v221
                %v223 = vld [vmem:[%s123 + $0x308] sm:$0xff]
                %224 = vst [vmem:[%s124 + $0x188] sm:$0xff] %v223
                %v225 = vld [vmem:[%s123 + $0x310] sm:$0xff]
                %226 = vst [vmem:[%s124 + $0x190] sm:$0xff] %v225
                %v227 = vld [vmem:[%s123 + $0x318] sm:$0xff]
                %228 = vst [vmem:[%s124 + $0x198] sm:$0xff] %v227
                %v229 = vld [vmem:[%s123 + $0x340] sm:$0xff]
                %230 = vst [vmem:[%s124 + $0x1a0] sm:$0xff] %v229
                %v231 = vld [vmem:[%s123 + $0x348] sm:$0xff]
                %232 = vst [vmem:[%s124 + $0x1a8] sm:$0xff] %v231
                %v233 = vld [vmem:[%s123 + $0x350] sm:$0xff]
                %234 = vst [vmem:[%s124 + $0x1b0] sm:$0xff] %v233
                %v235 = vld [vmem:[%s123 + $0x358] sm:$0xff]
                %236 = vst [vmem:[%s124 + $0x1b8] sm:$0xff] %v235
                %v237 = vld [vmem:[%s123 + $0x380] sm:$0xff]
                %238 = vst [vmem:[%s124 + $0x1c0] sm:$0xff] %v237
                %v239 = vld [vmem:[%s123 + $0x388] sm:$0xff]
                %240 = vst [vmem:[%s124 + $0x1c8] sm:$0xff] %v239
                %v241 = vld [vmem:[%s123 + $0x390] sm:$0xff]
                %242 = vst [vmem:[%s124 + $0x1d0] sm:$0xff] %v241
                %v243 = vld [vmem:[%s123 + $0x398] sm:$0xff]
                %244 = vst [vmem:[%s124 + $0x1d8] sm:$0xff] %v243
                %v245 = vld [vmem:[%s123 + $0x3c0] sm:$0xff]
                %246 = vst [vmem:[%s124 + $0x1e0] sm:$0xff] %v245
                %v247 = vld [vmem:[%s123 + $0x3c8] sm:$0xff]
                %248 = vst [vmem:[%s124 + $0x1e8] sm:$0xff] %v247
                %v249 = vld [vmem:[%s123 + $0x3d0] sm:$0xff]
                %250 = vst [vmem:[%s124 + $0x1f0] sm:$0xff] %v249
                %v251 = vld [vmem:[%s123 + $0x3d8] sm:$0xff]
                %252 = vst [vmem:[%s124 + $0x1f8] sm:$0xff] %v251
              $region37: #{dcgan_discriminator_forward.5} parent=31 // loop_footer
                %s122 = sadd.s32 1, %s118
              $region38: #{dcgan_discriminator_forward.5} parent=31 // loop_footer_branch
                %117 = sbr.rel target = $region34
              $region39: #{dcgan_discriminator_forward.5} parent=31 // loop_exit
                _
            $region32: #{dcgan_discriminator_forward.5} parent=27 // pred_fallthru
              _
            // Predicated region
            $region40: #{dcgan_discriminator_forward.5} parent=27 // pred_check
              _
            $region41: #{dcgan_discriminator_forward.5} parent=27 // pred_check_branch
              %254 = sbr.rel target = $region43
            $region42: #{dcgan_discriminator_forward.5} parent=27 // pred_region
              _
            $region43: #{dcgan_discriminator_forward.5} parent=27 // pred_fallthru
              _
          $region28: #{dcgan_discriminator_forward.5} parent=23 // pred_fallthru
            _
          %255 = vnop
        $region24: #{dcgan_discriminator_forward.5} parent=19 // pred_fallthru
          _
      $region20: #{dcgan_discriminator_forward.5} parent=5 // pred_fallthru
        _
      %p256 = scmp.le.s32.totalorder 1, %s8
      %p257 = scmp.lt.s32.totalorder %s8, 3
      %p258 = pnand %p256, %p257
      %p259 = pneg %p258
      // Predicated region
      $region44: #{dcgan_discriminator_forward.5} parent=5 // pred_check
        _
      $region45: #{dcgan_discriminator_forward.5} parent=5 // pred_check_branch
        %261 = sbr.rel (%p258) target = $region47
      $region46: #{dcgan_discriminator_forward.5} parent=5 // pred_region
        %s262 = ssub.s32 %s8, 1
        %s263 = sand.u32 %s42, 1
        %s264 = sand.u32 %s42, 1
        %s265 = smul.addr %s264, 512
        %s266 = scalar_lea.vmem [#allocation2], %s265
        // Predicated region
        $region48: #{dcgan_discriminator_forward.5} parent=46 // pred_check
          %p267 = pneg %p55
        $region49: #{dcgan_discriminator_forward.5} parent=46 // pred_check_branch
          %269 = sbr.rel (%p267) target = $region51
        $region50: #{dcgan_discriminator_forward.5} parent=46 // pred_region
          _
        $region51: #{dcgan_discriminator_forward.5} parent=46 // pred_fallthru
          _
        %p270 = pneg %p29
        %p271 = pneg %p26
        %s272 = sand.u32 %s42, 1
        %s273 = sand.u32 %s42, 1
        %s274 = smul.addr %s273, 512
        %s275 = scalar_lea.vmem [#allocation2], %s274
        %p276 = pneg %p55
        %p277 = pneg %p52
        %p278 = pneg %p81
        %p279 = pneg %p78
        %s280 = smul.u32 8, %s13
        %p281 = scmp.lt.s32.totalorder %s280, 15
        %s282 = scalar_select %p281, %s280, 15
        %s283 = smul.addr %s282, 4
        %s284 = scalar_lea.vmem %s2, %s283
        %s285 = smul.u32 8, %s13
        %s286 = smul.u32 8, %s13
        %p287 = scmp.lt.s32.totalorder %s286, 15
        %s288 = scalar_select %p287, %s286, 15
        %s289 = smul.addr %s288, 4
        %s290 = scalar_lea.vmem %s2, %s289
        %s291 = smul.u32 8, %s13
        %v293 = vld [vmem:[%s0] sm:$0xf]
        %v294 = vld [vmem:[%s266] sm:$0xff]
        %v295 = vld [vmem:[%s266 + $0x8] sm:$0xff]
        %v296 = vld [vmem:[%s266 + $0x10] sm:$0xff]
        %v297 = vld [vmem:[%s266 + $0x18] sm:$0xff]
        %v298 = vld [vmem:[%s266 + $0x20] sm:$0xff]
        %v299 = vld [vmem:[%s266 + $0x28] sm:$0xff]
        %v300 = vld [vmem:[%s266 + $0x30] sm:$0xff]
        %v301 = vld [vmem:[%s266 + $0x38] sm:$0xff]
        %v302 = vld [vmem:[%s266 + $0x40] sm:$0xff]
        %v303 = vld [vmem:[%s266 + $0x48] sm:$0xff]
        %v304 = vld [vmem:[%s266 + $0x50] sm:$0xff]
        %v305 = vld [vmem:[%s266 + $0x58] sm:$0xff]
        %v306 = vld [vmem:[%s266 + $0x60] sm:$0xff]
        %v307 = vld [vmem:[%s266 + $0x68] sm:$0xff]
        %v308 = vld [vmem:[%s266 + $0x70] sm:$0xff]
        %v309 = vld [vmem:[%s266 + $0x78] sm:$0xff]
        %v310 = vld [vmem:[%s266 + $0x80] sm:$0xff]
        %v311 = vld [vmem:[%s266 + $0x88] sm:$0xff]
        %v312 = vld [vmem:[%s266 + $0x90] sm:$0xff]
        %v313 = vld [vmem:[%s266 + $0x98] sm:$0xff]
        %v314 = vld [vmem:[%s266 + $0xa0] sm:$0xff]
        %v315 = vld [vmem:[%s266 + $0xa8] sm:$0xff]
        %v316 = vld [vmem:[%s266 + $0xb0] sm:$0xff]
        %v317 = vld [vmem:[%s266 + $0xb8] sm:$0xff]
        %v318 = vld [vmem:[%s266 + $0xc0] sm:$0xff]
        %v319 = vld [vmem:[%s266 + $0xc8] sm:$0xff]
        %v320 = vld [vmem:[%s266 + $0xd0] sm:$0xff]
        %v321 = vld [vmem:[%s266 + $0xd8] sm:$0xff]
        %v322 = vld [vmem:[%s266 + $0xe0] sm:$0xff]
        %v323 = vld [vmem:[%s266 + $0xe8] sm:$0xff]
        %v324 = vld [vmem:[%s266 + $0xf0] sm:$0xff]
        %v325 = vld [vmem:[%s266 + $0xf8] sm:$0xff]
        %v326 = vld [vmem:[%s266 + $0x100] sm:$0xff]
        %v327 = vld [vmem:[%s266 + $0x108] sm:$0xff]
        %v328 = vld [vmem:[%s266 + $0x110] sm:$0xff]
        %v329 = vld [vmem:[%s266 + $0x118] sm:$0xff]
        %v330 = vld [vmem:[%s266 + $0x120] sm:$0xff]
        %v331 = vld [vmem:[%s266 + $0x128] sm:$0xff]
        %v332 = vld [vmem:[%s266 + $0x130] sm:$0xff]
        %v333 = vld [vmem:[%s266 + $0x138] sm:$0xff]
        %v334 = vld [vmem:[%s266 + $0x140] sm:$0xff]
        %v335 = vld [vmem:[%s266 + $0x148] sm:$0xff]
        %v336 = vld [vmem:[%s266 + $0x150] sm:$0xff]
        %v337 = vld [vmem:[%s266 + $0x158] sm:$0xff]
        %v338 = vld [vmem:[%s266 + $0x160] sm:$0xff]
        %v339 = vld [vmem:[%s266 + $0x168] sm:$0xff]
        %v340 = vld [vmem:[%s266 + $0x170] sm:$0xff]
        %v341 = vld [vmem:[%s266 + $0x178] sm:$0xff]
        %v342 = vld [vmem:[%s266 + $0x180] sm:$0xff]
        %v343 = vld [vmem:[%s266 + $0x188] sm:$0xff]
        %v344 = vld [vmem:[%s266 + $0x190] sm:$0xff]
        %v345 = vld [vmem:[%s266 + $0x198] sm:$0xff]
        %v346 = vld [vmem:[%s266 + $0x1a0] sm:$0xff]
        %v347 = vld [vmem:[%s266 + $0x1a8] sm:$0xff]
        %v348 = vld [vmem:[%s266 + $0x1b0] sm:$0xff]
        %v349 = vld [vmem:[%s266 + $0x1b8] sm:$0xff]
        %v350 = vld [vmem:[%s266 + $0x1c0] sm:$0xff]
        %v351 = vld [vmem:[%s266 + $0x1c8] sm:$0xff]
        %v352 = vld [vmem:[%s266 + $0x1d0] sm:$0xff]
        %v353 = vld [vmem:[%s266 + $0x1d8] sm:$0xff]
        %v354 = vld [vmem:[%s266 + $0x1e0] sm:$0xff]
        %v355 = vld [vmem:[%s266 + $0x1e8] sm:$0xff]
        %v356 = vld [vmem:[%s266 + $0x1f0] sm:$0xff]
        %v357 = vld [vmem:[%s266 + $0x1f8] sm:$0xff]
        %v422 = vunpack.c.l.b16 %v294
        %v423 = vunpack.c.h.b16 %v294
        %v424 = vunpack.c.l.b16 %v295
        %v425 = vunpack.c.h.b16 %v295
        %v426 = vunpack.c.l.b16 %v296
        %v427 = vunpack.c.h.b16 %v296
        %v428 = vunpack.c.l.b16 %v297
        %v429 = vunpack.c.h.b16 %v297
        %v430 = vunpack.c.l.b16 %v298
        %v431 = vunpack.c.h.b16 %v298
        %v432 = vunpack.c.l.b16 %v299
        %v433 = vunpack.c.h.b16 %v299
        %v434 = vunpack.c.l.b16 %v300
        %v435 = vunpack.c.h.b16 %v300
        %v436 = vunpack.c.l.b16 %v301
        %v437 = vunpack.c.h.b16 %v301
        %v438 = vunpack.c.l.b16 %v302
        %v439 = vunpack.c.h.b16 %v302
        %v440 = vunpack.c.l.b16 %v303
        %v441 = vunpack.c.h.b16 %v303
        %v442 = vunpack.c.l.b16 %v304
        %v443 = vunpack.c.h.b16 %v304
        %v444 = vunpack.c.l.b16 %v305
        %v445 = vunpack.c.h.b16 %v305
        %v446 = vunpack.c.l.b16 %v306
        %v447 = vunpack.c.h.b16 %v306
        %v448 = vunpack.c.l.b16 %v307
        %v449 = vunpack.c.h.b16 %v307
        %v450 = vunpack.c.l.b16 %v308
        %v451 = vunpack.c.h.b16 %v308
        %v452 = vunpack.c.l.b16 %v309
        %v453 = vunpack.c.h.b16 %v309
        %v454 = vunpack.c.l.b16 %v310
        %v455 = vunpack.c.h.b16 %v310
        %v456 = vunpack.c.l.b16 %v311
        %v457 = vunpack.c.h.b16 %v311
        %v458 = vunpack.c.l.b16 %v312
        %v459 = vunpack.c.h.b16 %v312
        %v460 = vunpack.c.l.b16 %v313
        %v461 = vunpack.c.h.b16 %v313
        %v462 = vunpack.c.l.b16 %v314
        %v463 = vunpack.c.h.b16 %v314
        %v464 = vunpack.c.l.b16 %v315
        %v465 = vunpack.c.h.b16 %v315
        %v466 = vunpack.c.l.b16 %v316
        %v467 = vunpack.c.h.b16 %v316
        %v468 = vunpack.c.l.b16 %v317
        %v469 = vunpack.c.h.b16 %v317
        %v470 = vunpack.c.l.b16 %v318
        %v471 = vunpack.c.h.b16 %v318
        %v472 = vunpack.c.l.b16 %v319
        %v473 = vunpack.c.h.b16 %v319
        %v474 = vunpack.c.l.b16 %v320
        %v475 = vunpack.c.h.b16 %v320
        %v476 = vunpack.c.l.b16 %v321
        %v477 = vunpack.c.h.b16 %v321
        %v478 = vunpack.c.l.b16 %v322
        %v479 = vunpack.c.h.b16 %v322
        %v480 = vunpack.c.l.b16 %v323
        %v481 = vunpack.c.h.b16 %v323
        %v482 = vunpack.c.l.b16 %v324
        %v483 = vunpack.c.h.b16 %v324
        %v484 = vunpack.c.l.b16 %v325
        %v485 = vunpack.c.h.b16 %v325
        %v486 = vunpack.c.l.b16 %v326
        %v487 = vunpack.c.h.b16 %v326
        %v488 = vunpack.c.l.b16 %v327
        %v489 = vunpack.c.h.b16 %v327
        %v490 = vunpack.c.l.b16 %v328
        %v491 = vunpack.c.h.b16 %v328
        %v492 = vunpack.c.l.b16 %v329
        %v493 = vunpack.c.h.b16 %v329
        %v494 = vunpack.c.l.b16 %v330
        %v495 = vunpack.c.h.b16 %v330
        %v496 = vunpack.c.l.b16 %v331
        %v497 = vunpack.c.h.b16 %v331
        %v498 = vunpack.c.l.b16 %v332
        %v499 = vunpack.c.h.b16 %v332
        %v500 = vunpack.c.l.b16 %v333
        %v501 = vunpack.c.h.b16 %v333
        %v502 = vunpack.c.l.b16 %v334
        %v503 = vunpack.c.h.b16 %v334
        %v504 = vunpack.c.l.b16 %v335
        %v505 = vunpack.c.h.b16 %v335
        %v506 = vunpack.c.l.b16 %v336
        %v507 = vunpack.c.h.b16 %v336
        %v508 = vunpack.c.l.b16 %v337
        %v509 = vunpack.c.h.b16 %v337
        %v510 = vunpack.c.l.b16 %v338
        %v511 = vunpack.c.h.b16 %v338
        %v512 = vunpack.c.l.b16 %v339
        %v513 = vunpack.c.h.b16 %v339
        %v514 = vunpack.c.l.b16 %v340
        %v515 = vunpack.c.h.b16 %v340
        %v516 = vunpack.c.l.b16 %v341
        %v517 = vunpack.c.h.b16 %v341
        %v518 = vunpack.c.l.b16 %v342
        %v519 = vunpack.c.h.b16 %v342
        %v520 = vunpack.c.l.b16 %v343
        %v521 = vunpack.c.h.b16 %v343
        %v522 = vunpack.c.l.b16 %v344
        %v523 = vunpack.c.h.b16 %v344
        %v524 = vunpack.c.l.b16 %v345
        %v525 = vunpack.c.h.b16 %v345
        %v526 = vunpack.c.l.b16 %v346
        %v527 = vunpack.c.h.b16 %v346
        %v528 = vunpack.c.l.b16 %v347
        %v529 = vunpack.c.h.b16 %v347
        %v530 = vunpack.c.l.b16 %v348
        %v531 = vunpack.c.h.b16 %v348
        %v532 = vunpack.c.l.b16 %v349
        %v533 = vunpack.c.h.b16 %v349
        %v534 = vunpack.c.l.b16 %v350
        %v535 = vunpack.c.h.b16 %v350
        %v536 = vunpack.c.l.b16 %v351
        %v537 = vunpack.c.h.b16 %v351
        %v538 = vunpack.c.l.b16 %v352
        %v539 = vunpack.c.h.b16 %v352
        %v540 = vunpack.c.l.b16 %v353
        %v541 = vunpack.c.h.b16 %v353
        %v542 = vunpack.c.l.b16 %v354
        %v543 = vunpack.c.h.b16 %v354
        %v544 = vunpack.c.l.b16 %v355
        %v545 = vunpack.c.h.b16 %v355
        %v546 = vunpack.c.l.b16 %v356
        %v547 = vunpack.c.h.b16 %v356
        %v548 = vunpack.c.l.b16 %v357
        %v549 = vunpack.c.h.b16 %v357
        %v550 = vpack.c.b16 %v430, %v422
        %v551 = vpack.c.b16 %v431, %v423
        %v552 = vpack.c.b16 %v432, %v424
        %v553 = vpack.c.b16 %v433, %v425
        %v554 = vpack.c.b16 %v434, %v426
        %v555 = vpack.c.b16 %v435, %v427
        %v556 = vpack.c.b16 %v436, %v428
        %v557 = vpack.c.b16 %v437, %v429
        %v558 = vpack.c.b16 %v446, %v438
        %v559 = vpack.c.b16 %v447, %v439
        %v560 = vpack.c.b16 %v448, %v440
        %v561 = vpack.c.b16 %v449, %v441
        %v562 = vpack.c.b16 %v450, %v442
        %v563 = vpack.c.b16 %v451, %v443
        %v564 = vpack.c.b16 %v452, %v444
        %v565 = vpack.c.b16 %v453, %v445
        %v566 = vpack.c.b16 %v462, %v454
        %v567 = vpack.c.b16 %v463, %v455
        %v568 = vpack.c.b16 %v464, %v456
        %v569 = vpack.c.b16 %v465, %v457
        %v570 = vpack.c.b16 %v466, %v458
        %v571 = vpack.c.b16 %v467, %v459
        %v572 = vpack.c.b16 %v468, %v460
        %v573 = vpack.c.b16 %v469, %v461
        %v574 = vpack.c.b16 %v478, %v470
        %v575 = vpack.c.b16 %v479, %v471
        %v576 = vpack.c.b16 %v480, %v472
        %v577 = vpack.c.b16 %v481, %v473
        %v578 = vpack.c.b16 %v482, %v474
        %v579 = vpack.c.b16 %v483, %v475
        %v580 = vpack.c.b16 %v484, %v476
        %v581 = vpack.c.b16 %v485, %v477
        %v582 = vpack.c.b16 %v494, %v486
        %v583 = vpack.c.b16 %v495, %v487
        %v584 = vpack.c.b16 %v496, %v488
        %v585 = vpack.c.b16 %v497, %v489
        %v586 = vpack.c.b16 %v498, %v490
        %v587 = vpack.c.b16 %v499, %v491
        %v588 = vpack.c.b16 %v500, %v492
        %v589 = vpack.c.b16 %v501, %v493
        %v590 = vpack.c.b16 %v510, %v502
        %v591 = vpack.c.b16 %v511, %v503
        %v592 = vpack.c.b16 %v512, %v504
        %v593 = vpack.c.b16 %v513, %v505
        %v594 = vpack.c.b16 %v514, %v506
        %v595 = vpack.c.b16 %v515, %v507
        %v596 = vpack.c.b16 %v516, %v508
        %v597 = vpack.c.b16 %v517, %v509
        %v598 = vpack.c.b16 %v526, %v518
        %v599 = vpack.c.b16 %v527, %v519
        %v600 = vpack.c.b16 %v528, %v520
        %v601 = vpack.c.b16 %v529, %v521
        %v602 = vpack.c.b16 %v530, %v522
        %v603 = vpack.c.b16 %v531, %v523
        %v604 = vpack.c.b16 %v532, %v524
        %v605 = vpack.c.b16 %v533, %v525
        %v606 = vpack.c.b16 %v542, %v534
        %v607 = vpack.c.b16 %v543, %v535
        %v608 = vpack.c.b16 %v544, %v536
        %v609 = vpack.c.b16 %v545, %v537
        %v610 = vpack.c.b16 %v546, %v538
        %v611 = vpack.c.b16 %v547, %v539
        %v612 = vpack.c.b16 %v548, %v540
        %v613 = vpack.c.b16 %v549, %v541
        %678 = vmatprep.subr.bf16.mxu0 %v607
        %679 = vmatpush1.bf16.msra.mxu0 %v606
        %680 = vmatprep.subr.bf16.mxu0 %v599
        %681 = vmatpush1.bf16.msra.mxu0 %v598
        %682 = vmatprep.subr.bf16.mxu0 %v591
        %683 = vmatpush1.bf16.msra.mxu0 %v590
        %684 = vmatprep.subr.bf16.mxu0 %v583
        %685 = vmatpush1.bf16.msra.mxu0 %v582
        %686 = vmatprep.subr.bf16.mxu0 %v575
        %687 = vmatpush1.bf16.msra.mxu0 %v574
        %688 = vmatprep.subr.bf16.mxu0 %v567
        %689 = vmatpush1.bf16.msra.mxu0 %v566
        %690 = vmatprep.subr.bf16.mxu0 %v559
        %691 = vmatpush1.bf16.msra.mxu0 %v558
        %692 = vmatprep.subr.bf16.mxu0 %v551
        %693 = vmatpush1.bf16.msra.mxu0 %v550
        %694 = vmatprep.subr.bf16.mxu0 0
        %695 = vmatpush2.bf16.msra.mxu0 0
        %696 = vmatprep.subr.bf16.mxu0 0
        %697 = vmatpush2.bf16.msra.mxu0 0
        %698 = vmatprep.subr.bf16.mxu0 0
        %699 = vmatpush2.bf16.msra.mxu0 0
        %700 = vmatprep.subr.bf16.mxu0 0
        %701 = vmatpush2.bf16.msra.mxu0 0
        %702 = vmatprep.subr.bf16.mxu0 0
        %703 = vmatpush2.bf16.msra.mxu0 0
        %704 = vmatprep.subr.bf16.mxu0 0
        %705 = vmatpush2.bf16.msra.mxu0 0
        %706 = vmatprep.subr.bf16.mxu0 0
        %707 = vmatpush2.bf16.msra.mxu0 0
        %708 = vmatprep.subr.bf16.mxu0 0
        %709 = vmatpush2.bf16.msra.mxu0 0
        %710 = vmatprep.mubr.bf16.mxu0 0
        %711 = vmatmul.mubr.bf16.gmra.mxu0 %v293
        %v712 = vpop.f32.mrf.mxu0
        %v713 = vadd.f32 0.0, %v712
        %v714 = vpop.f32.mrf.mxu0
        %v715 = vadd.f32 0.0, %v714
        %v716 = vpop.f32.mrf.mxu0
        %v717 = vpop.f32.mrf.mxu0
        %718 = vdwg.mxu0
        %719 = vmatprep.subr.bf16.mxu0 %v609
        %720 = vmatpush1.bf16.msra.mxu0 %v608
        %721 = vmatprep.subr.bf16.mxu0 %v601
        %722 = vmatpush1.bf16.msra.mxu0 %v600
        %723 = vmatprep.subr.bf16.mxu0 %v593
        %724 = vmatpush1.bf16.msra.mxu0 %v592
        %725 = vmatprep.subr.bf16.mxu0 %v585
        %726 = vmatpush1.bf16.msra.mxu0 %v584
        %727 = vmatprep.subr.bf16.mxu0 %v577
        %728 = vmatpush1.bf16.msra.mxu0 %v576
        %729 = vmatprep.subr.bf16.mxu0 %v569
        %730 = vmatpush1.bf16.msra.mxu0 %v568
        %731 = vmatprep.subr.bf16.mxu0 %v561
        %732 = vmatpush1.bf16.msra.mxu0 %v560
        %733 = vmatprep.subr.bf16.mxu0 %v553
        %734 = vmatpush1.bf16.msra.mxu0 %v552
        %735 = vmatprep.subr.bf16.mxu0 0
        %736 = vmatpush2.bf16.msra.mxu0 0
        %737 = vmatprep.subr.bf16.mxu0 0
        %738 = vmatpush2.bf16.msra.mxu0 0
        %739 = vmatprep.subr.bf16.mxu0 0
        %740 = vmatpush2.bf16.msra.mxu0 0
        %741 = vmatprep.subr.bf16.mxu0 0
        %742 = vmatpush2.bf16.msra.mxu0 0
        %743 = vmatprep.subr.bf16.mxu0 0
        %744 = vmatpush2.bf16.msra.mxu0 0
        %745 = vmatprep.subr.bf16.mxu0 0
        %746 = vmatpush2.bf16.msra.mxu0 0
        %747 = vmatprep.subr.bf16.mxu0 0
        %748 = vmatpush2.bf16.msra.mxu0 0
        %749 = vmatprep.subr.bf16.mxu0 0
        %750 = vmatpush2.bf16.msra.mxu0 0
        %751 = vmatprep.mubr.bf16.mxu0 0
        %752 = vmatmul.mubr.bf16.gmra.mxu0 %v293
        %v753 = vpop.f32.mrf.mxu0
        %v754 = vadd.f32 0.0, %v753
        %v755 = vpop.f32.mrf.mxu0
        %v756 = vadd.f32 0.0, %v755
        %v757 = vpop.f32.mrf.mxu0
        %v758 = vpop.f32.mrf.mxu0
        %759 = vdwg.mxu0
        %760 = vmatprep.subr.bf16.mxu0 %v611
        %761 = vmatpush1.bf16.msra.mxu0 %v610
        %762 = vmatprep.subr.bf16.mxu0 %v603
        %763 = vmatpush1.bf16.msra.mxu0 %v602
        %764 = vmatprep.subr.bf16.mxu0 %v595
        %765 = vmatpush1.bf16.msra.mxu0 %v594
        %766 = vmatprep.subr.bf16.mxu0 %v587
        %767 = vmatpush1.bf16.msra.mxu0 %v586
        %768 = vmatprep.subr.bf16.mxu0 %v579
        %769 = vmatpush1.bf16.msra.mxu0 %v578
        %770 = vmatprep.subr.bf16.mxu0 %v571
        %771 = vmatpush1.bf16.msra.mxu0 %v570
        %772 = vmatprep.subr.bf16.mxu0 %v563
        %773 = vmatpush1.bf16.msra.mxu0 %v562
        %774 = vmatprep.subr.bf16.mxu0 %v555
        %775 = vmatpush1.bf16.msra.mxu0 %v554
        %776 = vmatprep.subr.bf16.mxu0 0
        %777 = vmatpush2.bf16.msra.mxu0 0
        %778 = vmatprep.subr.bf16.mxu0 0
        %779 = vmatpush2.bf16.msra.mxu0 0
        %780 = vmatprep.subr.bf16.mxu0 0
        %781 = vmatpush2.bf16.msra.mxu0 0
        %782 = vmatprep.subr.bf16.mxu0 0
        %783 = vmatpush2.bf16.msra.mxu0 0
        %784 = vmatprep.subr.bf16.mxu0 0
        %785 = vmatpush2.bf16.msra.mxu0 0
        %786 = vmatprep.subr.bf16.mxu0 0
        %787 = vmatpush2.bf16.msra.mxu0 0
        %788 = vmatprep.subr.bf16.mxu0 0
        %789 = vmatpush2.bf16.msra.mxu0 0
        %790 = vmatprep.subr.bf16.mxu0 0
        %791 = vmatpush2.bf16.msra.mxu0 0
        %792 = vmatprep.mubr.bf16.mxu0 0
        %793 = vmatmul.mubr.bf16.gmra.mxu0 %v293
        %v794 = vpop.f32.mrf.mxu0
        %v795 = vadd.f32 0.0, %v794
        %v796 = vpop.f32.mrf.mxu0
        %v797 = vadd.f32 0.0, %v796
        %v798 = vpop.f32.mrf.mxu0
        %v799 = vpop.f32.mrf.mxu0
        %800 = vdwg.mxu0
        %801 = vmatprep.subr.bf16.mxu0 %v613
        %802 = vmatpush1.bf16.msra.mxu0 %v612
        %803 = vmatprep.subr.bf16.mxu0 %v605
        %804 = vmatpush1.bf16.msra.mxu0 %v604
        %805 = vmatprep.subr.bf16.mxu0 %v597
        %806 = vmatpush1.bf16.msra.mxu0 %v596
        %807 = vmatprep.subr.bf16.mxu0 %v589
        %808 = vmatpush1.bf16.msra.mxu0 %v588
        %809 = vmatprep.subr.bf16.mxu0 %v581
        %810 = vmatpush1.bf16.msra.mxu0 %v580
        %811 = vmatprep.subr.bf16.mxu0 %v573
        %812 = vmatpush1.bf16.msra.mxu0 %v572
        %813 = vmatprep.subr.bf16.mxu0 %v565
        %814 = vmatpush1.bf16.msra.mxu0 %v564
        %815 = vmatprep.subr.bf16.mxu0 %v557
        %816 = vmatpush1.bf16.msra.mxu0 %v556
        %817 = vmatprep.subr.bf16.mxu0 0
        %818 = vmatpush2.bf16.msra.mxu0 0
        %819 = vmatprep.subr.bf16.mxu0 0
        %820 = vmatpush2.bf16.msra.mxu0 0
        %821 = vmatprep.subr.bf16.mxu0 0
        %822 = vmatpush2.bf16.msra.mxu0 0
        %823 = vmatprep.subr.bf16.mxu0 0
        %824 = vmatpush2.bf16.msra.mxu0 0
        %825 = vmatprep.subr.bf16.mxu0 0
        %826 = vmatpush2.bf16.msra.mxu0 0
        %827 = vmatprep.subr.bf16.mxu0 0
        %828 = vmatpush2.bf16.msra.mxu0 0
        %829 = vmatprep.subr.bf16.mxu0 0
        %830 = vmatpush2.bf16.msra.mxu0 0
        %831 = vmatprep.subr.bf16.mxu0 0
        %832 = vmatpush2.bf16.msra.mxu0 0
        %833 = vmatprep.mubr.bf16.mxu0 0
        %834 = vmatmul.mubr.bf16.gmra.mxu0 %v293
        %v835 = vpop.f32.mrf.mxu0
        %v836 = vadd.f32 0.0, %v835
        %v837 = vpop.f32.mrf.mxu0
        %v838 = vadd.f32 0.0, %v837
        %v839 = vpop.f32.mrf.mxu0
        %v840 = vpop.f32.mrf.mxu0
        %841 = vdwg.mxu0
        %v842 = vmul.f32 %v713, 0.2
        %v843 = vmul.f32 %v715, 0.2
        %v844 = vmul.f32 %v754, 0.2
        %v845 = vmul.f32 %v756, 0.2
        %v846 = vmul.f32 %v795, 0.2
        %v847 = vmul.f32 %v797, 0.2
        %v848 = vmul.f32 %v836, 0.2
        %v849 = vmul.f32 %v838, 0.2
        %v850 = vmax.f32 %v713, %v842
        %v851 = vmax.f32 %v715, %v843
        %v852 = vmax.f32 %v754, %v844
        %v853 = vmax.f32 %v756, %v845
        %v854 = vmax.f32 %v795, %v846
        %v855 = vmax.f32 %v797, %v847
        %v856 = vmax.f32 %v836, %v848
        %v857 = vmax.f32 %v838, %v849
        %v858 = vpack.c.bf16 %v850, %v850
        %v859 = vpack.c.bf16 %v851, %v851
        %v860 = vpack.c.bf16 %v852, %v852
        %v861 = vpack.c.bf16 %v853, %v853
        %v862 = vpack.c.bf16 %v854, %v854
        %v863 = vpack.c.bf16 %v855, %v855
        %v864 = vpack.c.bf16 %v856, %v856
        %v865 = vpack.c.bf16 %v857, %v857
        %v874 = vunpack.c.l.b16 %v858
        %v875 = vunpack.c.l.b16 %v859
        %v876 = vunpack.c.l.b16 %v860
        %v877 = vunpack.c.l.b16 %v861
        %v878 = vunpack.c.l.b16 %v862
        %v879 = vunpack.c.l.b16 %v863
        %v880 = vunpack.c.l.b16 %v864
        %v881 = vunpack.c.l.b16 %v865
        %v882 = vpack.c.b16 %v875, %v874
        %v883 = vpack.c.b16 %v877, %v876
        %v884 = vpack.c.b16 %v879, %v878
        %v885 = vpack.c.b16 %v881, %v880
        %890 = vst [vmem:[%s290] sm:$0xff] %v882
        %891 = vst [vmem:[%s290 + $0x8] sm:$0xff] %v883
        %892 = vst [vmem:[%s290 + $0x10] sm:$0xff] %v884
        %893 = vst [vmem:[%s290 + $0x18] sm:$0xff] %v885
        %s894 = smul.u32 8, %s13
        %p895 = scmp.lt.s32.totalorder %s894, 15
        %s896 = scalar_select %p895, %s894, 15
        %s897 = smul.addr %s896, 4
        %s898 = scalar_lea.vmem %s2, %s897
        // Predicated region
        $region52: #{dcgan_discriminator_forward.5} parent=46 // pred_check
          %p899 = pneg %p78
        $region53: #{dcgan_discriminator_forward.5} parent=46 // pred_check_branch
          %901 = sbr.rel (%p899) target = $region55
        $region54: #{dcgan_discriminator_forward.5} parent=46 // pred_region
          %s902 = smul.u32 8, %s13
        $region55: #{dcgan_discriminator_forward.5} parent=46 // pred_fallthru
          _
      $region47: #{dcgan_discriminator_forward.5} parent=5 // pred_fallthru
        _
      %p903 = scmp.le.s32.totalorder 2, %s8
      // Predicated region
      $region56: #{dcgan_discriminator_forward.5} parent=5 // pred_check
        %p904 = pneg %p903
      $region57: #{dcgan_discriminator_forward.5} parent=5 // pred_check_branch
        %906 = sbr.rel (%p904) target = $region59
      $region58: #{dcgan_discriminator_forward.5} parent=5 // pred_region
        %s907 = ssub.s32 %s8, 2
        // Predicated region
        $region60: #{dcgan_discriminator_forward.5} parent=58 // pred_check
          %p908 = pneg %p84
        $region61: #{dcgan_discriminator_forward.5} parent=58 // pred_check_branch
          %910 = sbr.rel (%p908) target = $region63
        $region62: #{dcgan_discriminator_forward.5} parent=58 // pred_region
          %s911 = smul.u32 8, %s14
          %p912 = scmp.lt.s32.totalorder %s911, 15
          %s913 = scalar_select %p912, %s911, 15
          %s914 = smul.addr %s913, 4
          %s915 = scalar_lea.vmem %s2, %s914
        $region63: #{dcgan_discriminator_forward.5} parent=58 // pred_fallthru
          _
      $region59: #{dcgan_discriminator_forward.5} parent=5 // pred_fallthru
        _
    $region6: #{dcgan_discriminator_forward.5} parent=1 // loop_footer
      %s12 = sadd.s32 1, %s8
    $region7: #{dcgan_discriminator_forward.5} parent=1 // loop_footer_branch
      %7 = sbr.rel target = $region3
    $region8: #{dcgan_discriminator_forward.5} parent=1 // loop_exit
      _

// kernel: dcgan_discriminator_forward.6
$region0: #{dcgan_discriminator_forward.6}
  #allocation0 [shape = 'u32[]', space=smem, size = 0x4, offset = 0x4, fixed_abs, tag = 'smem constant byte address 0x4 - core index']
  #allocation1 [shape = 'u32[144,128]{1,0:T(1,128)}', space=vmem, size = 0x12000, scoped, tag = 'internal scratch']
  %s0 = inlined_call_operand.vmem [shape: bf16[16,128], index: 0, kind: input, shape index: {}]
  %s1 = inlined_call_operand.vmem [shape: bf16[128,512], index: 1, kind: input, shape index: {}]
  %s2 = inlined_call_operand.vmem [shape: f32[16,1], index: 2, kind: input, shape index: {}]
  %s3 = inlined_call_operand.vmem [shape: f32[16,1], index: 3, kind: input, shape index: {}]
  %s4 = inlined_call_operand.vmem [shape: bf16[16,512], index: 4, kind: output, shape index: {}]
  %s5 = sld [smem:[#allocation0]]
  $region26: #{dcgan_discriminator_forward.6} parent=0
    _
  %s7 = ssub.s32 1, %s5
  %s8 = scalar_select 0, %s7, %s5
  // Predicated region
  $region2: #{dcgan_discriminator_forward.6} parent=0 // pred_check
    _
  $region3: #{dcgan_discriminator_forward.6} parent=0 // pred_check_branch
    %10 = sbr.rel (0) target = $region5
  $region4: #{dcgan_discriminator_forward.6} parent=0 // pred_region
    _
  $region5: #{dcgan_discriminator_forward.6} parent=0 // pred_fallthru
    _
  // Predicated region
  $region6: #{dcgan_discriminator_forward.6} parent=0 // pred_check
    _
  $region7: #{dcgan_discriminator_forward.6} parent=0 // pred_check_branch
    %12 = sbr.rel (0) target = $region9
  $region8: #{dcgan_discriminator_forward.6} parent=0 // pred_region
    _
  $region9: #{dcgan_discriminator_forward.6} parent=0 // pred_fallthru
    _
  // Predicated region
  $region10: #{dcgan_discriminator_forward.6} parent=0 // pred_check
    _
  $region11: #{dcgan_discriminator_forward.6} parent=0 // pred_check_branch
    %14 = sbr.rel (0) target = $region13
  $region12: #{dcgan_discriminator_forward.6} parent=0 // pred_region
    _
  $region13: #{dcgan_discriminator_forward.6} parent=0 // pred_fallthru
    _
  // Predicated region
  $region14: #{dcgan_discriminator_forward.6} parent=0 // pred_check
    _
  $region15: #{dcgan_discriminator_forward.6} parent=0 // pred_check_branch
    %16 = sbr.rel (0) target = $region17
  $region16: #{dcgan_discriminator_forward.6} parent=0 // pred_region
    _
  $region17: #{dcgan_discriminator_forward.6} parent=0 // pred_fallthru
    _
  %v18 = vld [vmem:[%s0] sm:$0xf]
  %v19 = vld [vmem:[%s0 + $0x4] sm:$0xf]
  %v20 = vld [vmem:[%s1] sm:$0xff]
  %v21 = vld [vmem:[%s1 + $0x8] sm:$0xff]
  %v22 = vld [vmem:[%s1 + $0x10] sm:$0xff]
  %v23 = vld [vmem:[%s1 + $0x18] sm:$0xff]
  %v24 = vld [vmem:[%s1 + $0x20] sm:$0xff]
  %v25 = vld [vmem:[%s1 + $0x28] sm:$0xff]
  %v26 = vld [vmem:[%s1 + $0x30] sm:$0xff]
  %v27 = vld [vmem:[%s1 + $0x38] sm:$0xff]
  %v28 = vld [vmem:[%s1 + $0x40] sm:$0xff]
  %v29 = vld [vmem:[%s1 + $0x48] sm:$0xff]
  %v30 = vld [vmem:[%s1 + $0x50] sm:$0xff]
  %v31 = vld [vmem:[%s1 + $0x58] sm:$0xff]
  %v32 = vld [vmem:[%s1 + $0x60] sm:$0xff]
  %v33 = vld [vmem:[%s1 + $0x68] sm:$0xff]
  %v34 = vld [vmem:[%s1 + $0x70] sm:$0xff]
  %v35 = vld [vmem:[%s1 + $0x78] sm:$0xff]
  %v36 = vld [vmem:[%s1 + $0x80] sm:$0xff]
  %v37 = vld [vmem:[%s1 + $0x88] sm:$0xff]
  %v38 = vld [vmem:[%s1 + $0x90] sm:$0xff]
  %v39 = vld [vmem:[%s1 + $0x98] sm:$0xff]
  %v40 = vld [vmem:[%s1 + $0xa0] sm:$0xff]
  %v41 = vld [vmem:[%s1 + $0xa8] sm:$0xff]
  %v42 = vld [vmem:[%s1 + $0xb0] sm:$0xff]
  %v43 = vld [vmem:[%s1 + $0xb8] sm:$0xff]
  %v44 = vld [vmem:[%s1 + $0xc0] sm:$0xff]
  %v45 = vld [vmem:[%s1 + $0xc8] sm:$0xff]
  %v46 = vld [vmem:[%s1 + $0xd0] sm:$0xff]
  %v47 = vld [vmem:[%s1 + $0xd8] sm:$0xff]
  %v48 = vld [vmem:[%s1 + $0xe0] sm:$0xff]
  %v49 = vld [vmem:[%s1 + $0xe8] sm:$0xff]
  %v50 = vld [vmem:[%s1 + $0xf0] sm:$0xff]
  %v51 = vld [vmem:[%s1 + $0xf8] sm:$0xff]
  %v54 = vunpack.c.l.b16 %v18
  %v55 = vunpack.c.l.b16 %v19
  %v56 = vpack.c.b16 %v55, %v54
  %v90 = vunpack.c.l.b16 %v20
  %v91 = vunpack.c.h.b16 %v20
  %v92 = vunpack.c.l.b16 %v21
  %v93 = vunpack.c.h.b16 %v21
  %v94 = vunpack.c.l.b16 %v22
  %v95 = vunpack.c.h.b16 %v22
  %v96 = vunpack.c.l.b16 %v23
  %v97 = vunpack.c.h.b16 %v23
  %v98 = vunpack.c.l.b16 %v24
  %v99 = vunpack.c.h.b16 %v24
  %v100 = vunpack.c.l.b16 %v25
  %v101 = vunpack.c.h.b16 %v25
  %v102 = vunpack.c.l.b16 %v26
  %v103 = vunpack.c.h.b16 %v26
  %v104 = vunpack.c.l.b16 %v27
  %v105 = vunpack.c.h.b16 %v27
  %v106 = vunpack.c.l.b16 %v28
  %v107 = vunpack.c.h.b16 %v28
  %v108 = vunpack.c.l.b16 %v29
  %v109 = vunpack.c.h.b16 %v29
  %v110 = vunpack.c.l.b16 %v30
  %v111 = vunpack.c.h.b16 %v30
  %v112 = vunpack.c.l.b16 %v31
  %v113 = vunpack.c.h.b16 %v31
  %v114 = vunpack.c.l.b16 %v32
  %v115 = vunpack.c.h.b16 %v32
  %v116 = vunpack.c.l.b16 %v33
  %v117 = vunpack.c.h.b16 %v33
  %v118 = vunpack.c.l.b16 %v34
  %v119 = vunpack.c.h.b16 %v34
  %v120 = vunpack.c.l.b16 %v35
  %v121 = vunpack.c.h.b16 %v35
  %v122 = vunpack.c.l.b16 %v36
  %v123 = vunpack.c.h.b16 %v36
  %v124 = vunpack.c.l.b16 %v37
  %v125 = vunpack.c.h.b16 %v37
  %v126 = vunpack.c.l.b16 %v38
  %v127 = vunpack.c.h.b16 %v38
  %v128 = vunpack.c.l.b16 %v39
  %v129 = vunpack.c.h.b16 %v39
  %v130 = vunpack.c.l.b16 %v40
  %v131 = vunpack.c.h.b16 %v40
  %v132 = vunpack.c.l.b16 %v41
  %v133 = vunpack.c.h.b16 %v41
  %v134 = vunpack.c.l.b16 %v42
  %v135 = vunpack.c.h.b16 %v42
  %v136 = vunpack.c.l.b16 %v43
  %v137 = vunpack.c.h.b16 %v43
  %v138 = vunpack.c.l.b16 %v44
  %v139 = vunpack.c.h.b16 %v44
  %v140 = vunpack.c.l.b16 %v45
  %v141 = vunpack.c.h.b16 %v45
  %v142 = vunpack.c.l.b16 %v46
  %v143 = vunpack.c.h.b16 %v46
  %v144 = vunpack.c.l.b16 %v47
  %v145 = vunpack.c.h.b16 %v47
  %v146 = vunpack.c.l.b16 %v48
  %v147 = vunpack.c.h.b16 %v48
  %v148 = vunpack.c.l.b16 %v49
  %v149 = vunpack.c.h.b16 %v49
  %v150 = vunpack.c.l.b16 %v50
  %v151 = vunpack.c.h.b16 %v50
  %v152 = vunpack.c.l.b16 %v51
  %v153 = vunpack.c.h.b16 %v51
  %v154 = vpack.c.b16 %v94, %v90
  %v155 = vpack.c.b16 %v95, %v91
  %v156 = vpack.c.b16 %v96, %v92
  %v157 = vpack.c.b16 %v97, %v93
  %v158 = vpack.c.b16 %v102, %v98
  %v159 = vpack.c.b16 %v103, %v99
  %v160 = vpack.c.b16 %v104, %v100
  %v161 = vpack.c.b16 %v105, %v101
  %v162 = vpack.c.b16 %v110, %v106
  %v163 = vpack.c.b16 %v111, %v107
  %v164 = vpack.c.b16 %v112, %v108
  %v165 = vpack.c.b16 %v113, %v109
  %v166 = vpack.c.b16 %v118, %v114
  %v167 = vpack.c.b16 %v119, %v115
  %v168 = vpack.c.b16 %v120, %v116
  %v169 = vpack.c.b16 %v121, %v117
  %v170 = vpack.c.b16 %v126, %v122
  %v171 = vpack.c.b16 %v127, %v123
  %v172 = vpack.c.b16 %v128, %v124
  %v173 = vpack.c.b16 %v129, %v125
  %v174 = vpack.c.b16 %v134, %v130
  %v175 = vpack.c.b16 %v135, %v131
  %v176 = vpack.c.b16 %v136, %v132
  %v177 = vpack.c.b16 %v137, %v133
  %v178 = vpack.c.b16 %v142, %v138
  %v179 = vpack.c.b16 %v143, %v139
  %v180 = vpack.c.b16 %v144, %v140
  %v181 = vpack.c.b16 %v145, %v141
  %v182 = vpack.c.b16 %v150, %v146
  %v183 = vpack.c.b16 %v151, %v147
  %v184 = vpack.c.b16 %v152, %v148
  %v185 = vpack.c.b16 %v153, %v149
  %218 = vmatprep.subr.bf16.mxu0 %v183
  %219 = vmatpush1.bf16.msra.mxu0 %v182
  %220 = vmatprep.subr.bf16.mxu0 %v179
  %221 = vmatpush1.bf16.msra.mxu0 %v178
  %222 = vmatprep.subr.bf16.mxu0 %v175
  %223 = vmatpush1.bf16.msra.mxu0 %v174
  %224 = vmatprep.subr.bf16.mxu0 %v171
  %225 = vmatpush1.bf16.msra.mxu0 %v170
  %226 = vmatprep.subr.bf16.mxu0 %v167
  %227 = vmatpush1.bf16.msra.mxu0 %v166
  %228 = vmatprep.subr.bf16.mxu0 %v163
  %229 = vmatpush1.bf16.msra.mxu0 %v162
  %230 = vmatprep.subr.bf16.mxu0 %v159
  %231 = vmatpush1.bf16.msra.mxu0 %v158
  %232 = vmatprep.subr.bf16.mxu0 %v155
  %233 = vmatpush1.bf16.msra.mxu0 %v154
  %234 = vmatprep.subr.bf16.mxu0 0
  %235 = vmatpush2.bf16.msra.mxu0 0
  %236 = vmatprep.subr.bf16.mxu0 0
  %237 = vmatpush2.bf16.msra.mxu0 0
  %238 = vmatprep.subr.bf16.mxu0 0
  %239 = vmatpush2.bf16.msra.mxu0 0
  %240 = vmatprep.subr.bf16.mxu0 0
  %241 = vmatpush2.bf16.msra.mxu0 0
  %242 = vmatprep.subr.bf16.mxu0 0
  %243 = vmatpush2.bf16.msra.mxu0 0
  %244 = vmatprep.subr.bf16.mxu0 0
  %245 = vmatpush2.bf16.msra.mxu0 0
  %246 = vmatprep.subr.bf16.mxu0 0
  %247 = vmatpush2.bf16.msra.mxu0 0
  %248 = vmatprep.subr.bf16.mxu0 0
  %249 = vmatpush2.bf16.msra.mxu0 0
  %250 = vmatprep.mubr.bf16.mxu0 0
  %251 = vmatmul.mubr.bf16.gmra.mxu0 %v56
  %v252 = vpop.f32.mrf.mxu0
  %v253 = vadd.f32 0.0, %v252
  %v254 = vpop.f32.mrf.mxu0
  %v255 = vadd.f32 0.0, %v254
  %v256 = vpop.f32.mrf.mxu0
  %v257 = vadd.f32 0.0, %v256
  %v258 = vpop.f32.mrf.mxu0
  %v259 = vadd.f32 0.0, %v258
  %260 = vdwg.mxu0
  %261 = vmatprep.subr.bf16.mxu0 %v185
  %262 = vmatpush1.bf16.msra.mxu0 %v184
  %263 = vmatprep.subr.bf16.mxu0 %v181
  %264 = vmatpush1.bf16.msra.mxu0 %v180
  %265 = vmatprep.subr.bf16.mxu0 %v177
  %266 = vmatpush1.bf16.msra.mxu0 %v176
  %267 = vmatprep.subr.bf16.mxu0 %v173
  %268 = vmatpush1.bf16.msra.mxu0 %v172
  %269 = vmatprep.subr.bf16.mxu0 %v169
  %270 = vmatpush1.bf16.msra.mxu0 %v168
  %271 = vmatprep.subr.bf16.mxu0 %v165
  %272 = vmatpush1.bf16.msra.mxu0 %v164
  %273 = vmatprep.subr.bf16.mxu0 %v161
  %274 = vmatpush1.bf16.msra.mxu0 %v160
  %275 = vmatprep.subr.bf16.mxu0 %v157
  %276 = vmatpush1.bf16.msra.mxu0 %v156
  %277 = vmatprep.subr.bf16.mxu0 0
  %278 = vmatpush2.bf16.msra.mxu0 0
  %279 = vmatprep.subr.bf16.mxu0 0
  %280 = vmatpush2.bf16.msra.mxu0 0
  %281 = vmatprep.subr.bf16.mxu0 0
  %282 = vmatpush2.bf16.msra.mxu0 0
  %283 = vmatprep.subr.bf16.mxu0 0
  %284 = vmatpush2.bf16.msra.mxu0 0
  %285 = vmatprep.subr.bf16.mxu0 0
  %286 = vmatpush2.bf16.msra.mxu0 0
  %287 = vmatprep.subr.bf16.mxu0 0
  %288 = vmatpush2.bf16.msra.mxu0 0
  %289 = vmatprep.subr.bf16.mxu0 0
  %290 = vmatpush2.bf16.msra.mxu0 0
  %291 = vmatprep.subr.bf16.mxu0 0
  %292 = vmatpush2.bf16.msra.mxu0 0
  %293 = vmatprep.mubr.bf16.mxu0 0
  %294 = vmatmul.mubr.bf16.gmra.mxu0 %v56
  %v295 = vpop.f32.mrf.mxu0
  %v296 = vadd.f32 0.0, %v295
  %v297 = vpop.f32.mrf.mxu0
  %v298 = vadd.f32 0.0, %v297
  %v299 = vpop.f32.mrf.mxu0
  %v300 = vadd.f32 0.0, %v299
  %v301 = vpop.f32.mrf.mxu0
  %v302 = vadd.f32 0.0, %v301
  %303 = vdwg.mxu0
  %v304 = vadd.f32 %v253, %v255
  %v305 = vadd.f32 %v304, %v296
  %v306 = vadd.f32 %v305, %v298
  %307 = vadd.xlane.f32.xlu0 %v306
  %v308 = vpop.xlane.xlu0 %307
  %v309 = vadd.f32 %v257, %v259
  %v310 = vadd.f32 %v309, %v300
  %v311 = vadd.f32 %v310, %v302
  %312 = vadd.xlane.f32.xlu0 %v311
  %v313 = vpop.xlane.xlu0 %312
  %v314 = vmul.f32 %v308, 0.001953125
  %v315 = vmul.f32 %v313, 0.001953125
  %v316 = vmul.f32 %v253, %v253
  %v317 = vmul.f32 %v255, %v255
  %v318 = vmul.f32 %v296, %v296
  %v319 = vmul.f32 %v298, %v298
  %v320 = vmul.f32 %v257, %v257
  %v321 = vmul.f32 %v259, %v259
  %v322 = vmul.f32 %v300, %v300
  %v323 = vmul.f32 %v302, %v302
  %v324 = vadd.f32 %v316, %v317
  %v325 = vadd.f32 %v324, %v318
  %v326 = vadd.f32 %v325, %v319
  %327 = vadd.xlane.f32.xlu0 %v326
  %v328 = vpop.xlane.xlu0 %327
  %v329 = vadd.f32 %v320, %v321
  %v330 = vadd.f32 %v329, %v322
  %v331 = vadd.f32 %v330, %v323
  %332 = vadd.xlane.f32.xlu0 %v331
  %v333 = vpop.xlane.xlu0 %332
  %v334 = vmul.f32 %v328, 0.001953125
  %v335 = vmul.f32 %v333, 0.001953125
  %v336 = vmul.f32 %v314, %v314
  %v337 = vmul.f32 %v315, %v315
  %v338 = vsub.f32 %v334, %v336
  %v339 = vsub.f32 %v335, %v337
  %v340 = vld [vmem:[%s2] sm:$0xff]
  %v341 = vld [vmem:[%s2 + $0x8] sm:$0xff]
  %v342 = vadd.f32 %v338, 1e-05
  %v343 = vadd.f32 %v339, 1e-05
  %v344 = vrsqrt.pop %v342
  %v345 = vrsqrt.pop %v343
  %v346 = vmul.f32 %v340, %v344
  %v347 = vmul.f32 %v341, %v345
  %v348 = vld [vmem:[%s3] sm:$0xff]
  %v349 = vld [vmem:[%s3 + $0x8] sm:$0xff]
  %v350 = vmul.f32 %v314, %v346
  %v351 = vmul.f32 %v315, %v347
  %v352 = vsub.f32 %v348, %v350
  %v353 = vsub.f32 %v349, %v351
  %355 = vset.pattern.permute.xlu0 0
  %356 = vperm.xlu0 %355, %v346
  %v357 = vpop.permute.xlu0 %356
  %360 = vset.pattern.permute.xlu0 0
  %361 = vperm.xlu0 %360, %v347
  %v362 = vpop.permute.xlu0 %361
  %v364 = vmul.f32 %v253, %v357
  %v365 = vmul.f32 %v255, %v357
  %v366 = vmul.f32 %v296, %v357
  %v367 = vmul.f32 %v298, %v357
  %v368 = vmul.f32 %v257, %v362
  %v369 = vmul.f32 %v259, %v362
  %v370 = vmul.f32 %v300, %v362
  %v371 = vmul.f32 %v302, %v362
  %373 = vset.pattern.permute.xlu0 0
  %374 = vperm.xlu0 %373, %v352
  %v375 = vpop.permute.xlu0 %374
  %378 = vset.pattern.permute.xlu0 0
  %379 = vperm.xlu0 %378, %v353
  %v380 = vpop.permute.xlu0 %379
  %v382 = vadd.f32 %v364, %v375
  %v383 = vadd.f32 %v365, %v375
  %v384 = vadd.f32 %v366, %v375
  %v385 = vadd.f32 %v367, %v375
  %v386 = vadd.f32 %v368, %v380
  %v387 = vadd.f32 %v369, %v380
  %v388 = vadd.f32 %v370, %v380
  %v389 = vadd.f32 %v371, %v380
  %v390 = vmul.f32 %v382, 0.2
  %v391 = vmul.f32 %v383, 0.2
  %v392 = vmul.f32 %v384, 0.2
  %v393 = vmul.f32 %v385, 0.2
  %v394 = vmul.f32 %v386, 0.2
  %v395 = vmul.f32 %v387, 0.2
  %v396 = vmul.f32 %v388, 0.2
  %v397 = vmul.f32 %v389, 0.2
  %v398 = vmax.f32 %v382, %v390
  %v399 = vmax.f32 %v383, %v391
  %v400 = vmax.f32 %v384, %v392
  %v401 = vmax.f32 %v385, %v393
  %v402 = vmax.f32 %v386, %v394
  %v403 = vmax.f32 %v387, %v395
  %v404 = vmax.f32 %v388, %v396
  %v405 = vmax.f32 %v389, %v397
  %v406 = vpack.c.bf16 %v402, %v398
  %v407 = vpack.c.bf16 %v403, %v399
  %v408 = vpack.c.bf16 %v404, %v400
  %v409 = vpack.c.bf16 %v405, %v401
  %v414 = vunpack.c.l.b16 %v406
  %v415 = vunpack.c.l.b16 %v407
  %v416 = vunpack.c.l.b16 %v408
  %v417 = vunpack.c.l.b16 %v409
  %v418 = vunpack.c.h.b16 %v406
  %v419 = vunpack.c.h.b16 %v407
  %v420 = vunpack.c.h.b16 %v408
  %v421 = vunpack.c.h.b16 %v409
  %v422 = vpack.c.b16 %v415, %v414
  %v423 = vpack.c.b16 %v417, %v416
  %v424 = vpack.c.b16 %v419, %v418
  %v425 = vpack.c.b16 %v421, %v420
  %430 = vst [vmem:[%s4] sm:$0xff] %v422
  %431 = vst [vmem:[%s4 + $0x8] sm:$0xff] %v423
  %432 = vst [vmem:[%s4 + $0x10] sm:$0xff] %v424
  %433 = vst [vmem:[%s4 + $0x18] sm:$0xff] %v425
  // Predicated region
  $region18: #{dcgan_discriminator_forward.6} parent=0 // pred_check
    _
  $region19: #{dcgan_discriminator_forward.6} parent=0 // pred_check_branch
    %435 = sbr.rel (0) target = $region21
  $region20: #{dcgan_discriminator_forward.6} parent=0 // pred_region
    _
  $region21: #{dcgan_discriminator_forward.6} parent=0 // pred_fallthru
    _
  // Predicated region
  $region22: #{dcgan_discriminator_forward.6} parent=0 // pred_check
    _
  $region23: #{dcgan_discriminator_forward.6} parent=0 // pred_check_branch
    %437 = sbr.rel (0) target = $region25
  $region24: #{dcgan_discriminator_forward.6} parent=0 // pred_region
    _
  $region25: #{dcgan_discriminator_forward.6} parent=0 // pred_fallthru
    _

// kernel: dcgan_discriminator_forward.7
$region0: #{dcgan_discriminator_forward.7}
  #allocation0 [shape = 'u32[]', space=smem, size = 0x4, offset = 0x4, fixed_abs, tag = 'smem constant byte address 0x4 - core index']
  #allocation1 [shape = 'u32[144,128]{1,0:T(1,128)}', space=vmem, size = 0x12000, scoped, tag = 'internal scratch']
  %s0 = inlined_call_operand.vmem [shape: bf16[32,256], index: 0, kind: input, shape index: {}]
  %s1 = inlined_call_operand.vmem [shape: bf16[256,128], index: 1, kind: input, shape index: {}]
  %s2 = inlined_call_operand.vmem [shape: f32[32,1], index: 2, kind: input, shape index: {}]
  %s3 = inlined_call_operand.vmem [shape: f32[32,1], index: 3, kind: input, shape index: {}]
  %s4 = inlined_call_operand.vmem [shape: bf16[32,128], index: 4, kind: output, shape index: {}]
  %s5 = sld [smem:[#allocation0]]
  $region26: #{dcgan_discriminator_forward.7} parent=0
    _
  %s7 = ssub.s32 1, %s5
  %s8 = scalar_select 0, %s7, %s5
  // Predicated region
  $region2: #{dcgan_discriminator_forward.7} parent=0 // pred_check
    _
  $region3: #{dcgan_discriminator_forward.7} parent=0 // pred_check_branch
    %10 = sbr.rel (0) target = $region5
  $region4: #{dcgan_discriminator_forward.7} parent=0 // pred_region
    _
  $region5: #{dcgan_discriminator_forward.7} parent=0 // pred_fallthru
    _
  // Predicated region
  $region6: #{dcgan_discriminator_forward.7} parent=0 // pred_check
    _
  $region7: #{dcgan_discriminator_forward.7} parent=0 // pred_check_branch
    %12 = sbr.rel (0) target = $region9
  $region8: #{dcgan_discriminator_forward.7} parent=0 // pred_region
    _
  $region9: #{dcgan_discriminator_forward.7} parent=0 // pred_fallthru
    _
  // Predicated region
  $region10: #{dcgan_discriminator_forward.7} parent=0 // pred_check
    _
  $region11: #{dcgan_discriminator_forward.7} parent=0 // pred_check_branch
    %14 = sbr.rel (0) target = $region13
  $region12: #{dcgan_discriminator_forward.7} parent=0 // pred_region
    _
  $region13: #{dcgan_discriminator_forward.7} parent=0 // pred_fallthru
    _
  // Predicated region
  $region14: #{dcgan_discriminator_forward.7} parent=0 // pred_check
    _
  $region15: #{dcgan_discriminator_forward.7} parent=0 // pred_check_branch
    %16 = sbr.rel (0) target = $region17
  $region16: #{dcgan_discriminator_forward.7} parent=0 // pred_region
    _
  $region17: #{dcgan_discriminator_forward.7} parent=0 // pred_fallthru
    _
  %v18 = vld [vmem:[%s0] sm:$0xff]
  %v19 = vld [vmem:[%s0 + $0x8] sm:$0xff]
  %v20 = vld [vmem:[%s0 + $0x10] sm:$0xff]
  %v21 = vld [vmem:[%s0 + $0x18] sm:$0xff]
  %v22 = vld [vmem:[%s1] sm:$0xf]
  %v23 = vld [vmem:[%s1 + $0x4] sm:$0xf]
  %v24 = vld [vmem:[%s1 + $0x8] sm:$0xf]
  %v25 = vld [vmem:[%s1 + $0xc] sm:$0xf]
  %v26 = vld [vmem:[%s1 + $0x10] sm:$0xf]
  %v27 = vld [vmem:[%s1 + $0x14] sm:$0xf]
  %v28 = vld [vmem:[%s1 + $0x18] sm:$0xf]
  %v29 = vld [vmem:[%s1 + $0x1c] sm:$0xf]
  %v30 = vld [vmem:[%s1 + $0x20] sm:$0xf]
  %v31 = vld [vmem:[%s1 + $0x24] sm:$0xf]
  %v32 = vld [vmem:[%s1 + $0x28] sm:$0xf]
  %v33 = vld [vmem:[%s1 + $0x2c] sm:$0xf]
  %v34 = vld [vmem:[%s1 + $0x30] sm:$0xf]
  %v35 = vld [vmem:[%s1 + $0x34] sm:$0xf]
  %v36 = vld [vmem:[%s1 + $0x38] sm:$0xf]
  %v37 = vld [vmem:[%s1 + $0x3c] sm:$0xf]
  %v38 = vld [vmem:[%s1 + $0x40] sm:$0xf]
  %v39 = vld [vmem:[%s1 + $0x44] sm:$0xf]
  %v40 = vld [vmem:[%s1 + $0x48] sm:$0xf]
  %v41 = vld [vmem:[%s1 + $0x4c] sm:$0xf]
  %v42 = vld [vmem:[%s1 + $0x50] sm:$0xf]
  %v43 = vld [vmem:[%s1 + $0x54] sm:$0xf]
  %v44 = vld [vmem:[%s1 + $0x58] sm:$0xf]
  %v45 = vld [vmem:[%s1 + $0x5c] sm:$0xf]
  %v46 = vld [vmem:[%s1 + $0x60] sm:$0xf]
  %v47 = vld [vmem:[%s1 + $0x64] sm:$0xf]
  %v48 = vld [vmem:[%s1 + $0x68] sm:$0xf]
  %v49 = vld [vmem:[%s1 + $0x6c] sm:$0xf]
  %v50 = vld [vmem:[%s1 + $0x70] sm:$0xf]
  %v51 = vld [vmem:[%s1 + $0x74] sm:$0xf]
  %v52 = vld [vmem:[%s1 + $0x78] sm:$0xf]
  %v53 = vld [vmem:[%s1 + $0x7c] sm:$0xf]
  %v58 = vunpack.c.l.b16 %v18
  %v59 = vunpack.c.h.b16 %v18
  %v60 = vunpack.c.l.b16 %v19
  %v61 = vunpack.c.h.b16 %v19
  %v62 = vunpack.c.l.b16 %v20
  %v63 = vunpack.c.h.b16 %v20
  %v64 = vunpack.c.l.b16 %v21
  %v65 = vunpack.c.h.b16 %v21
  %v66 = vpack.c.b16 %v60, %v58
  %v67 = vpack.c.b16 %v61, %v59
  %v68 = vpack.c.b16 %v64, %v62
  %v69 = vpack.c.b16 %v65, %v63
  %v106 = vunpack.c.l.b16 %v22
  %v107 = vunpack.c.l.b16 %v23
  %v108 = vunpack.c.l.b16 %v24
  %v109 = vunpack.c.l.b16 %v25
  %v110 = vunpack.c.l.b16 %v26
  %v111 = vunpack.c.l.b16 %v27
  %v112 = vunpack.c.l.b16 %v28
  %v113 = vunpack.c.l.b16 %v29
  %v114 = vunpack.c.l.b16 %v30
  %v115 = vunpack.c.l.b16 %v31
  %v116 = vunpack.c.l.b16 %v32
  %v117 = vunpack.c.l.b16 %v33
  %v118 = vunpack.c.l.b16 %v34
  %v119 = vunpack.c.l.b16 %v35
  %v120 = vunpack.c.l.b16 %v36
  %v121 = vunpack.c.l.b16 %v37
  %v122 = vunpack.c.l.b16 %v38
  %v123 = vunpack.c.l.b16 %v39
  %v124 = vunpack.c.l.b16 %v40
  %v125 = vunpack.c.l.b16 %v41
  %v126 = vunpack.c.l.b16 %v42
  %v127 = vunpack.c.l.b16 %v43
  %v128 = vunpack.c.l.b16 %v44
  %v129 = vunpack.c.l.b16 %v45
  %v130 = vunpack.c.l.b16 %v46
  %v131 = vunpack.c.l.b16 %v47
  %v132 = vunpack.c.l.b16 %v48
  %v133 = vunpack.c.l.b16 %v49
  %v134 = vunpack.c.l.b16 %v50
  %v135 = vunpack.c.l.b16 %v51
  %v136 = vunpack.c.l.b16 %v52
  %v137 = vunpack.c.l.b16 %v53
  %v138 = vpack.c.b16 %v107, %v106
  %v139 = vpack.c.b16 %v109, %v108
  %v140 = vpack.c.b16 %v111, %v110
  %v141 = vpack.c.b16 %v113, %v112
  %v142 = vpack.c.b16 %v115, %v114
  %v143 = vpack.c.b16 %v117, %v116
  %v144 = vpack.c.b16 %v119, %v118
  %v145 = vpack.c.b16 %v121, %v120
  %v146 = vpack.c.b16 %v123, %v122
  %v147 = vpack.c.b16 %v125, %v124
  %v148 = vpack.c.b16 %v127, %v126
  %v149 = vpack.c.b16 %v129, %v128
  %v150 = vpack.c.b16 %v131, %v130
  %v151 = vpack.c.b16 %v133, %v132
  %v152 = vpack.c.b16 %v135, %v134
  %v153 = vpack.c.b16 %v137, %v136
  %170 = vmatprep.subr.bf16.mxu0 0
  %171 = vmatpush1.bf16.msra.mxu0 %v145
  %172 = vmatprep.subr.bf16.mxu0 0
  %173 = vmatpush1.bf16.msra.mxu0 %v144
  %174 = vmatprep.subr.bf16.mxu0 0
  %175 = vmatpush1.bf16.msra.mxu0 %v143
  %176 = vmatprep.subr.bf16.mxu0 0
  %177 = vmatpush1.bf16.msra.mxu0 %v142
  %178 = vmatprep.subr.bf16.mxu0 0
  %179 = vmatpush1.bf16.msra.mxu0 %v141
  %180 = vmatprep.subr.bf16.mxu0 0
  %181 = vmatpush1.bf16.msra.mxu0 %v140
  %182 = vmatprep.subr.bf16.mxu0 0
  %183 = vmatpush1.bf16.msra.mxu0 %v139
  %184 = vmatprep.subr.bf16.mxu0 0
  %185 = vmatpush1.bf16.msra.mxu0 %v138
  %186 = vmatprep.subr.bf16.mxu0 0
  %187 = vmatpush2.bf16.msra.mxu0 %v153
  %188 = vmatprep.subr.bf16.mxu0 0
  %189 = vmatpush2.bf16.msra.mxu0 %v152
  %190 = vmatprep.subr.bf16.mxu0 0
  %191 = vmatpush2.bf16.msra.mxu0 %v151
  %192 = vmatprep.subr.bf16.mxu0 0
  %193 = vmatpush2.bf16.msra.mxu0 %v150
  %194 = vmatprep.subr.bf16.mxu0 0
  %195 = vmatpush2.bf16.msra.mxu0 %v149
  %196 = vmatprep.subr.bf16.mxu0 0
  %197 = vmatpush2.bf16.msra.mxu0 %v148
  %198 = vmatprep.subr.bf16.mxu0 0
  %199 = vmatpush2.bf16.msra.mxu0 %v147
  %200 = vmatprep.subr.bf16.mxu0 0
  %201 = vmatpush2.bf16.msra.mxu0 %v146
  %202 = vmatprep.mubr.bf16.mxu0 %v67
  %203 = vmatmul.mubr.bf16.gmra.mxu0 %v66
  %v204 = vpop.f32.mrf.mxu0
  %v205 = vadd.f32 0.0, %v204
  %v206 = vpop.f32.mrf.mxu0
  %v207 = vpop.f32.mrf.mxu0
  %v208 = vadd.f32 0.0, %v207
  %v209 = vpop.f32.mrf.mxu0
  %210 = vmatprep.mubr.bf16.mxu0 %v69
  %211 = vmatmul.mubr.bf16.gmra.mxu0 %v68
  %v212 = vpop.f32.mrf.mxu0
  %v213 = vadd.f32 0.0, %v212
  %v214 = vpop.f32.mrf.mxu0
  %v215 = vpop.f32.mrf.mxu0
  %v216 = vadd.f32 0.0, %v215
  %v217 = vpop.f32.mrf.mxu0
  %218 = vdwg.mxu0
  %219 = vadd.xlane.f32.xlu0 %v205
  %v220 = vpop.xlane.xlu0 %219
  %221 = vadd.xlane.f32.xlu0 %v208
  %v222 = vpop.xlane.xlu0 %221
  %223 = vadd.xlane.f32.xlu0 %v213
  %v224 = vpop.xlane.xlu0 %223
  %225 = vadd.xlane.f32.xlu0 %v216
  %v226 = vpop.xlane.xlu0 %225
  %v227 = vmul.f32 %v220, 0.0078125
  %v228 = vmul.f32 %v222, 0.0078125
  %v229 = vmul.f32 %v224, 0.0078125
  %v230 = vmul.f32 %v226, 0.0078125
  %v231 = vmul.f32 %v205, %v205
  %v232 = vmul.f32 %v208, %v208
  %v233 = vmul.f32 %v213, %v213
  %v234 = vmul.f32 %v216, %v216
  %235 = vadd.xlane.f32.xlu0 %v231
  %v236 = vpop.xlane.xlu0 %235
  %237 = vadd.xlane.f32.xlu0 %v232
  %v238 = vpop.xlane.xlu0 %237
  %239 = vadd.xlane.f32.xlu0 %v233
  %v240 = vpop.xlane.xlu0 %239
  %241 = vadd.xlane.f32.xlu0 %v234
  %v242 = vpop.xlane.xlu0 %241
  %v243 = vmul.f32 %v236, 0.0078125
  %v244 = vmul.f32 %v238, 0.0078125
  %v245 = vmul.f32 %v240, 0.0078125
  %v246 = vmul.f32 %v242, 0.0078125
  %v247 = vmul.f32 %v227, %v227
  %v248 = vmul.f32 %v228, %v228
  %v249 = vmul.f32 %v229, %v229
  %v250 = vmul.f32 %v230, %v230
  %v251 = vsub.f32 %v243, %v247
  %v252 = vsub.f32 %v244, %v248
  %v253 = vsub.f32 %v245, %v249
  %v254 = vsub.f32 %v246, %v250
  %v255 = vld [vmem:[%s2] sm:$0xff]
  %v256 = vld [vmem:[%s2 + $0x8] sm:$0xff]
  %v257 = vld [vmem:[%s2 + $0x10] sm:$0xff]
  %v258 = vld [vmem:[%s2 + $0x18] sm:$0xff]
  %v259 = vadd.f32 %v251, 1e-05
  %v260 = vadd.f32 %v252, 1e-05
  %v261 = vadd.f32 %v253, 1e-05
  %v262 = vadd.f32 %v254, 1e-05
  %v263 = vrsqrt.pop %v259
  %v264 = vrsqrt.pop %v260
  %v265 = vrsqrt.pop %v261
  %v266 = vrsqrt.pop %v262
  %v267 = vmul.f32 %v255, %v263
  %v268 = vmul.f32 %v256, %v264
  %v269 = vmul.f32 %v257, %v265
  %v270 = vmul.f32 %v258, %v266
  %v271 = vld [vmem:[%s3] sm:$0xff]
  %v272 = vld [vmem:[%s3 + $0x8] sm:$0xff]
  %v273 = vld [vmem:[%s3 + $0x10] sm:$0xff]
  %v274 = vld [vmem:[%s3 + $0x18] sm:$0xff]
  %v275 = vmul.f32 %v227, %v267
  %v276 = vmul.f32 %v228, %v268
  %v277 = vmul.f32 %v229, %v269
  %v278 = vmul.f32 %v230, %v270
  %v279 = vsub.f32 %v271, %v275
  %v280 = vsub.f32 %v272, %v276
  %v281 = vsub.f32 %v273, %v277
  %v282 = vsub.f32 %v274, %v278
  %284 = vset.pattern.permute.xlu0 0
  %285 = vperm.xlu0 %284, %v267
  %v286 = vpop.permute.xlu0 %285
  %289 = vset.pattern.permute.xlu0 0
  %290 = vperm.xlu0 %289, %v268
  %v291 = vpop.permute.xlu0 %290
  %294 = vset.pattern.permute.xlu0 0
  %295 = vperm.xlu0 %294, %v269
  %v296 = vpop.permute.xlu0 %295
  %299 = vset.pattern.permute.xlu0 0
  %300 = vperm.xlu0 %299, %v270
  %v301 = vpop.permute.xlu0 %300
  %v303 = vmul.f32 %v205, %v286
  %v304 = vmul.f32 %v208, %v291
  %v305 = vmul.f32 %v213, %v296
  %v306 = vmul.f32 %v216, %v301
  %308 = vset.pattern.permute.xlu0 0
  %309 = vperm.xlu0 %308, %v279
  %v310 = vpop.permute.xlu0 %309
  %313 = vset.pattern.permute.xlu0 0
  %314 = vperm.xlu0 %313, %v280
  %v315 = vpop.permute.xlu0 %314
  %318 = vset.pattern.permute.xlu0 0
  %319 = vperm.xlu0 %318, %v281
  %v320 = vpop.permute.xlu0 %319
  %323 = vset.pattern.permute.xlu0 0
  %324 = vperm.xlu0 %323, %v282
  %v325 = vpop.permute.xlu0 %324
  %v327 = vadd.f32 %v303, %v310
  %v328 = vadd.f32 %v304, %v315
  %v329 = vadd.f32 %v305, %v320
  %v330 = vadd.f32 %v306, %v325
  %v331 = vmul.f32 %v327, 0.2
  %v332 = vmul.f32 %v328, 0.2
  %v333 = vmul.f32 %v329, 0.2
  %v334 = vmul.f32 %v330, 0.2
  %v335 = vmax.f32 %v327, %v331
  %v336 = vmax.f32 %v328, %v332
  %v337 = vmax.f32 %v329, %v333
  %v338 = vmax.f32 %v330, %v334
  %v339 = vpack.c.bf16 %v336, %v335
  %v340 = vpack.c.bf16 %v338, %v337
  %v343 = vunpack.c.l.b16 %v339
  %v344 = vunpack.c.h.b16 %v339
  %v345 = vunpack.c.l.b16 %v340
  %v346 = vunpack.c.h.b16 %v340
  %v347 = vpack.c.b16 %v343, %v343
  %v348 = vpack.c.b16 %v344, %v344
  %v349 = vpack.c.b16 %v345, %v345
  %v350 = vpack.c.b16 %v346, %v346
  %355 = vst [vmem:[%s4] sm:$0xf] %v347
  %356 = vst [vmem:[%s4 + $0x4] sm:$0xf] %v348
  %357 = vst [vmem:[%s4 + $0x8] sm:$0xf] %v349
  %358 = vst [vmem:[%s4 + $0xc] sm:$0xf] %v350
  // Predicated region
  $region18: #{dcgan_discriminator_forward.7} parent=0 // pred_check
    _
  $region19: #{dcgan_discriminator_forward.7} parent=0 // pred_check_branch
    %360 = sbr.rel (0) target = $region21
  $region20: #{dcgan_discriminator_forward.7} parent=0 // pred_region
    _
  $region21: #{dcgan_discriminator_forward.7} parent=0 // pred_fallthru
    _
  // Predicated region
  $region22: #{dcgan_discriminator_forward.7} parent=0 // pred_check
    _
  $region23: #{dcgan_discriminator_forward.7} parent=0 // pred_check_branch
    %362 = sbr.rel (0) target = $region25
  $region24: #{dcgan_discriminator_forward.7} parent=0 // pred_region
    _
  $region25: #{dcgan_discriminator_forward.7} parent=0 // pred_fallthru
    _

// kernel: dcgan_discriminator_forward.8
$region0: #{dcgan_discriminator_forward.8}
  #allocation0 [shape = 'u32[]', space=smem, size = 0x4, offset = 0x4, fixed_abs, tag = 'smem constant byte address 0x4 - core index']
  #allocation1 [shape = 'u32[144,128]{1,0:T(1,128)}', space=vmem, size = 0x12000, scoped, tag = 'internal scratch']
  %s0 = inlined_call_operand.vmem [shape: bf16[64,512], index: 0, kind: input, shape index: {}]
  %s1 = inlined_call_operand.vmem [shape: bf16[512,32], index: 1, kind: input, shape index: {}]
  %s2 = inlined_call_operand.vmem [shape: f32[64,1], index: 2, kind: input, shape index: {}]
  %s3 = inlined_call_operand.vmem [shape: f32[64,1], index: 3, kind: input, shape index: {}]
  %s4 = inlined_call_operand.vmem [shape: bf16[64,32], index: 4, kind: output, shape index: {}]
  %s5 = sld [smem:[#allocation0]]
  $region26: #{dcgan_discriminator_forward.8} parent=0
    _
  %s7 = ssub.s32 1, %s5
  %s8 = scalar_select 0, %s7, %s5
  // Predicated region
  $region2: #{dcgan_discriminator_forward.8} parent=0 // pred_check
    _
  $region3: #{dcgan_discriminator_forward.8} parent=0 // pred_check_branch
    %10 = sbr.rel (0) target = $region5
  $region4: #{dcgan_discriminator_forward.8} parent=0 // pred_region
    _
  $region5: #{dcgan_discriminator_forward.8} parent=0 // pred_fallthru
    _
  // Predicated region
  $region6: #{dcgan_discriminator_forward.8} parent=0 // pred_check
    _
  $region7: #{dcgan_discriminator_forward.8} parent=0 // pred_check_branch
    %12 = sbr.rel (0) target = $region9
  $region8: #{dcgan_discriminator_forward.8} parent=0 // pred_region
    _
  $region9: #{dcgan_discriminator_forward.8} parent=0 // pred_fallthru
    _
  // Predicated region
  $region10: #{dcgan_discriminator_forward.8} parent=0 // pred_check
    _
  $region11: #{dcgan_discriminator_forward.8} parent=0 // pred_check_branch
    %14 = sbr.rel (0) target = $region13
  $region12: #{dcgan_discriminator_forward.8} parent=0 // pred_region
    _
  $region13: #{dcgan_discriminator_forward.8} parent=0 // pred_fallthru
    _
  // Predicated region
  $region14: #{dcgan_discriminator_forward.8} parent=0 // pred_check
    _
  $region15: #{dcgan_discriminator_forward.8} parent=0 // pred_check_branch
    %16 = sbr.rel (0) target = $region17
  $region16: #{dcgan_discriminator_forward.8} parent=0 // pred_region
    _
  $region17: #{dcgan_discriminator_forward.8} parent=0 // pred_fallthru
    _
  %v18 = vld [vmem:[%s0] sm:$0xff]
  %v19 = vld [vmem:[%s0 + $0x8] sm:$0xff]
  %v20 = vld [vmem:[%s0 + $0x10] sm:$0xff]
  %v21 = vld [vmem:[%s0 + $0x18] sm:$0xff]
  %v22 = vld [vmem:[%s0 + $0x20] sm:$0xff]
  %v23 = vld [vmem:[%s0 + $0x28] sm:$0xff]
  %v24 = vld [vmem:[%s0 + $0x30] sm:$0xff]
  %v25 = vld [vmem:[%s0 + $0x38] sm:$0xff]
  %v26 = vld [vmem:[%s0 + $0x40] sm:$0xff]
  %v27 = vld [vmem:[%s0 + $0x48] sm:$0xff]
  %v28 = vld [vmem:[%s0 + $0x50] sm:$0xff]
  %v29 = vld [vmem:[%s0 + $0x58] sm:$0xff]
  %v30 = vld [vmem:[%s0 + $0x60] sm:$0xff]
  %v31 = vld [vmem:[%s0 + $0x68] sm:$0xff]
  %v32 = vld [vmem:[%s0 + $0x70] sm:$0xff]
  %v33 = vld [vmem:[%s0 + $0x78] sm:$0xff]
  %v34 = vld [vmem:[%s1] sm:$0xf]
  %v35 = vld [vmem:[%s1 + $0x4] sm:$0xf]
  %v36 = vld [vmem:[%s1 + $0x8] sm:$0xf]
  %v37 = vld [vmem:[%s1 + $0xc] sm:$0xf]
  %v38 = vld [vmem:[%s1 + $0x10] sm:$0xf]
  %v39 = vld [vmem:[%s1 + $0x14] sm:$0xf]
  %v40 = vld [vmem:[%s1 + $0x18] sm:$0xf]
  %v41 = vld [vmem:[%s1 + $0x1c] sm:$0xf]
  %v42 = vld [vmem:[%s1 + $0x20] sm:$0xf]
  %v43 = vld [vmem:[%s1 + $0x24] sm:$0xf]
  %v44 = vld [vmem:[%s1 + $0x28] sm:$0xf]
  %v45 = vld [vmem:[%s1 + $0x2c] sm:$0xf]
  %v46 = vld [vmem:[%s1 + $0x30] sm:$0xf]
  %v47 = vld [vmem:[%s1 + $0x34] sm:$0xf]
  %v48 = vld [vmem:[%s1 + $0x38] sm:$0xf]
  %v49 = vld [vmem:[%s1 + $0x3c] sm:$0xf]
  %v50 = vld [vmem:[%s1 + $0x40] sm:$0xf]
  %v51 = vld [vmem:[%s1 + $0x44] sm:$0xf]
  %v52 = vld [vmem:[%s1 + $0x48] sm:$0xf]
  %v53 = vld [vmem:[%s1 + $0x4c] sm:$0xf]
  %v54 = vld [vmem:[%s1 + $0x50] sm:$0xf]
  %v55 = vld [vmem:[%s1 + $0x54] sm:$0xf]
  %v56 = vld [vmem:[%s1 + $0x58] sm:$0xf]
  %v57 = vld [vmem:[%s1 + $0x5c] sm:$0xf]
  %v58 = vld [vmem:[%s1 + $0x60] sm:$0xf]
  %v59 = vld [vmem:[%s1 + $0x64] sm:$0xf]
  %v60 = vld [vmem:[%s1 + $0x68] sm:$0xf]
  %v61 = vld [vmem:[%s1 + $0x6c] sm:$0xf]
  %v62 = vld [vmem:[%s1 + $0x70] sm:$0xf]
  %v63 = vld [vmem:[%s1 + $0x74] sm:$0xf]
  %v64 = vld [vmem:[%s1 + $0x78] sm:$0xf]
  %v65 = vld [vmem:[%s1 + $0x7c] sm:$0xf]
  %v66 = vld [vmem:[%s1 + $0x80] sm:$0xf]
  %v67 = vld [vmem:[%s1 + $0x84] sm:$0xf]
  %v68 = vld [vmem:[%s1 + $0x88] sm:$0xf]
  %v69 = vld [vmem:[%s1 + $0x8c] sm:$0xf]
  %v70 = vld [vmem:[%s1 + $0x90] sm:$0xf]
  %v71 = vld [vmem:[%s1 + $0x94] sm:$0xf]
  %v72 = vld [vmem:[%s1 + $0x98] sm:$0xf]
  %v73 = vld [vmem:[%s1 + $0x9c] sm:$0xf]
  %v74 = vld [vmem:[%s1 + $0xa0] sm:$0xf]
  %v75 = vld [vmem:[%s1 + $0xa4] sm:$0xf]
  %v76 = vld [vmem:[%s1 + $0xa8] sm:$0xf]
  %v77 = vld [vmem:[%s1 + $0xac] sm:$0xf]
  %v78 = vld [vmem:[%s1 + $0xb0] sm:$0xf]
  %v79 = vld [vmem:[%s1 + $0xb4] sm:$0xf]
  %v80 = vld [vmem:[%s1 + $0xb8] sm:$0xf]
  %v81 = vld [vmem:[%s1 + $0xbc] sm:$0xf]
  %v82 = vld [vmem:[%s1 + $0xc0] sm:$0xf]
  %v83 = vld [vmem:[%s1 + $0xc4] sm:$0xf]
  %v84 = vld [vmem:[%s1 + $0xc8] sm:$0xf]
  %v85 = vld [vmem:[%s1 + $0xcc] sm:$0xf]
  %v86 = vld [vmem:[%s1 + $0xd0] sm:$0xf]
  %v87 = vld [vmem:[%s1 + $0xd4] sm:$0xf]
  %v88 = vld [vmem:[%s1 + $0xd8] sm:$0xf]
  %v89 = vld [vmem:[%s1 + $0xdc] sm:$0xf]
  %v90 = vld [vmem:[%s1 + $0xe0] sm:$0xf]
  %v91 = vld [vmem:[%s1 + $0xe4] sm:$0xf]
  %v92 = vld [vmem:[%s1 + $0xe8] sm:$0xf]
  %v93 = vld [vmem:[%s1 + $0xec] sm:$0xf]
  %v94 = vld [vmem:[%s1 + $0xf0] sm:$0xf]
  %v95 = vld [vmem:[%s1 + $0xf4] sm:$0xf]
  %v96 = vld [vmem:[%s1 + $0xf8] sm:$0xf]
  %v97 = vld [vmem:[%s1 + $0xfc] sm:$0xf]
  %v114 = vunpack.c.l.b16 %v18
  %v115 = vunpack.c.h.b16 %v18
  %v116 = vunpack.c.l.b16 %v19
  %v117 = vunpack.c.h.b16 %v19
  %v118 = vunpack.c.l.b16 %v20
  %v119 = vunpack.c.h.b16 %v20
  %v120 = vunpack.c.l.b16 %v21
  %v121 = vunpack.c.h.b16 %v21
  %v122 = vunpack.c.l.b16 %v22
  %v123 = vunpack.c.h.b16 %v22
  %v124 = vunpack.c.l.b16 %v23
  %v125 = vunpack.c.h.b16 %v23
  %v126 = vunpack.c.l.b16 %v24
  %v127 = vunpack.c.h.b16 %v24
  %v128 = vunpack.c.l.b16 %v25
  %v129 = vunpack.c.h.b16 %v25
  %v130 = vunpack.c.l.b16 %v26
  %v131 = vunpack.c.h.b16 %v26
  %v132 = vunpack.c.l.b16 %v27
  %v133 = vunpack.c.h.b16 %v27
  %v134 = vunpack.c.l.b16 %v28
  %v135 = vunpack.c.h.b16 %v28
  %v136 = vunpack.c.l.b16 %v29
  %v137 = vunpack.c.h.b16 %v29
  %v138 = vunpack.c.l.b16 %v30
  %v139 = vunpack.c.h.b16 %v30
  %v140 = vunpack.c.l.b16 %v31
  %v141 = vunpack.c.h.b16 %v31
  %v142 = vunpack.c.l.b16 %v32
  %v143 = vunpack.c.h.b16 %v32
  %v144 = vunpack.c.l.b16 %v33
  %v145 = vunpack.c.h.b16 %v33
  %v146 = vpack.c.b16 %v118, %v114
  %v147 = vpack.c.b16 %v119, %v115
  %v148 = vpack.c.b16 %v120, %v116
  %v149 = vpack.c.b16 %v121, %v117
  %v150 = vpack.c.b16 %v126, %v122
  %v151 = vpack.c.b16 %v127, %v123
  %v152 = vpack.c.b16 %v128, %v124
  %v153 = vpack.c.b16 %v129, %v125
  %v154 = vpack.c.b16 %v134, %v130
  %v155 = vpack.c.b16 %v135, %v131
  %v156 = vpack.c.b16 %v136, %v132
  %v157 = vpack.c.b16 %v137, %v133
  %v158 = vpack.c.b16 %v142, %v138
  %v159 = vpack.c.b16 %v143, %v139
  %v160 = vpack.c.b16 %v144, %v140
  %v161 = vpack.c.b16 %v145, %v141
  %v242 = vunpack.c.l.b16 %v34
  %v243 = vunpack.c.l.b16 %v35
  %v244 = vunpack.c.l.b16 %v36
  %v245 = vunpack.c.l.b16 %v37
  %v246 = vunpack.c.l.b16 %v38
  %v247 = vunpack.c.l.b16 %v39
  %v248 = vunpack.c.l.b16 %v40
  %v249 = vunpack.c.l.b16 %v41
  %v250 = vunpack.c.l.b16 %v42
  %v251 = vunpack.c.l.b16 %v43
  %v252 = vunpack.c.l.b16 %v44
  %v253 = vunpack.c.l.b16 %v45
  %v254 = vunpack.c.l.b16 %v46
  %v255 = vunpack.c.l.b16 %v47
  %v256 = vunpack.c.l.b16 %v48
  %v257 = vunpack.c.l.b16 %v49
  %v258 = vunpack.c.l.b16 %v50
  %v259 = vunpack.c.l.b16 %v51
  %v260 = vunpack.c.l.b16 %v52
  %v261 = vunpack.c.l.b16 %v53
  %v262 = vunpack.c.l.b16 %v54
  %v263 = vunpack.c.l.b16 %v55
  %v264 = vunpack.c.l.b16 %v56
  %v265 = vunpack.c.l.b16 %v57
  %v266 = vunpack.c.l.b16 %v58
  %v267 = vunpack.c.l.b16 %v59
  %v268 = vunpack.c.l.b16 %v60
  %v269 = vunpack.c.l.b16 %v61
  %v270 = vunpack.c.l.b16 %v62
  %v271 = vunpack.c.l.b16 %v63
  %v272 = vunpack.c.l.b16 %v64
  %v273 = vunpack.c.l.b16 %v65
  %v274 = vunpack.c.l.b16 %v66
  %v275 = vunpack.c.l.b16 %v67
  %v276 = vunpack.c.l.b16 %v68
  %v277 = vunpack.c.l.b16 %v69
  %v278 = vunpack.c.l.b16 %v70
  %v279 = vunpack.c.l.b16 %v71
  %v280 = vunpack.c.l.b16 %v72
  %v281 = vunpack.c.l.b16 %v73
  %v282 = vunpack.c.l.b16 %v74
  %v283 = vunpack.c.l.b16 %v75
  %v284 = vunpack.c.l.b16 %v76
  %v285 = vunpack.c.l.b16 %v77
  %v286 = vunpack.c.l.b16 %v78
  %v287 = vunpack.c.l.b16 %v79
  %v288 = vunpack.c.l.b16 %v80
  %v289 = vunpack.c.l.b16 %v81
  %v290 = vunpack.c.l.b16 %v82
  %v291 = vunpack.c.l.b16 %v83
  %v292 = vunpack.c.l.b16 %v84
  %v293 = vunpack.c.l.b16 %v85
  %v294 = vunpack.c.l.b16 %v86
  %v295 = vunpack.c.l.b16 %v87
  %v296 = vunpack.c.l.b16 %v88
  %v297 = vunpack.c.l.b16 %v89
  %v298 = vunpack.c.l.b16 %v90
  %v299 = vunpack.c.l.b16 %v91
  %v300 = vunpack.c.l.b16 %v92
  %v301 = vunpack.c.l.b16 %v93
  %v302 = vunpack.c.l.b16 %v94
  %v303 = vunpack.c.l.b16 %v95
  %v304 = vunpack.c.l.b16 %v96
  %v305 = vunpack.c.l.b16 %v97
  %v306 = vpack.c.b16 %v243, %v242
  %v307 = vpack.c.b16 %v245, %v244
  %v308 = vpack.c.b16 %v247, %v246
  %v309 = vpack.c.b16 %v249, %v248
  %v310 = vpack.c.b16 %v251, %v250
  %v311 = vpack.c.b16 %v253, %v252
  %v312 = vpack.c.b16 %v255, %v254
  %v313 = vpack.c.b16 %v257, %v256
  %v314 = vpack.c.b16 %v259, %v258
  %v315 = vpack.c.b16 %v261, %v260
  %v316 = vpack.c.b16 %v263, %v262
  %v317 = vpack.c.b16 %v265, %v264
  %v318 = vpack.c.b16 %v267, %v266
  %v319 = vpack.c.b16 %v269, %v268
  %v320 = vpack.c.b16 %v271, %v270
  %v321 = vpack.c.b16 %v273, %v272
  %v322 = vpack.c.b16 %v275, %v274
  %v323 = vpack.c.b16 %v277, %v276
  %v324 = vpack.c.b16 %v279, %v278
  %v325 = vpack.c.b16 %v281, %v280
  %v326 = vpack.c.b16 %v283, %v282
  %v327 = vpack.c.b16 %v285, %v284
  %v328 = vpack.c.b16 %v287, %v286
  %v329 = vpack.c.b16 %v289, %v288
  %v330 = vpack.c.b16 %v291, %v290
  %v331 = vpack.c.b16 %v293, %v292
  %v332 = vpack.c.b16 %v295, %v294
  %v333 = vpack.c.b16 %v297, %v296
  %v334 = vpack.c.b16 %v299, %v298
  %v335 = vpack.c.b16 %v301, %v300
  %v336 = vpack.c.b16 %v303, %v302
  %v337 = vpack.c.b16 %v305, %v304
  %370 = vmatprep.subr.bf16.mxu0 0
  %371 = vmatpush1.bf16.msra.mxu0 %v313
  %372 = vmatprep.subr.bf16.mxu0 0
  %373 = vmatpush1.bf16.msra.mxu0 %v312
  %374 = vmatprep.subr.bf16.mxu0 0
  %375 = vmatpush1.bf16.msra.mxu0 %v311
  %376 = vmatprep.subr.bf16.mxu0 0
  %377 = vmatpush1.bf16.msra.mxu0 %v310
  %378 = vmatprep.subr.bf16.mxu0 0
  %379 = vmatpush1.bf16.msra.mxu0 %v309
  %380 = vmatprep.subr.bf16.mxu0 0
  %381 = vmatpush1.bf16.msra.mxu0 %v308
  %382 = vmatprep.subr.bf16.mxu0 0
  %383 = vmatpush1.bf16.msra.mxu0 %v307
  %384 = vmatprep.subr.bf16.mxu0 0
  %385 = vmatpush1.bf16.msra.mxu0 %v306
  %386 = vmatprep.subr.bf16.mxu0 0
  %387 = vmatpush2.bf16.msra.mxu0 %v321
  %388 = vmatprep.subr.bf16.mxu0 0
  %389 = vmatpush2.bf16.msra.mxu0 %v320
  %390 = vmatprep.subr.bf16.mxu0 0
  %391 = vmatpush2.bf16.msra.mxu0 %v319
  %392 = vmatprep.subr.bf16.mxu0 0
  %393 = vmatpush2.bf16.msra.mxu0 %v318
  %394 = vmatprep.subr.bf16.mxu0 0
  %395 = vmatpush2.bf16.msra.mxu0 %v317
  %396 = vmatprep.subr.bf16.mxu0 0
  %397 = vmatpush2.bf16.msra.mxu0 %v316
  %398 = vmatprep.subr.bf16.mxu0 0
  %399 = vmatpush2.bf16.msra.mxu0 %v315
  %400 = vmatprep.subr.bf16.mxu0 0
  %401 = vmatpush2.bf16.msra.mxu0 %v314
  %402 = vmatprep.mubr.bf16.mxu0 %v147
  %403 = vmatmul.mubr.bf16.gmra.mxu0 %v146
  %v404 = vpop.f32.mrf.mxu0
  %v405 = vadd.f32 0.0, %v404
  %v406 = vpop.f32.mrf.mxu0
  %v407 = vpop.f32.mrf.mxu0
  %v408 = vadd.f32 0.0, %v407
  %v409 = vpop.f32.mrf.mxu0
  %410 = vmatprep.mubr.bf16.mxu0 %v151
  %411 = vmatmul.mubr.bf16.gmra.mxu0 %v150
  %v412 = vpop.f32.mrf.mxu0
  %v413 = vadd.f32 0.0, %v412
  %v414 = vpop.f32.mrf.mxu0
  %v415 = vpop.f32.mrf.mxu0
  %v416 = vadd.f32 0.0, %v415
  %v417 = vpop.f32.mrf.mxu0
  %418 = vmatprep.mubr.bf16.mxu0 %v155
  %419 = vmatmul.mubr.bf16.gmra.mxu0 %v154
  %v420 = vpop.f32.mrf.mxu0
  %v421 = vadd.f32 0.0, %v420
  %v422 = vpop.f32.mrf.mxu0
  %v423 = vpop.f32.mrf.mxu0
  %v424 = vadd.f32 0.0, %v423
  %v425 = vpop.f32.mrf.mxu0
  %426 = vmatprep.mubr.bf16.mxu0 %v159
  %427 = vmatmul.mubr.bf16.gmra.mxu0 %v158
  %v428 = vpop.f32.mrf.mxu0
  %v429 = vadd.f32 0.0, %v428
  %v430 = vpop.f32.mrf.mxu0
  %v431 = vpop.f32.mrf.mxu0
  %v432 = vadd.f32 0.0, %v431
  %v433 = vpop.f32.mrf.mxu0
  %434 = vdwg.mxu0
  %435 = vmatprep.subr.bf16.mxu0 0
  %436 = vmatpush1.bf16.msra.mxu0 %v329
  %437 = vmatprep.subr.bf16.mxu0 0
  %438 = vmatpush1.bf16.msra.mxu0 %v328
  %439 = vmatprep.subr.bf16.mxu0 0
  %440 = vmatpush1.bf16.msra.mxu0 %v327
  %441 = vmatprep.subr.bf16.mxu0 0
  %442 = vmatpush1.bf16.msra.mxu0 %v326
  %443 = vmatprep.subr.bf16.mxu0 0
  %444 = vmatpush1.bf16.msra.mxu0 %v325
  %445 = vmatprep.subr.bf16.mxu0 0
  %446 = vmatpush1.bf16.msra.mxu0 %v324
  %447 = vmatprep.subr.bf16.mxu0 0
  %448 = vmatpush1.bf16.msra.mxu0 %v323
  %449 = vmatprep.subr.bf16.mxu0 0
  %450 = vmatpush1.bf16.msra.mxu0 %v322
  %451 = vmatprep.subr.bf16.mxu0 0
  %452 = vmatpush2.bf16.msra.mxu0 %v337
  %453 = vmatprep.subr.bf16.mxu0 0
  %454 = vmatpush2.bf16.msra.mxu0 %v336
  %455 = vmatprep.subr.bf16.mxu0 0
  %456 = vmatpush2.bf16.msra.mxu0 %v335
  %457 = vmatprep.subr.bf16.mxu0 0
  %458 = vmatpush2.bf16.msra.mxu0 %v334
  %459 = vmatprep.subr.bf16.mxu0 0
  %460 = vmatpush2.bf16.msra.mxu0 %v333
  %461 = vmatprep.subr.bf16.mxu0 0
  %462 = vmatpush2.bf16.msra.mxu0 %v332
  %463 = vmatprep.subr.bf16.mxu0 0
  %464 = vmatpush2.bf16.msra.mxu0 %v331
  %465 = vmatprep.subr.bf16.mxu0 0
  %466 = vmatpush2.bf16.msra.mxu0 %v330
  %467 = vmatprep.mubr.bf16.mxu0 %v149
  %468 = vmatmul.mubr.bf16.gmra.mxu0 %v148
  %v469 = vpop.f32.mrf.mxu0
  %v470 = vadd.f32 %v405, %v469
  %v471 = vpop.f32.mrf.mxu0
  %v472 = vpop.f32.mrf.mxu0
  %v473 = vadd.f32 %v408, %v472
  %v474 = vpop.f32.mrf.mxu0
  %475 = vmatprep.mubr.bf16.mxu0 %v153
  %476 = vmatmul.mubr.bf16.gmra.mxu0 %v152
  %v477 = vpop.f32.mrf.mxu0
  %v478 = vadd.f32 %v413, %v477
  %v479 = vpop.f32.mrf.mxu0
  %v480 = vpop.f32.mrf.mxu0
  %v481 = vadd.f32 %v416, %v480
  %v482 = vpop.f32.mrf.mxu0
  %483 = vmatprep.mubr.bf16.mxu0 %v157
  %484 = vmatmul.mubr.bf16.gmra.mxu0 %v156
  %v485 = vpop.f32.mrf.mxu0
  %v486 = vadd.f32 %v421, %v485
  %v487 = vpop.f32.mrf.mxu0
  %v488 = vpop.f32.mrf.mxu0
  %v489 = vadd.f32 %v424, %v488
  %v490 = vpop.f32.mrf.mxu0
  %491 = vmatprep.mubr.bf16.mxu0 %v161
  %492 = vmatmul.mubr.bf16.gmra.mxu0 %v160
  %v493 = vpop.f32.mrf.mxu0
  %v494 = vadd.f32 %v429, %v493
  %v495 = vpop.f32.mrf.mxu0
  %v496 = vpop.f32.mrf.mxu0
  %v497 = vadd.f32 %v432, %v496
  %v498 = vpop.f32.mrf.mxu0
  %499 = vdwg.mxu0
  %vm500 = vcmask 261120
  %v501 = vsel %vm500, %v470, 0.0
  %502 = vadd.xlane.f32.xlu0 %v501
  %v503 = vpop.xlane.xlu0 %502
  %v504 = vsel %vm500, %v473, 0.0
  %505 = vadd.xlane.f32.xlu0 %v504
  %v506 = vpop.xlane.xlu0 %505
  %v507 = vsel %vm500, %v478, 0.0
  %508 = vadd.xlane.f32.xlu0 %v507
  %v509 = vpop.xlane.xlu0 %508
  %v510 = vsel %vm500, %v481, 0.0
  %511 = vadd.xlane.f32.xlu0 %v510
  %v512 = vpop.xlane.xlu0 %511
  %v513 = vsel %vm500, %v486, 0.0
  %514 = vadd.xlane.f32.xlu0 %v513
  %v515 = vpop.xlane.xlu0 %514
  %v516 = vsel %vm500, %v489, 0.0
  %517 = vadd.xlane.f32.xlu0 %v516
  %v518 = vpop.xlane.xlu0 %517
  %v519 = vsel %vm500, %v494, 0.0
  %520 = vadd.xlane.f32.xlu0 %v519
  %v521 = vpop.xlane.xlu0 %520
  %v522 = vsel %vm500, %v497, 0.0
  %523 = vadd.xlane.f32.xlu0 %v522
  %v524 = vpop.xlane.xlu0 %523
  %v525 = vmul.f32 %v503, 0.03125
  %v526 = vmul.f32 %v506, 0.03125
  %v527 = vmul.f32 %v509, 0.03125
  %v528 = vmul.f32 %v512, 0.03125
  %v529 = vmul.f32 %v515, 0.03125
  %v530 = vmul.f32 %v518, 0.03125
  %v531 = vmul.f32 %v521, 0.03125
  %v532 = vmul.f32 %v524, 0.03125
  %v533 = vmul.f32 %v470, %v470
  %v534 = vmul.f32 %v473, %v473
  %v535 = vmul.f32 %v478, %v478
  %v536 = vmul.f32 %v481, %v481
  %v537 = vmul.f32 %v486, %v486
  %v538 = vmul.f32 %v489, %v489
  %v539 = vmul.f32 %v494, %v494
  %v540 = vmul.f32 %v497, %v497
  %v541 = vsel %vm500, %v533, 0.0
  %542 = vadd.xlane.f32.xlu0 %v541
  %v543 = vpop.xlane.xlu0 %542
  %v544 = vsel %vm500, %v534, 0.0
  %545 = vadd.xlane.f32.xlu0 %v544
  %v546 = vpop.xlane.xlu0 %545
  %v547 = vsel %vm500, %v535, 0.0
  %548 = vadd.xlane.f32.xlu0 %v547
  %v549 = vpop.xlane.xlu0 %548
  %v550 = vsel %vm500, %v536, 0.0
  %551 = vadd.xlane.f32.xlu0 %v550
  %v552 = vpop.xlane.xlu0 %551
  %v553 = vsel %vm500, %v537, 0.0
  %554 = vadd.xlane.f32.xlu0 %v553
  %v555 = vpop.xlane.xlu0 %554
  %v556 = vsel %vm500, %v538, 0.0
  %557 = vadd.xlane.f32.xlu0 %v556
  %v558 = vpop.xlane.xlu0 %557
  %v559 = vsel %vm500, %v539, 0.0
  %560 = vadd.xlane.f32.xlu0 %v559
  %v561 = vpop.xlane.xlu0 %560
  %v562 = vsel %vm500, %v540, 0.0
  %563 = vadd.xlane.f32.xlu0 %v562
  %v564 = vpop.xlane.xlu0 %563
  %v565 = vmul.f32 %v543, 0.03125
  %v566 = vmul.f32 %v546, 0.03125
  %v567 = vmul.f32 %v549, 0.03125
  %v568 = vmul.f32 %v552, 0.03125
  %v569 = vmul.f32 %v555, 0.03125
  %v570 = vmul.f32 %v558, 0.03125
  %v571 = vmul.f32 %v561, 0.03125
  %v572 = vmul.f32 %v564, 0.03125
  %v573 = vmul.f32 %v525, %v525
  %v574 = vmul.f32 %v526, %v526
  %v575 = vmul.f32 %v527, %v527
  %v576 = vmul.f32 %v528, %v528
  %v577 = vmul.f32 %v529, %v529
  %v578 = vmul.f32 %v530, %v530
  %v579 = vmul.f32 %v531, %v531
  %v580 = vmul.f32 %v532, %v532
  %v581 = vsub.f32 %v565, %v573
  %v582 = vsub.f32 %v566, %v574
  %v583 = vsub.f32 %v567, %v575
  %v584 = vsub.f32 %v568, %v576
  %v585 = vsub.f32 %v569, %v577
  %v586 = vsub.f32 %v570, %v578
  %v587 = vsub.f32 %v571, %v579
  %v588 = vsub.f32 %v572, %v580
  %v589 = vld [vmem:[%s2] sm:$0xff]
  %v590 = vld [vmem:[%s2 + $0x8] sm:$0xff]
  %v591 = vld [vmem:[%s2 + $0x10] sm:$0xff]
  %v592 = vld [vmem:[%s2 + $0x18] sm:$0xff]
  %v593 = vld [vmem:[%s2 + $0x20] sm:$0xff]
  %v594 = vld [vmem:[%s2 + $0x28] sm:$0xff]
  %v595 = vld [vmem:[%s2 + $0x30] sm:$0xff]
  %v596 = vld [vmem:[%s2 + $0x38] sm:$0xff]
  %v597 = vadd.f32 %v581, 1e-05
  %v598 = vadd.f32 %v582, 1e-05
  %v599 = vadd.f32 %v583, 1e-05
  %v600 = vadd.f32 %v584, 1e-05
  %v601 = vadd.f32 %v585, 1e-05
  %v602 = vadd.f32 %v586, 1e-05
  %v603 = vadd.f32 %v587, 1e-05
  %v604 = vadd.f32 %v588, 1e-05
  %v605 = vrsqrt.pop %v597
  %v606 = vrsqrt.pop %v598
  %v607 = vrsqrt.pop %v599
  %v608 = vrsqrt.pop %v600
  %v609 = vrsqrt.pop %v601
  %v610 = vrsqrt.pop %v602
  %v611 = vrsqrt.pop %v603
  %v612 = vrsqrt.pop %v604
  %v613 = vmul.f32 %v589, %v605
  %v614 = vmul.f32 %v590, %v606
  %v615 = vmul.f32 %v591, %v607
  %v616 = vmul.f32 %v592, %v608
  %v617 = vmul.f32 %v593, %v609
  %v618 = vmul.f32 %v594, %v610
  %v619 = vmul.f32 %v595, %v611
  %v620 = vmul.f32 %v596, %v612
  %v621 = vld [vmem:[%s3] sm:$0xff]
  %v622 = vld [vmem:[%s3 + $0x8] sm:$0xff]
  %v623 = vld [vmem:[%s3 + $0x10] sm:$0xff]
  %v624 = vld [vmem:[%s3 + $0x18] sm:$0xff]
  %v625 = vld [vmem:[%s3 + $0x20] sm:$0xff]
  %v626 = vld [vmem:[%s3 + $0x28] sm:$0xff]
  %v627 = vld [vmem:[%s3 + $0x30] sm:$0xff]
  %v628 = vld [vmem:[%s3 + $0x38] sm:$0xff]
  %v629 = vmul.f32 %v525, %v613
  %v630 = vmul.f32 %v526, %v614
  %v631 = vmul.f32 %v527, %v615
  %v632 = vmul.f32 %v528, %v616
  %v633 = vmul.f32 %v529, %v617
  %v634 = vmul.f32 %v530, %v618
  %v635 = vmul.f32 %v531, %v619
  %v636 = vmul.f32 %v532, %v620
  %v637 = vsub.f32 %v621, %v629
  %v638 = vsub.f32 %v622, %v630
  %v639 = vsub.f32 %v623, %v631
  %v640 = vsub.f32 %v624, %v632
  %v641 = vsub.f32 %v625, %v633
  %v642 = vsub.f32 %v626, %v634
  %v643 = vsub.f32 %v627, %v635
  %v644 = vsub.f32 %v628, %v636
  %646 = vset.pattern.permute.xlu0 0
  %647 = vperm.xlu0 %646, %v613
  %v648 = vpop.permute.xlu0 %647
  %651 = vset.pattern.permute.xlu0 0
  %652 = vperm.xlu0 %651, %v614
  %v653 = vpop.permute.xlu0 %652
  %656 = vset.pattern.permute.xlu0 0
  %657 = vperm.xlu0 %656, %v615
  %v658 = vpop.permute.xlu0 %657
  %661 = vset.pattern.permute.xlu0 0
  %662 = vperm.xlu0 %661, %v616
  %v663 = vpop.permute.xlu0 %662
  %666 = vset.pattern.permute.xlu0 0
  %667 = vperm.xlu0 %666, %v617
  %v668 = vpop.permute.xlu0 %667
  %671 = vset.pattern.permute.xlu0 0
  %672 = vperm.xlu0 %671, %v618
  %v673 = vpop.permute.xlu0 %672
  %676 = vset.pattern.permute.xlu0 0
  %677 = vperm.xlu0 %676, %v619
  %v678 = vpop.permute.xlu0 %677
  %681 = vset.pattern.permute.xlu0 0
  %682 = vperm.xlu0 %681, %v620
  %v683 = vpop.permute.xlu0 %682
  %v685 = vmul.f32 %v470, %v648
  %v686 = vmul.f32 %v473, %v653
  %v687 = vmul.f32 %v478, %v658
  %v688 = vmul.f32 %v481, %v663
  %v689 = vmul.f32 %v486, %v668
  %v690 = vmul.f32 %v489, %v673
  %v691 = vmul.f32 %v494, %v678
  %v692 = vmul.f32 %v497, %v683
  %694 = vset.pattern.permute.xlu0 0
  %695 = vperm.xlu0 %694, %v637
  %v696 = vpop.permute.xlu0 %695
  %699 = vset.pattern.permute.xlu0 0
  %700 = vperm.xlu0 %699, %v638
  %v701 = vpop.permute.xlu0 %700
  %704 = vset.pattern.permute.xlu0 0
  %705 = vperm.xlu0 %704, %v639
  %v706 = vpop.permute.xlu0 %705
  %709 = vset.pattern.permute.xlu0 0
  %710 = vperm.xlu0 %709, %v640
  %v711 = vpop.permute.xlu0 %710
  %714 = vset.pattern.permute.xlu0 0
  %715 = vperm.xlu0 %714, %v641
  %v716 = vpop.permute.xlu0 %715
  %719 = vset.pattern.permute.xlu0 0
  %720 = vperm.xlu0 %719, %v642
  %v721 = vpop.permute.xlu0 %720
  %724 = vset.pattern.permute.xlu0 0
  %725 = vperm.xlu0 %724, %v643
  %v726 = vpop.permute.xlu0 %725
  %729 = vset.pattern.permute.xlu0 0
  %730 = vperm.xlu0 %729, %v644
  %v731 = vpop.permute.xlu0 %730
  %v733 = vadd.f32 %v685, %v696
  %v734 = vadd.f32 %v686, %v701
  %v735 = vadd.f32 %v687, %v706
  %v736 = vadd.f32 %v688, %v711
  %v737 = vadd.f32 %v689, %v716
  %v738 = vadd.f32 %v690, %v721
  %v739 = vadd.f32 %v691, %v726
  %v740 = vadd.f32 %v692, %v731
  %v741 = vmul.f32 %v733, 0.2
  %v742 = vmul.f32 %v734, 0.2
  %v743 = vmul.f32 %v735, 0.2
  %v744 = vmul.f32 %v736, 0.2
  %v745 = vmul.f32 %v737, 0.2
  %v746 = vmul.f32 %v738, 0.2
  %v747 = vmul.f32 %v739, 0.2
  %v748 = vmul.f32 %v740, 0.2
  %v749 = vmax.f32 %v733, %v741
  %v750 = vmax.f32 %v734, %v742
  %v751 = vmax.f32 %v735, %v743
  %v752 = vmax.f32 %v736, %v744
  %v753 = vmax.f32 %v737, %v745
  %v754 = vmax.f32 %v738, %v746
  %v755 = vmax.f32 %v739, %v747
  %v756 = vmax.f32 %v740, %v748
  %v757 = vpack.c.bf16 %v750, %v749
  %v758 = vpack.c.bf16 %v752, %v751
  %v759 = vpack.c.bf16 %v754, %v753
  %v760 = vpack.c.bf16 %v756, %v755
  %v765 = vunpack.c.l.b16 %v757
  %v766 = vunpack.c.h.b16 %v757
  %v767 = vunpack.c.l.b16 %v758
  %v768 = vunpack.c.h.b16 %v758
  %v769 = vunpack.c.l.b16 %v759
  %v770 = vunpack.c.h.b16 %v759
  %v771 = vunpack.c.l.b16 %v760
  %v772 = vunpack.c.h.b16 %v760
  %v773 = vpack.c.b16 %v765, %v765
  %v774 = vpack.c.b16 %v766, %v766
  %v775 = vpack.c.b16 %v767, %v767
  %v776 = vpack.c.b16 %v768, %v768
  %v777 = vpack.c.b16 %v769, %v769
  %v778 = vpack.c.b16 %v770, %v770
  %v779 = vpack.c.b16 %v771, %v771
  %v780 = vpack.c.b16 %v772, %v772
  %vm789 = vcmask 257024
  %790 = vst.msk [vmem:[%s4] sm:$0xf] %vm789, %v773
  %791 = vst.msk [vmem:[%s4 + $0x4] sm:$0xf] %vm789, %v774
  %792 = vst.msk [vmem:[%s4 + $0x8] sm:$0xf] %vm789, %v775
  %793 = vst.msk [vmem:[%s4 + $0xc] sm:$0xf] %vm789, %v776
  %794 = vst.msk [vmem:[%s4 + $0x10] sm:$0xf] %vm789, %v777
  %795 = vst.msk [vmem:[%s4 + $0x14] sm:$0xf] %vm789, %v778
  %796 = vst.msk [vmem:[%s4 + $0x18] sm:$0xf] %vm789, %v779
  %797 = vst.msk [vmem:[%s4 + $0x1c] sm:$0xf] %vm789, %v780
  // Predicated region
  $region18: #{dcgan_discriminator_forward.8} parent=0 // pred_check
    _
  $region19: #{dcgan_discriminator_forward.8} parent=0 // pred_check_branch
    %799 = sbr.rel (0) target = $region21
  $region20: #{dcgan_discriminator_forward.8} parent=0 // pred_region
    _
  $region21: #{dcgan_discriminator_forward.8} parent=0 // pred_fallthru
    _
  // Predicated region
  $region22: #{dcgan_discriminator_forward.8} parent=0 // pred_check
    _
  $region23: #{dcgan_discriminator_forward.8} parent=0 // pred_check_branch
    %801 = sbr.rel (0) target = $region25
  $region24: #{dcgan_discriminator_forward.8} parent=0 // pred_region
    _
  $region25: #{dcgan_discriminator_forward.8} parent=0 // pred_fallthru
    _

// kernel: dcgan_discriminator_forward.9
$region0: #{dcgan_discriminator_forward.9}
  #allocation0 [shape = 'u32[]', space=smem, size = 0x4, offset = 0x4, fixed_abs, tag = 'smem constant byte address 0x4 - core index']
  #allocation1 [shape = 'u32[144,128]{1,0:T(1,128)}', space=vmem, size = 0x12000, scoped, tag = 'internal scratch']
  %s0 = inlined_call_operand.vmem [shape: bf16[8,1024], index: 0, kind: input, shape index: {}]
  %s1 = inlined_call_operand.vmem [shape: bf16[1024,2], index: 1, kind: input, shape index: {}]
  %s2 = inlined_call_operand.vmem [shape: f32[8,2], index: 2, kind: output, shape index: {}]
  %s3 = sld [smem:[#allocation0]]
  $region18: #{dcgan_discriminator_forward.9} parent=0
    _
  %s5 = ssub.s32 1, %s3
  %s6 = scalar_select 0, %s5, %s3
  // Predicated region
  $region2: #{dcgan_discriminator_forward.9} parent=0 // pred_check
    _
  $region3: #{dcgan_discriminator_forward.9} parent=0 // pred_check_branch
    %8 = sbr.rel (0) target = $region5
  $region4: #{dcgan_discriminator_forward.9} parent=0 // pred_region
    _
  $region5: #{dcgan_discriminator_forward.9} parent=0 // pred_fallthru
    _
  // Predicated region
  $region6: #{dcgan_discriminator_forward.9} parent=0 // pred_check
    _
  $region7: #{dcgan_discriminator_forward.9} parent=0 // pred_check_branch
    %10 = sbr.rel (0) target = $region9
  $region8: #{dcgan_discriminator_forward.9} parent=0 // pred_region
    _
  $region9: #{dcgan_discriminator_forward.9} parent=0 // pred_fallthru
    _
  %v12 = vld [vmem:[%s0] sm:$0xff]
  %v13 = vld [vmem:[%s0 + $0x8] sm:$0xff]
  %v14 = vld [vmem:[%s0 + $0x10] sm:$0xff]
  %v15 = vld [vmem:[%s0 + $0x18] sm:$0xff]
  %v16 = vld [vmem:[%s1] sm:$0xf]
  %v17 = vld [vmem:[%s1 + $0x4] sm:$0xf]
  %v18 = vld [vmem:[%s1 + $0x8] sm:$0xf]
  %v19 = vld [vmem:[%s1 + $0xc] sm:$0xf]
  %v20 = vld [vmem:[%s1 + $0x10] sm:$0xf]
  %v21 = vld [vmem:[%s1 + $0x14] sm:$0xf]
  %v22 = vld [vmem:[%s1 + $0x18] sm:$0xf]
  %v23 = vld [vmem:[%s1 + $0x1c] sm:$0xf]
  %v24 = vld [vmem:[%s1 + $0x20] sm:$0xf]
  %v25 = vld [vmem:[%s1 + $0x24] sm:$0xf]
  %v26 = vld [vmem:[%s1 + $0x28] sm:$0xf]
  %v27 = vld [vmem:[%s1 + $0x2c] sm:$0xf]
  %v28 = vld [vmem:[%s1 + $0x30] sm:$0xf]
  %v29 = vld [vmem:[%s1 + $0x34] sm:$0xf]
  %v30 = vld [vmem:[%s1 + $0x38] sm:$0xf]
  %v31 = vld [vmem:[%s1 + $0x3c] sm:$0xf]
  %v32 = vld [vmem:[%s1 + $0x40] sm:$0xf]
  %v33 = vld [vmem:[%s1 + $0x44] sm:$0xf]
  %v34 = vld [vmem:[%s1 + $0x48] sm:$0xf]
  %v35 = vld [vmem:[%s1 + $0x4c] sm:$0xf]
  %v36 = vld [vmem:[%s1 + $0x50] sm:$0xf]
  %v37 = vld [vmem:[%s1 + $0x54] sm:$0xf]
  %v38 = vld [vmem:[%s1 + $0x58] sm:$0xf]
  %v39 = vld [vmem:[%s1 + $0x5c] sm:$0xf]
  %v40 = vld [vmem:[%s1 + $0x60] sm:$0xf]
  %v41 = vld [vmem:[%s1 + $0x64] sm:$0xf]
  %v42 = vld [vmem:[%s1 + $0x68] sm:$0xf]
  %v43 = vld [vmem:[%s1 + $0x6c] sm:$0xf]
  %v44 = vld [vmem:[%s1 + $0x70] sm:$0xf]
  %v45 = vld [vmem:[%s1 + $0x74] sm:$0xf]
  %v46 = vld [vmem:[%s1 + $0x78] sm:$0xf]
  %v47 = vld [vmem:[%s1 + $0x7c] sm:$0xf]
  %v48 = vld [vmem:[%s1 + $0x80] sm:$0xf]
  %v49 = vld [vmem:[%s1 + $0x84] sm:$0xf]
  %v50 = vld [vmem:[%s1 + $0x88] sm:$0xf]
  %v51 = vld [vmem:[%s1 + $0x8c] sm:$0xf]
  %v52 = vld [vmem:[%s1 + $0x90] sm:$0xf]
  %v53 = vld [vmem:[%s1 + $0x94] sm:$0xf]
  %v54 = vld [vmem:[%s1 + $0x98] sm:$0xf]
  %v55 = vld [vmem:[%s1 + $0x9c] sm:$0xf]
  %v56 = vld [vmem:[%s1 + $0xa0] sm:$0xf]
  %v57 = vld [vmem:[%s1 + $0xa4] sm:$0xf]
  %v58 = vld [vmem:[%s1 + $0xa8] sm:$0xf]
  %v59 = vld [vmem:[%s1 + $0xac] sm:$0xf]
  %v60 = vld [vmem:[%s1 + $0xb0] sm:$0xf]
  %v61 = vld [vmem:[%s1 + $0xb4] sm:$0xf]
  %v62 = vld [vmem:[%s1 + $0xb8] sm:$0xf]
  %v63 = vld [vmem:[%s1 + $0xbc] sm:$0xf]
  %v64 = vld [vmem:[%s1 + $0xc0] sm:$0xf]
  %v65 = vld [vmem:[%s1 + $0xc4] sm:$0xf]
  %v66 = vld [vmem:[%s1 + $0xc8] sm:$0xf]
  %v67 = vld [vmem:[%s1 + $0xcc] sm:$0xf]
  %v68 = vld [vmem:[%s1 + $0xd0] sm:$0xf]
  %v69 = vld [vmem:[%s1 + $0xd4] sm:$0xf]
  %v70 = vld [vmem:[%s1 + $0xd8] sm:$0xf]
  %v71 = vld [vmem:[%s1 + $0xdc] sm:$0xf]
  %v72 = vld [vmem:[%s1 + $0xe0] sm:$0xf]
  %v73 = vld [vmem:[%s1 + $0xe4] sm:$0xf]
  %v74 = vld [vmem:[%s1 + $0xe8] sm:$0xf]
  %v75 = vld [vmem:[%s1 + $0xec] sm:$0xf]
  %v76 = vld [vmem:[%s1 + $0xf0] sm:$0xf]
  %v77 = vld [vmem:[%s1 + $0xf4] sm:$0xf]
  %v78 = vld [vmem:[%s1 + $0xf8] sm:$0xf]
  %v79 = vld [vmem:[%s1 + $0xfc] sm:$0xf]
  %v80 = vld [vmem:[%s1 + $0x100] sm:$0xf]
  %v81 = vld [vmem:[%s1 + $0x104] sm:$0xf]
  %v82 = vld [vmem:[%s1 + $0x108] sm:$0xf]
  %v83 = vld [vmem:[%s1 + $0x10c] sm:$0xf]
  %v84 = vld [vmem:[%s1 + $0x110] sm:$0xf]
  %v85 = vld [vmem:[%s1 + $0x114] sm:$0xf]
  %v86 = vld [vmem:[%s1 + $0x118] sm:$0xf]
  %v87 = vld [vmem:[%s1 + $0x11c] sm:$0xf]
  %v88 = vld [vmem:[%s1 + $0x120] sm:$0xf]
  %v89 = vld [vmem:[%s1 + $0x124] sm:$0xf]
  %v90 = vld [vmem:[%s1 + $0x128] sm:$0xf]
  %v91 = vld [vmem:[%s1 + $0x12c] sm:$0xf]
  %v92 = vld [vmem:[%s1 + $0x130] sm:$0xf]
  %v93 = vld [vmem:[%s1 + $0x134] sm:$0xf]
  %v94 = vld [vmem:[%s1 + $0x138] sm:$0xf]
  %v95 = vld [vmem:[%s1 + $0x13c] sm:$0xf]
  %v96 = vld [vmem:[%s1 + $0x140] sm:$0xf]
  %v97 = vld [vmem:[%s1 + $0x144] sm:$0xf]
  %v98 = vld [vmem:[%s1 + $0x148] sm:$0xf]
  %v99 = vld [vmem:[%s1 + $0x14c] sm:$0xf]
  %v100 = vld [vmem:[%s1 + $0x150] sm:$0xf]
  %v101 = vld [vmem:[%s1 + $0x154] sm:$0xf]
  %v102 = vld [vmem:[%s1 + $0x158] sm:$0xf]
  %v103 = vld [vmem:[%s1 + $0x15c] sm:$0xf]
  %v104 = vld [vmem:[%s1 + $0x160] sm:$0xf]
  %v105 = vld [vmem:[%s1 + $0x164] sm:$0xf]
  %v106 = vld [vmem:[%s1 + $0x168] sm:$0xf]
  %v107 = vld [vmem:[%s1 + $0x16c] sm:$0xf]
  %v108 = vld [vmem:[%s1 + $0x170] sm:$0xf]
  %v109 = vld [vmem:[%s1 + $0x174] sm:$0xf]
  %v110 = vld [vmem:[%s1 + $0x178] sm:$0xf]
  %v111 = vld [vmem:[%s1 + $0x17c] sm:$0xf]
  %v112 = vld [vmem:[%s1 + $0x180] sm:$0xf]
  %v113 = vld [vmem:[%s1 + $0x184] sm:$0xf]
  %v114 = vld [vmem:[%s1 + $0x188] sm:$0xf]
  %v115 = vld [vmem:[%s1 + $0x18c] sm:$0xf]
  %v116 = vld [vmem:[%s1 + $0x190] sm:$0xf]
  %v117 = vld [vmem:[%s1 + $0x194] sm:$0xf]
  %v118 = vld [vmem:[%s1 + $0x198] sm:$0xf]
  %v119 = vld [vmem:[%s1 + $0x19c] sm:$0xf]
  %v120 = vld [vmem:[%s1 + $0x1a0] sm:$0xf]
  %v121 = vld [vmem:[%s1 + $0x1a4] sm:$0xf]
  %v122 = vld [vmem:[%s1 + $0x1a8] sm:$0xf]
  %v123 = vld [vmem:[%s1 + $0x1ac] sm:$0xf]
  %v124 = vld [vmem:[%s1 + $0x1b0] sm:$0xf]
  %v125 = vld [vmem:[%s1 + $0x1b4] sm:$0xf]
  %v126 = vld [vmem:[%s1 + $0x1b8] sm:$0xf]
  %v127 = vld [vmem:[%s1 + $0x1bc] sm:$0xf]
  %v128 = vld [vmem:[%s1 + $0x1c0] sm:$0xf]
  %v129 = vld [vmem:[%s1 + $0x1c4] sm:$0xf]
  %v130 = vld [vmem:[%s1 + $0x1c8] sm:$0xf]
  %v131 = vld [vmem:[%s1 + $0x1cc] sm:$0xf]
  %v132 = vld [vmem:[%s1 + $0x1d0] sm:$0xf]
  %v133 = vld [vmem:[%s1 + $0x1d4] sm:$0xf]
  %v134 = vld [vmem:[%s1 + $0x1d8] sm:$0xf]
  %v135 = vld [vmem:[%s1 + $0x1dc] sm:$0xf]
  %v136 = vld [vmem:[%s1 + $0x1e0] sm:$0xf]
  %v137 = vld [vmem:[%s1 + $0x1e4] sm:$0xf]
  %v138 = vld [vmem:[%s1 + $0x1e8] sm:$0xf]
  %v139 = vld [vmem:[%s1 + $0x1ec] sm:$0xf]
  %v140 = vld [vmem:[%s1 + $0x1f0] sm:$0xf]
  %v141 = vld [vmem:[%s1 + $0x1f4] sm:$0xf]
  %v142 = vld [vmem:[%s1 + $0x1f8] sm:$0xf]
  %v143 = vld [vmem:[%s1 + $0x1fc] sm:$0xf]
  %v148 = vunpack.c.l.b16 %v12
  %v149 = vunpack.c.h.b16 %v12
  %v150 = vunpack.c.l.b16 %v13
  %v151 = vunpack.c.h.b16 %v13
  %v152 = vunpack.c.l.b16 %v14
  %v153 = vunpack.c.h.b16 %v14
  %v154 = vunpack.c.l.b16 %v15
  %v155 = vunpack.c.h.b16 %v15
  %v156 = vpack.c.b16 %v148, %v148
  %v157 = vpack.c.b16 %v149, %v149
  %v158 = vpack.c.b16 %v150, %v150
  %v159 = vpack.c.b16 %v151, %v151
  %v160 = vpack.c.b16 %v152, %v152
  %v161 = vpack.c.b16 %v153, %v153
  %v162 = vpack.c.b16 %v154, %v154
  %v163 = vpack.c.b16 %v155, %v155
  %v300 = vunpack.c.l.b16 %v16
  %v301 = vunpack.c.l.b16 %v17
  %v302 = vunpack.c.l.b16 %v18
  %v303 = vunpack.c.l.b16 %v19
  %v304 = vunpack.c.l.b16 %v20
  %v305 = vunpack.c.l.b16 %v21
  %v306 = vunpack.c.l.b16 %v22
  %v307 = vunpack.c.l.b16 %v23
  %v308 = vunpack.c.l.b16 %v24
  %v309 = vunpack.c.l.b16 %v25
  %v310 = vunpack.c.l.b16 %v26
  %v311 = vunpack.c.l.b16 %v27
  %v312 = vunpack.c.l.b16 %v28
  %v313 = vunpack.c.l.b16 %v29
  %v314 = vunpack.c.l.b16 %v30
  %v315 = vunpack.c.l.b16 %v31
  %v316 = vunpack.c.l.b16 %v32
  %v317 = vunpack.c.l.b16 %v33
  %v318 = vunpack.c.l.b16 %v34
  %v319 = vunpack.c.l.b16 %v35
  %v320 = vunpack.c.l.b16 %v36
  %v321 = vunpack.c.l.b16 %v37
  %v322 = vunpack.c.l.b16 %v38
  %v323 = vunpack.c.l.b16 %v39
  %v324 = vunpack.c.l.b16 %v40
  %v325 = vunpack.c.l.b16 %v41
  %v326 = vunpack.c.l.b16 %v42
  %v327 = vunpack.c.l.b16 %v43
  %v328 = vunpack.c.l.b16 %v44
  %v329 = vunpack.c.l.b16 %v45
  %v330 = vunpack.c.l.b16 %v46
  %v331 = vunpack.c.l.b16 %v47
  %v332 = vunpack.c.l.b16 %v48
  %v333 = vunpack.c.l.b16 %v49
  %v334 = vunpack.c.l.b16 %v50
  %v335 = vunpack.c.l.b16 %v51
  %v336 = vunpack.c.l.b16 %v52
  %v337 = vunpack.c.l.b16 %v53
  %v338 = vunpack.c.l.b16 %v54
  %v339 = vunpack.c.l.b16 %v55
  %v340 = vunpack.c.l.b16 %v56
  %v341 = vunpack.c.l.b16 %v57
  %v342 = vunpack.c.l.b16 %v58
  %v343 = vunpack.c.l.b16 %v59
  %v344 = vunpack.c.l.b16 %v60
  %v345 = vunpack.c.l.b16 %v61
  %v346 = vunpack.c.l.b16 %v62
  %v347 = vunpack.c.l.b16 %v63
  %v348 = vunpack.c.l.b16 %v64
  %v349 = vunpack.c.l.b16 %v65
  %v350 = vunpack.c.l.b16 %v66
  %v351 = vunpack.c.l.b16 %v67
  %v352 = vunpack.c.l.b16 %v68
  %v353 = vunpack.c.l.b16 %v69
  %v354 = vunpack.c.l.b16 %v70
  %v355 = vunpack.c.l.b16 %v71
  %v356 = vunpack.c.l.b16 %v72
  %v357 = vunpack.c.l.b16 %v73
  %v358 = vunpack.c.l.b16 %v74
  %v359 = vunpack.c.l.b16 %v75
  %v360 = vunpack.c.l.b16 %v76
  %v361 = vunpack.c.l.b16 %v77
  %v362 = vunpack.c.l.b16 %v78
  %v363 = vunpack.c.l.b16 %v79
  %v364 = vunpack.c.l.b16 %v80
  %v365 = vunpack.c.l.b16 %v81
  %v366 = vunpack.c.l.b16 %v82
  %v367 = vunpack.c.l.b16 %v83
  %v368 = vunpack.c.l.b16 %v84
  %v369 = vunpack.c.l.b16 %v85
  %v370 = vunpack.c.l.b16 %v86
  %v371 = vunpack.c.l.b16 %v87
  %v372 = vunpack.c.l.b16 %v88
  %v373 = vunpack.c.l.b16 %v89
  %v374 = vunpack.c.l.b16 %v90
  %v375 = vunpack.c.l.b16 %v91
  %v376 = vunpack.c.l.b16 %v92
  %v377 = vunpack.c.l.b16 %v93
  %v378 = vunpack.c.l.b16 %v94
  %v379 = vunpack.c.l.b16 %v95
  %v380 = vunpack.c.l.b16 %v96
  %v381 = vunpack.c.l.b16 %v97
  %v382 = vunpack.c.l.b16 %v98
  %v383 = vunpack.c.l.b16 %v99
  %v384 = vunpack.c.l.b16 %v100
  %v385 = vunpack.c.l.b16 %v101
  %v386 = vunpack.c.l.b16 %v102
  %v387 = vunpack.c.l.b16 %v103
  %v388 = vunpack.c.l.b16 %v104
  %v389 = vunpack.c.l.b16 %v105
  %v390 = vunpack.c.l.b16 %v106
  %v391 = vunpack.c.l.b16 %v107
  %v392 = vunpack.c.l.b16 %v108
  %v393 = vunpack.c.l.b16 %v109
  %v394 = vunpack.c.l.b16 %v110
  %v395 = vunpack.c.l.b16 %v111
  %v396 = vunpack.c.l.b16 %v112
  %v397 = vunpack.c.l.b16 %v113
  %v398 = vunpack.c.l.b16 %v114
  %v399 = vunpack.c.l.b16 %v115
  %v400 = vunpack.c.l.b16 %v116
  %v401 = vunpack.c.l.b16 %v117
  %v402 = vunpack.c.l.b16 %v118
  %v403 = vunpack.c.l.b16 %v119
  %v404 = vunpack.c.l.b16 %v120
  %v405 = vunpack.c.l.b16 %v121
  %v406 = vunpack.c.l.b16 %v122
  %v407 = vunpack.c.l.b16 %v123
  %v408 = vunpack.c.l.b16 %v124
  %v409 = vunpack.c.l.b16 %v125
  %v410 = vunpack.c.l.b16 %v126
  %v411 = vunpack.c.l.b16 %v127
  %v412 = vunpack.c.l.b16 %v128
  %v413 = vunpack.c.l.b16 %v129
  %v414 = vunpack.c.l.b16 %v130
  %v415 = vunpack.c.l.b16 %v131
  %v416 = vunpack.c.l.b16 %v132
  %v417 = vunpack.c.l.b16 %v133
  %v418 = vunpack.c.l.b16 %v134
  %v419 = vunpack.c.l.b16 %v135
  %v420 = vunpack.c.l.b16 %v136
  %v421 = vunpack.c.l.b16 %v137
  %v422 = vunpack.c.l.b16 %v138
  %v423 = vunpack.c.l.b16 %v139
  %v424 = vunpack.c.l.b16 %v140
  %v425 = vunpack.c.l.b16 %v141
  %v426 = vunpack.c.l.b16 %v142
  %v427 = vunpack.c.l.b16 %v143
  %v428 = vpack.c.b16 %v301, %v300
  %v429 = vpack.c.b16 %v303, %v302
  %v430 = vpack.c.b16 %v305, %v304
  %v431 = vpack.c.b16 %v307, %v306
  %v432 = vpack.c.b16 %v309, %v308
  %v433 = vpack.c.b16 %v311, %v310
  %v434 = vpack.c.b16 %v313, %v312
  %v435 = vpack.c.b16 %v315, %v314
  %v436 = vpack.c.b16 %v317, %v316
  %v437 = vpack.c.b16 %v319, %v318
  %v438 = vpack.c.b16 %v321, %v320
  %v439 = vpack.c.b16 %v323, %v322
  %v440 = vpack.c.b16 %v325, %v324
  %v441 = vpack.c.b16 %v327, %v326
  %v442 = vpack.c.b16 %v329, %v328
  %v443 = vpack.c.b16 %v331, %v330
  %v444 = vpack.c.b16 %v333, %v332
  %v445 = vpack.c.b16 %v335, %v334
  %v446 = vpack.c.b16 %v337, %v336
  %v447 = vpack.c.b16 %v339, %v338
  %v448 = vpack.c.b16 %v341, %v340
  %v449 = vpack.c.b16 %v343, %v342
  %v450 = vpack.c.b16 %v345, %v344
  %v451 = vpack.c.b16 %v347, %v346
  %v452 = vpack.c.b16 %v349, %v348
  %v453 = vpack.c.b16 %v351, %v350
  %v454 = vpack.c.b16 %v353, %v352
  %v455 = vpack.c.b16 %v355, %v354
  %v456 = vpack.c.b16 %v357, %v356
  %v457 = vpack.c.b16 %v359, %v358
  %v458 = vpack.c.b16 %v361, %v360
  %v459 = vpack.c.b16 %v363, %v362
  %v460 = vpack.c.b16 %v365, %v364
  %v461 = vpack.c.b16 %v367, %v366
  %v462 = vpack.c.b16 %v369, %v368
  %v463 = vpack.c.b16 %v371, %v370
  %v464 = vpack.c.b16 %v373, %v372
  %v465 = vpack.c.b16 %v375, %v374
  %v466 = vpack.c.b16 %v377, %v376
  %v467 = vpack.c.b16 %v379, %v378
  %v468 = vpack.c.b16 %v381, %v380
  %v469 = vpack.c.b16 %v383, %v382
  %v470 = vpack.c.b16 %v385, %v384
  %v471 = vpack.c.b16 %v387, %v386
  %v472 = vpack.c.b16 %v389, %v388
  %v473 = vpack.c.b16 %v391, %v390
  %v474 = vpack.c.b16 %v393, %v392
  %v475 = vpack.c.b16 %v395, %v394
  %v476 = vpack.c.b16 %v397, %v396
  %v477 = vpack.c.b16 %v399, %v398
  %v478 = vpack.c.b16 %v401, %v400
  %v479 = vpack.c.b16 %v403, %v402
  %v480 = vpack.c.b16 %v405, %v404
  %v481 = vpack.c.b16 %v407, %v406
  %v482 = vpack.c.b16 %v409, %v408
  %v483 = vpack.c.b16 %v411, %v410
  %v484 = vpack.c.b16 %v413, %v412
  %v485 = vpack.c.b16 %v415, %v414
  %v486 = vpack.c.b16 %v417, %v416
  %v487 = vpack.c.b16 %v419, %v418
  %v488 = vpack.c.b16 %v421, %v420
  %v489 = vpack.c.b16 %v423, %v422
  %v490 = vpack.c.b16 %v425, %v424
  %v491 = vpack.c.b16 %v427, %v426
  %556 = vmatprep.subr.bf16.mxu0 0
  %557 = vmatpush1.bf16.msra.mxu0 %v435
  %558 = vmatprep.subr.bf16.mxu0 0
  %559 = vmatpush1.bf16.msra.mxu0 %v434
  %560 = vmatprep.subr.bf16.mxu0 0
  %561 = vmatpush1.bf16.msra.mxu0 %v433
  %562 = vmatprep.subr.bf16.mxu0 0
  %563 = vmatpush1.bf16.msra.mxu0 %v432
  %564 = vmatprep.subr.bf16.mxu0 0
  %565 = vmatpush1.bf16.msra.mxu0 %v431
  %566 = vmatprep.subr.bf16.mxu0 0
  %567 = vmatpush1.bf16.msra.mxu0 %v430
  %568 = vmatprep.subr.bf16.mxu0 0
  %569 = vmatpush1.bf16.msra.mxu0 %v429
  %570 = vmatprep.subr.bf16.mxu0 0
  %571 = vmatpush1.bf16.msra.mxu0 %v428
  %572 = vmatprep.subr.bf16.mxu0 0
  %573 = vmatpush2.bf16.msra.mxu0 %v443
  %574 = vmatprep.subr.bf16.mxu0 0
  %575 = vmatpush2.bf16.msra.mxu0 %v442
  %576 = vmatprep.subr.bf16.mxu0 0
  %577 = vmatpush2.bf16.msra.mxu0 %v441
  %578 = vmatprep.subr.bf16.mxu0 0
  %579 = vmatpush2.bf16.msra.mxu0 %v440
  %580 = vmatprep.subr.bf16.mxu0 0
  %581 = vmatpush2.bf16.msra.mxu0 %v439
  %582 = vmatprep.subr.bf16.mxu0 0
  %583 = vmatpush2.bf16.msra.mxu0 %v438
  %584 = vmatprep.subr.bf16.mxu0 0
  %585 = vmatpush2.bf16.msra.mxu0 %v437
  %586 = vmatprep.subr.bf16.mxu0 0
  %587 = vmatpush2.bf16.msra.mxu0 %v436
  %588 = vmatprep.mubr.bf16.mxu0 %v157
  %589 = vmatmul.mubr.bf16.gmra.mxu0 %v156
  %v590 = vpop.f32.mrf.mxu0
  %v591 = vadd.f32 0.0, %v590
  %v592 = vpop.f32.mrf.mxu0
  %v593 = vpop.f32.mrf.mxu0
  %v594 = vpop.f32.mrf.mxu0
  %595 = vdwg.mxu0
  %596 = vmatprep.subr.bf16.mxu0 0
  %597 = vmatpush1.bf16.msra.mxu0 %v451
  %598 = vmatprep.subr.bf16.mxu0 0
  %599 = vmatpush1.bf16.msra.mxu0 %v450
  %600 = vmatprep.subr.bf16.mxu0 0
  %601 = vmatpush1.bf16.msra.mxu0 %v449
  %602 = vmatprep.subr.bf16.mxu0 0
  %603 = vmatpush1.bf16.msra.mxu0 %v448
  %604 = vmatprep.subr.bf16.mxu0 0
  %605 = vmatpush1.bf16.msra.mxu0 %v447
  %606 = vmatprep.subr.bf16.mxu0 0
  %607 = vmatpush1.bf16.msra.mxu0 %v446
  %608 = vmatprep.subr.bf16.mxu0 0
  %609 = vmatpush1.bf16.msra.mxu0 %v445
  %610 = vmatprep.subr.bf16.mxu0 0
  %611 = vmatpush1.bf16.msra.mxu0 %v444
  %612 = vmatprep.subr.bf16.mxu0 0
  %613 = vmatpush2.bf16.msra.mxu0 %v459
  %614 = vmatprep.subr.bf16.mxu0 0
  %615 = vmatpush2.bf16.msra.mxu0 %v458
  %616 = vmatprep.subr.bf16.mxu0 0
  %617 = vmatpush2.bf16.msra.mxu0 %v457
  %618 = vmatprep.subr.bf16.mxu0 0
  %619 = vmatpush2.bf16.msra.mxu0 %v456
  %620 = vmatprep.subr.bf16.mxu0 0
  %621 = vmatpush2.bf16.msra.mxu0 %v455
  %622 = vmatprep.subr.bf16.mxu0 0
  %623 = vmatpush2.bf16.msra.mxu0 %v454
  %624 = vmatprep.subr.bf16.mxu0 0
  %625 = vmatpush2.bf16.msra.mxu0 %v453
  %626 = vmatprep.subr.bf16.mxu0 0
  %627 = vmatpush2.bf16.msra.mxu0 %v452
  %628 = vmatprep.mubr.bf16.mxu0 %v159
  %629 = vmatmul.mubr.bf16.gmra.mxu0 %v158
  %v630 = vpop.f32.mrf.mxu0
  %v631 = vadd.f32 %v591, %v630
  %v632 = vpop.f32.mrf.mxu0
  %v633 = vpop.f32.mrf.mxu0
  %v634 = vpop.f32.mrf.mxu0
  %635 = vdwg.mxu0
  %636 = vmatprep.subr.bf16.mxu0 0
  %637 = vmatpush1.bf16.msra.mxu0 %v467
  %638 = vmatprep.subr.bf16.mxu0 0
  %639 = vmatpush1.bf16.msra.mxu0 %v466
  %640 = vmatprep.subr.bf16.mxu0 0
  %641 = vmatpush1.bf16.msra.mxu0 %v465
  %642 = vmatprep.subr.bf16.mxu0 0
  %643 = vmatpush1.bf16.msra.mxu0 %v464
  %644 = vmatprep.subr.bf16.mxu0 0
  %645 = vmatpush1.bf16.msra.mxu0 %v463
  %646 = vmatprep.subr.bf16.mxu0 0
  %647 = vmatpush1.bf16.msra.mxu0 %v462
  %648 = vmatprep.subr.bf16.mxu0 0
  %649 = vmatpush1.bf16.msra.mxu0 %v461
  %650 = vmatprep.subr.bf16.mxu0 0
  %651 = vmatpush1.bf16.msra.mxu0 %v460
  %652 = vmatprep.subr.bf16.mxu0 0
  %653 = vmatpush2.bf16.msra.mxu0 %v475
  %654 = vmatprep.subr.bf16.mxu0 0
  %655 = vmatpush2.bf16.msra.mxu0 %v474
  %656 = vmatprep.subr.bf16.mxu0 0
  %657 = vmatpush2.bf16.msra.mxu0 %v473
  %658 = vmatprep.subr.bf16.mxu0 0
  %659 = vmatpush2.bf16.msra.mxu0 %v472
  %660 = vmatprep.subr.bf16.mxu0 0
  %661 = vmatpush2.bf16.msra.mxu0 %v471
  %662 = vmatprep.subr.bf16.mxu0 0
  %663 = vmatpush2.bf16.msra.mxu0 %v470
  %664 = vmatprep.subr.bf16.mxu0 0
  %665 = vmatpush2.bf16.msra.mxu0 %v469
  %666 = vmatprep.subr.bf16.mxu0 0
  %667 = vmatpush2.bf16.msra.mxu0 %v468
  %668 = vmatprep.mubr.bf16.mxu0 %v161
  %669 = vmatmul.mubr.bf16.gmra.mxu0 %v160
  %v670 = vpop.f32.mrf.mxu0
  %v671 = vadd.f32 %v631, %v670
  %v672 = vpop.f32.mrf.mxu0
  %v673 = vpop.f32.mrf.mxu0
  %v674 = vpop.f32.mrf.mxu0
  %675 = vdwg.mxu0
  %676 = vmatprep.subr.bf16.mxu0 0
  %677 = vmatpush1.bf16.msra.mxu0 %v483
  %678 = vmatprep.subr.bf16.mxu0 0
  %679 = vmatpush1.bf16.msra.mxu0 %v482
  %680 = vmatprep.subr.bf16.mxu0 0
  %681 = vmatpush1.bf16.msra.mxu0 %v481
  %682 = vmatprep.subr.bf16.mxu0 0
  %683 = vmatpush1.bf16.msra.mxu0 %v480
  %684 = vmatprep.subr.bf16.mxu0 0
  %685 = vmatpush1.bf16.msra.mxu0 %v479
  %686 = vmatprep.subr.bf16.mxu0 0
  %687 = vmatpush1.bf16.msra.mxu0 %v478
  %688 = vmatprep.subr.bf16.mxu0 0
  %689 = vmatpush1.bf16.msra.mxu0 %v477
  %690 = vmatprep.subr.bf16.mxu0 0
  %691 = vmatpush1.bf16.msra.mxu0 %v476
  %692 = vmatprep.subr.bf16.mxu0 0
  %693 = vmatpush2.bf16.msra.mxu0 %v491
  %694 = vmatprep.subr.bf16.mxu0 0
  %695 = vmatpush2.bf16.msra.mxu0 %v490
  %696 = vmatprep.subr.bf16.mxu0 0
  %697 = vmatpush2.bf16.msra.mxu0 %v489
  %698 = vmatprep.subr.bf16.mxu0 0
  %699 = vmatpush2.bf16.msra.mxu0 %v488
  %700 = vmatprep.subr.bf16.mxu0 0
  %701 = vmatpush2.bf16.msra.mxu0 %v487
  %702 = vmatprep.subr.bf16.mxu0 0
  %703 = vmatpush2.bf16.msra.mxu0 %v486
  %704 = vmatprep.subr.bf16.mxu0 0
  %705 = vmatpush2.bf16.msra.mxu0 %v485
  %706 = vmatprep.subr.bf16.mxu0 0
  %707 = vmatpush2.bf16.msra.mxu0 %v484
  %708 = vmatprep.mubr.bf16.mxu0 %v163
  %709 = vmatmul.mubr.bf16.gmra.mxu0 %v162
  %v710 = vpop.f32.mrf.mxu0
  %v711 = vadd.f32 %v671, %v710
  %v712 = vpop.f32.mrf.mxu0
  %v713 = vpop.f32.mrf.mxu0
  %v714 = vpop.f32.mrf.mxu0
  %715 = vdwg.mxu0
  %v716 = vsub.f32 0.0, %v711
  %v717 = vmul.f32 %v716, 1.442695
  %v718 = vpow.pop %v717
  %v719 = vadd.f32 %v718, 1.0
  %v720 = vrcp.pop %v719
  %v721 = vmul.f32 1.0, %v720
  %vm722 = vcmask 15360
  %723 = vst.msk [vmem:[%s2] sm:$0xff] %vm722, %v721
  // Predicated region
  $region10: #{dcgan_discriminator_forward.9} parent=0 // pred_check
    _
  $region11: #{dcgan_discriminator_forward.9} parent=0 // pred_check_branch
    %725 = sbr.rel (0) target = $region13
  $region12: #{dcgan_discriminator_forward.9} parent=0 // pred_region
    _
  $region13: #{dcgan_discriminator_forward.9} parent=0 // pred_fallthru
    _
  // Predicated region
  $region14: #{dcgan_discriminator_forward.9} parent=0 // pred_check
    _
  $region15: #{dcgan_discriminator_forward.9} parent=0 // pred_check_branch
    %727 = sbr.rel (0) target = $region17
  $region16: #{dcgan_discriminator_forward.9} parent=0 // pred_region
    _
  $region17: #{dcgan_discriminator_forward.9} parent=0 // pred_fallthru
    _

</llo_original>
